<compile_context>
chip_gen: v6e
topology: v6e:2x2x1
jax: 0.10.0
libtpu: 0.0.40
codegen_flags: <defaults>
</compile_context>

<pallas_src>
import functools

import jax
import jax.numpy as jnp
from jax import lax
from jax.experimental import pallas as pl
from jax.experimental.pallas import tpu as pltpu


def _round_up(x, m):
    return (x + m - 1) // m * m


# ----------------------------------------------------------------------------
# Fused (Bi)GRU layer kernel
# ----------------------------------------------------------------------------
def bigru_layer_kernel(x_ref, len_ref, wih_ref, whh_ref, bgi_ref, bhn_ref,
                       out_ref, gi_ref, h_ref, raw_ref, *,
                       Hp, num_dirs, fuse_epilogue, no_txtnorm):
    """One (bi-directional) GRU layer over the full sequence + fused epilogue.

    Shapes (TB = batch tile, multiple of 8; Hp / Dp multiples of 128):
      x_ref   : (L, TB, Dp)           f32  time-major input (zero padded)
      len_ref : (TB, 1)               i32  valid lengths (0 for padded rows)
      wih_ref : (Dp, num_dirs*3*Hp)   f32/bf16  input->gate weights, gates (r,z,n)
      whh_ref : (num_dirs*Hp, 3*Hp)   f32/bf16  hidden->gate weights, fwd rows then bwd
      bgi_ref : (1, num_dirs*3*Hp)    f32  b_ih + (b_hr, b_hz, 0) folded
      bhn_ref : (1, num_dirs*Hp)      f32  b_hn per direction
      out_ref : (L, TB, Hp) if fuse_epilogue else (L, TB, num_dirs*Hp)
      gi_ref  : (L*TB, num_dirs*3*Hp) f32  scratch: precomputed input projections
      h_ref   : (num_dirs*TB, Hp)     f32  scratch: stacked fwd/bwd hidden state
      raw_ref : (L, TB, num_dirs*Hp)  f32  scratch: per-direction outputs
    """
    L, TB, Dp = x_ref.shape
    G = 3 * Hp
    mm_dtype = whh_ref.dtype

    # (1) Hoisted input projection: one big MXU matmul over all timesteps,
    #     biases (b_ih + b_hr/b_hz) folded in once.
    x2d = x_ref[...].reshape(L * TB, Dp).astype(mm_dtype)
    gi_ref[...] = (jnp.dot(x2d, wih_ref[...],
                           preferred_element_type=jnp.float32) + bgi_ref[...])

    # (2) Hoisted loop invariants.
    h_ref[...] = jnp.zeros_like(h_ref)
    lengths = len_ref[...]                                        # (TB, 1) i32
    if num_dirs == 2:
        lengths2 = jnp.concatenate([lengths, lengths], axis=0)    # (2TB, 1)
        row = lax.broadcasted_iota(jnp.int32, (2 * TB, 1), 0)
        fwd_rows = (row < TB).astype(jnp.float32)                 # (2TB, 1)
        bwd_rows = 1.0 - fwd_rows
        bhn_stack = jnp.concatenate(
            [jnp.broadcast_to(bhn_ref[:, 0:Hp], (TB, Hp)),
             jnp.broadcast_to(bhn_ref[:, Hp:2 * Hp], (TB, Hp))], axis=0)
    else:
        bhn_stack = jnp.broadcast_to(bhn_ref[...], (TB, Hp))

    # (3) Serial recurrence; fwd and bwd advance together (bwd walks the
    #     sequence from the end).  A block-diagonal (2TB, 2Hp) hidden state
    #     lets ONE matmul apply each direction's own W_hh.
    def step(i, carry):
        t_f = i
        base_f = pl.multiple_of(t_f * TB, TB)
        gi_f = gi_ref[pl.ds(base_f, TB), 0:G]                     # (TB, G)
        if num_dirs == 2:
            t_b = (L - 1) - i
            base_b = pl.multiple_of(t_b * TB, TB)
            gi_b = gi_ref[pl.ds(base_b, TB), G:2 * G]             # (TB, G)
            gi = jnp.concatenate([gi_f, gi_b], axis=0)            # (2TB, G)
            h = h_ref[...]                                        # (2TB, Hp)
            h_blk = jnp.concatenate([h * fwd_rows, h * bwd_rows], axis=1)
            t_stack = jnp.where(row < TB, t_f, t_b)               # (2TB, 1)
            valid = t_stack < lengths2                            # (2TB, 1)
        else:
            gi = gi_f
            h = h_ref[...]
            h_blk = h
            valid = t_f < lengths

        gh = jnp.dot(h_blk.astype(mm_dtype), whh_ref[...],
                     preferred_element_type=jnp.float32)          # (nd*TB, G)

        r = jax.nn.sigmoid(gi[:, 0:Hp] + gh[:, 0:Hp])
        z = jax.nn.sigmoid(gi[:, Hp:2 * Hp] + gh[:, Hp:2 * Hp])
        n = jnp.tanh(gi[:, 2 * Hp:3 * Hp] + r * (gh[:, 2 * Hp:3 * Hp] + bhn_stack))
        h_new = (1.0 - z) * n + z * h

        h_ref[...] = jnp.where(valid, h_new, h)
        out_t = jnp.where(valid, h_new, 0.0)       # packed-seq zero padding

        # full-width, lane-aligned stores (128 lanes x TB sublanes)
        if num_dirs == 2:
            raw_ref[t_f, :, 0:Hp] = out_t[0:TB]
            raw_ref[t_b, :, Hp:2 * Hp] = out_t[TB:2 * TB]
        else:
            raw_ref[t_f] = out_t
        return carry

    lax.fori_loop(0, L, step, 0, unroll=True if L <= 16 else 4)

    # (4) Fused epilogue: average directions + l2norm (module post-processing).
    raw = raw_ref[...]
    if fuse_epilogue:
        if num_dirs == 2:
            emb = (raw[:, :, 0:Hp] + raw[:, :, Hp:2 * Hp]) * 0.5
        else:
            emb = raw
        if not no_txtnorm:
            norm = jnp.sqrt(jnp.sum(emb * emb, axis=-1, keepdims=True)) + 1e-8
            emb = emb / norm
        out_ref[...] = emb.astype(out_ref.dtype)
    else:
        out_ref[...] = raw.astype(out_ref.dtype)


# ----------------------------------------------------------------------------
# pallas_call wrapper
# ----------------------------------------------------------------------------
def _choose_batch_tile(Bp, per_row_bytes, cap_bytes=8 << 20):
    tb = 8
    for cand in range(8, Bp + 1, 8):
        if Bp % cand == 0 and cand * per_row_bytes <= cap_bytes:
            tb = cand
    return tb


def run_bigru_layer(x, lengths_col, wih, whh, bgi, bhn, *,
                    Hp, num_dirs, fuse_epilogue, no_txtnorm,
                    out_dtype=jnp.float32):
    L, Bp, Dp = x.shape
    out_w = Hp if fuse_epilogue else num_dirs * Hp
    # Per-batch-row VMEM footprint (Pallas double-buffers the blocked in/out);
    # the cap keeps blocks well under v7x's 64 MiB VMEM.
    per_row = (2 * L * Dp * 4
               + 2 * L * out_w * jnp.dtype(out_dtype).itemsize
               + L * num_dirs * 3 * Hp * 4
               + L * num_dirs * Hp * 4
               + 2 * num_dirs * Hp * 4)
    TB = _choose_batch_tile(Bp, per_row)

    kernel = functools.partial(bigru_layer_kernel, Hp=Hp, num_dirs=num_dirs,
                               fuse_epilogue=fuse_epilogue, no_txtnorm=no_txtnorm)

    def _full(a):
        return pl.BlockSpec(a.shape, lambda b, _n=a.ndim: (0,) * _n)

    return pl.pallas_call(
        kernel,
        out_shape=jax.ShapeDtypeStruct((L, Bp, out_w), out_dtype),
        grid=(Bp // TB,),
        in_specs=[
            pl.BlockSpec((L, TB, Dp), lambda b: (0, b, 0)),
            pl.BlockSpec((TB, 1), lambda b: (b, 0)),
            _full(wih), _full(whh), _full(bgi), _full(bhn),
        ],
        out_specs=pl.BlockSpec((L, TB, out_w), lambda b: (0, b, 0)),
        scratch_shapes=[
            pltpu.VMEM((L * TB, num_dirs * 3 * Hp), jnp.float32),
            pltpu.VMEM((num_dirs * TB, Hp), jnp.float32),
            pltpu.VMEM((L, TB, num_dirs * Hp), jnp.float32),
        ],
        compiler_params=pltpu.CompilerParams(
            dimension_semantics=("parallel",)),
    )(x, lengths_col, wih, whh, bgi, bhn)


# ----------------------------------------------------------------------------
# Weight padding: PyTorch GRU layout -> lane/sublane aligned, pre-transposed
# ----------------------------------------------------------------------------
def _pad_dir_weights(p, in_map, d_in_pad, H, Hp):
    """in_map: list of (src_off, size, dst_off) mapping real input features into
    the padded input axis.  Padded gate/hidden columns are zero, which keeps the
    extra hidden units exactly at 0 through the recurrence."""
    w_ih, w_hh = p["w_ih"], p["w_hh"]          # (3H, Din_real), (3H, H)
    b_ih, b_hh = p["b_ih"], p["b_hh"]          # (3H,), (3H,)
    w_ih_p = jnp.zeros((d_in_pad, 3 * Hp), jnp.float32)
    w_hh_p = jnp.zeros((Hp, 3 * Hp), jnp.float32)
    bgi = jnp.zeros((3 * Hp,), jnp.float32)
    bhn = jnp.zeros((Hp,), jnp.float32)
    for g in range(3):
        wg = w_ih[g * H:(g + 1) * H]
        for (src, size, dst) in in_map:
            w_ih_p = w_ih_p.at[dst:dst + size, g * Hp:g * Hp + H].set(
                jnp.transpose(wg[:, src:src + size]))
        w_hh_p = w_hh_p.at[0:H, g * Hp:g * Hp + H].set(
            jnp.transpose(w_hh[g * H:(g + 1) * H]))
        b_g = b_ih[g * H:(g + 1) * H]
        if g < 2:                               # fold b_hr / b_hz into GI bias
            b_g = b_g + b_hh[g * H:(g + 1) * H]
        bgi = bgi.at[g * Hp:g * Hp + H].set(b_g)
    bhn = bhn.at[0:H].set(b_hh[2 * H:3 * H])
    return w_ih_p, w_hh_p, bgi, bhn


# ----------------------------------------------------------------------------
# EncoderText forward
# ----------------------------------------------------------------------------
def init_encoder_text_params(key, vocab_size, word_dim, embed_size, num_layers, use_bi_gru):
    params = {}
    key, k_emb = jax.random.split(key)
    params["embed"] = jax.random.uniform(k_emb, (vocab_size, word_dim),
                                         jnp.float32, -0.1, 0.1)
    k = 1.0 / jnp.sqrt(embed_size)
    num_dirs = 2 if use_bi_gru else 1
    gru = []
    for layer in range(num_layers):
        in_dim = word_dim if layer == 0 else embed_size * num_dirs
        dirs = []
        for _ in range(num_dirs):
            key, k1, k2, k3, k4 = jax.random.split(key, 5)
            dirs.append(dict(
                w_ih=jax.random.uniform(k1, (3 * embed_size, in_dim), jnp.float32, -k, k),
                w_hh=jax.random.uniform(k2, (3 * embed_size, embed_size), jnp.float32, -k, k),
                b_ih=jax.random.uniform(k3, (3 * embed_size,), jnp.float32, -k, k),
                b_hh=jax.random.uniform(k4, (3 * embed_size,), jnp.float32, -k, k),
            ))
        gru.append(dirs)
    params["gru"] = gru
    return params


def encoder_text_forward(params, captions, lengths, embed_size,
                         use_bi_gru=True, no_txtnorm=False,
                         compute_dtype=jnp.bfloat16):
    B, L = captions.shape
    H = embed_size
    Hp = _round_up(H, 128)
    nd = 2 if use_bi_gru else 1

    cap_emb = jnp.take(params["embed"], captions, axis=0)         # (B, L, D)
    # TODO(synk): nn.Dropout(0.4) treated as inference-mode identity (no RNG replay).
    D = cap_emb.shape[-1]
    Dp0 = _round_up(D, 128)
    Bp = _round_up(B, 8)

    x = jnp.transpose(cap_emb, (1, 0, 2)).astype(jnp.float32)     # (L, B, D)
    x = jnp.pad(x, ((0, 0), (0, Bp - B), (0, Dp0 - D)))
    lengths_col = jnp.pad(lengths.astype(jnp.int32), (0, Bp - B)).reshape(Bp, 1)

    num_layers = len(params["gru"])
    for li, layer_params in enumerate(params["gru"]):
        if li == 0:
            in_map, d_in_pad = [(0, D, 0)], Dp0
        elif nd == 2:
            in_map, d_in_pad = [(0, H, 0), (H, H, Hp)], 2 * Hp
        else:
            in_map, d_in_pad = [(0, H, 0)], Hp

        wi_l, wh_l, bg_l, bn_l = [], [], [], []
        for p in layer_params:
            wi, wh, bg, bn = _pad_dir_weights(p, in_map, d_in_pad, H, Hp)
            wi_l.append(wi); wh_l.append(wh); bg_l.append(bg); bn_l.append(bn)
        wih_all = jnp.concatenate(wi_l, axis=1).astype(compute_dtype)
        whh_all = jnp.concatenate(wh_l, axis=0).astype(compute_dtype)
        bgi_all = jnp.concatenate(bg_l).reshape(1, -1)
        bhn_all = jnp.concatenate(bn_l).reshape(1, -1)

        last = (li == num_layers - 1)
        x = run_bigru_layer(x, lengths_col, wih_all, whh_all, bgi_all, bhn_all,
                            Hp=Hp, num_dirs=nd, fuse_epilogue=last,
                            no_txtnorm=no_txtnorm, out_dtype=jnp.float32)

    # single tiny layout fixup back to the module's (B, L, embed_size)
    return jnp.transpose(x, (1, 0, 2))[:B, :, :H]


# ----------------------------------------------------------------------------
# Pure-JAX reference (mirrors PyTorch packed (Bi)GRU semantics)
# ----------------------------------------------------------------------------
def _gru_dir_ref(x, lengths, p, hidden, reverse):
    B, L, _ = x.shape
    h = jnp.zeros((B, hidden), jnp.float32)
    outs = [None] * L
    t_order = range(L - 1, -1, -1) if reverse else range(L)
    for t in t_order:
        gi = x[:, t, :] @ p["w_ih"].T + p["b_ih"]
        gh = h @ p["w_hh"].T + p["b_hh"]
        r = jax.nn.sigmoid(gi[:, :hidden] + gh[:, :hidden])
        z = jax.nn.sigmoid(gi[:, hidden:2 * hidden] + gh[:, hidden:2 * hidden])
        n = jnp.tanh(gi[:, 2 * hidden:] + r * gh[:, 2 * hidden:])
        h_new = (1.0 - z) * n + z * h
        mask = (t < lengths)[:, None]
        h = jnp.where(mask, h_new, h)
        outs[t] = jnp.where(mask, h_new, 0.0)
    return jnp.stack(outs, axis=1)


def encoder_text_ref(params, captions, lengths, embed_size, use_bi_gru, no_txtnorm):
    x = jnp.take(params["embed"], captions, axis=0).astype(jnp.float32)
    for layer_params in params["gru"]:
        outs = [_gru_dir_ref(x, lengths, p, embed_size, reverse=(d == 1))
                for d, p in enumerate(layer_params)]
        x = outs[0] if len(outs) == 1 else jnp.concatenate(outs, axis=-1)
    if use_bi_gru:
        x = (x[:, :, :embed_size] + x[:, :, embed_size:]) / 2.0
    if not no_txtnorm:
        norm = jnp.sqrt(jnp.sum(x * x, axis=-1, keepdims=True)) + 1e-8
        x = x / norm
    return x


# ----------------------------------------------------------------------------
if __name__ == "__main__":
    vocab_size, word_dim, embed_size = 50, 32, 32
    num_layers, use_bi_gru, no_txtnorm = 1, True, False
    B, L = 2, 8

    key = jax.random.PRNGKey(0)
    params = init_encoder_text_params(key, vocab_size, word_dim, embed_size,
                                      num_layers, use_bi_gru)
    key_cap = jax.random.PRNGKey(1)
    captions = jax.random.randint(key_cap, (B, L), 0, vocab_size, dtype=jnp.int32)
    lengths = jnp.array([8, 5], dtype=jnp.int32)   # sorted descending, max == L

    ref = encoder_text_ref(params, captions, lengths, embed_size,
                           use_bi_gru, no_txtnorm)

    # exact-precision path (f32 matmul operands)
    out_f32 = jax.block_until_ready(encoder_text_forward(
        params, captions, lengths, embed_size, use_bi_gru=use_bi_gru,
        no_txtnorm=no_txtnorm, compute_dtype=jnp.float32))
    assert out_f32.shape == (B, L, embed_size)
    assert jnp.allclose(out_f32, ref, atol=1e-4, rtol=1e-4), "f32 mismatch vs reference"

    # fast path (bf16 MXU operands, f32 accumulation and hidden state)
    out_bf16 = jax.block_until_ready(encoder_text_forward(
        params, captions, lengths, embed_size, use_bi_gru=use_bi_gru,
        no_txtnorm=no_txtnorm, compute_dtype=jnp.bfloat16))
    assert out_bf16.shape == (B, L, embed_size)
    assert jnp.allclose(out_bf16, ref, atol=5e-2, rtol=5e-2), "bf16 mismatch vs reference"

    print("KERNEL_OK")
</pallas_src>

<mosaic_0001>
module attributes {stable_mosaic.version = 11 : i64} {
  func.func @bigru_layer_kernel(%arg0: i32, %arg1: memref<8x8x128xf32, #tpu.memory_space<vmem>>, %arg2: memref<8x1xi32, #tpu.memory_space<vmem>>, %arg3: memref<128x768xf32, #tpu.memory_space<vmem>>, %arg4: memref<256x384xf32, #tpu.memory_space<vmem>>, %arg5: memref<1x768xf32, #tpu.memory_space<vmem>>, %arg6: memref<1x256xf32, #tpu.memory_space<vmem>>, %arg7: memref<8x8x128xf32, #tpu.memory_space<vmem>>, %arg8: memref<64x768xf32, #tpu.memory_space<vmem>>, %arg9: memref<16x128xf32, #tpu.memory_space<vmem>>, %arg10: memref<8x8x256xf32, #tpu.memory_space<vmem>>) attributes {dimension_semantics = [#tpu.dimension_semantics<parallel>], iteration_bounds = array<i64: 1>, scalar_prefetch = 0 : i64, scratch_operands = 3 : i64, tpu.core_type = #tpu.core_type<tc>, window_params = [{transform_indices = @transform_0, window_bounds = array<i64: 8, 8, 128>}, {transform_indices = @transform_1, window_bounds = array<i64: 8, 1>}, {pipeline_mode = #tpu.pipeline_mode<synchronous>, transform_indices = @transform_2, window_bounds = array<i64: 128, 768>}, {pipeline_mode = #tpu.pipeline_mode<synchronous>, transform_indices = @transform_3, window_bounds = array<i64: 256, 384>}, {pipeline_mode = #tpu.pipeline_mode<synchronous>, transform_indices = @transform_4, window_bounds = array<i64: 1, 768>}, {pipeline_mode = #tpu.pipeline_mode<synchronous>, transform_indices = @transform_5, window_bounds = array<i64: 1, 256>}, {transform_indices = @transform_6, window_bounds = array<i64: 8, 8, 128>}]} {
    %c0 = arith.constant 0 : index
    %c0_0 = arith.constant 0 : index
    %c0_1 = arith.constant 0 : index
    %0 = vector.load %arg1[%c0, %c0_0, %c0_1] : memref<8x8x128xf32, #tpu.memory_space<vmem>>, vector<8x8x128xf32>
    %1 = vector.shape_cast %0 : vector<8x8x128xf32> to vector<64x128xf32>
    %c0_2 = arith.constant 0 : index
    %c0_3 = arith.constant 0 : index
    %2 = vector.load %arg3[%c0_2, %c0_3] : memref<128x768xf32, #tpu.memory_space<vmem>>, vector<128x768xf32>
    %cst = arith.constant dense<0.000000e+00> : vector<64x768xf32>
    %3 = tpu.matmul %1, %2, %cst {dimension_numbers = #tpu.dot_dimension_numbers<[1], [0], [0], [1], [0, 0, 1, 1], [], []>} : vector<64x128xf32>, vector<128x768xf32>, vector<64x768xf32> -> vector<64x768xf32>
    %c0_4 = arith.constant 0 : index
    %c0_5 = arith.constant 0 : index
    %4 = vector.load %arg5[%c0_4, %c0_5] : memref<1x768xf32, #tpu.memory_space<vmem>>, vector<1x768xf32>
    %5 = vector.broadcast %4 : vector<1x768xf32> to vector<64x768xf32>
    %6 = arith.addf %3, %5 : vector<64x768xf32>
    %c0_6 = arith.constant 0 : index
    %c0_7 = arith.constant 0 : index
    %7 = vector.load %arg8[%c0_6, %c0_7] : memref<64x768xf32, #tpu.memory_space<vmem>>, vector<64x768xf32>
    tpu.vector_store %arg8[%c0_6, %c0_7], %6 {strides = array<i32>} : memref<64x768xf32, #tpu.memory_space<vmem>>, vector<64x768xf32>,
    %cst_8 = arith.constant 0.000000e+00 : f32
    %8 = vector.broadcast %cst_8 : f32 to vector<16x128xf32>
    %c0_9 = arith.constant 0 : index
    %c0_10 = arith.constant 0 : index
    %9 = vector.load %arg9[%c0_9, %c0_10] : memref<16x128xf32, #tpu.memory_space<vmem>>, vector<16x128xf32>
    tpu.vector_store %arg9[%c0_9, %c0_10], %8 {strides = array<i32>} : memref<16x128xf32, #tpu.memory_space<vmem>>, vector<16x128xf32>,
    %c0_11 = arith.constant 0 : index
    %c0_12 = arith.constant 0 : index
    %10 = vector.load %arg2[%c0_11, %c0_12] : memref<8x1xi32, #tpu.memory_space<vmem>>, vector<8x1xi32>
    %11 = tpu.concatenate %10, %10 in 0 : vector<8x1xi32>, vector<8x1xi32> -> vector<16x1xi32>
    %12 = tpu.iota {dimensions = array<i32: 0>} : vector<16x1xi32>
    %c8_i32 = arith.constant 8 : i32
    %13 = vector.broadcast %c8_i32 : i32 to vector<16x1xi32>
    %14 = arith.cmpi slt, %12, %13 : vector<16x1xi32>
    %15 = arith.extui %14 : vector<16x1xi1> to vector<16x1xi32>
    %16 = arith.sitofp %15 : vector<16x1xi32> to vector<16x1xf32>
    %cst_13 = arith.constant 1.000000e+00 : f32
    %17 = vector.broadcast %cst_13 : f32 to vector<16x1xf32>
    %18 = arith.subf %17, %16 : vector<16x1xf32>
    %c0_14 = arith.constant 0 : index
    %c0_15 = arith.constant 0 : index
    %19 = vector.load %arg6[%c0_14, %c0_15] : memref<1x256xf32, #tpu.memory_space<vmem>>, vector<1x128xf32>
    %20 = vector.shape_cast %19 : vector<1x128xf32> to vector<1x128xf32>
    %21 = vector.broadcast %20 : vector<1x128xf32> to vector<8x128xf32>
    %c0_16 = arith.constant 0 : index
    %c128 = arith.constant 128 : index
    %22 = vector.load %arg6[%c0_16, %c128] : memref<1x256xf32, #tpu.memory_space<vmem>>, vector<1x128xf32>
    %23 = vector.shape_cast %22 : vector<1x128xf32> to vector<1x128xf32>
    %24 = vector.broadcast %23 : vector<1x128xf32> to vector<8x128xf32>
    %25 = tpu.concatenate %21, %24 in 0 : vector<8x128xf32>, vector<8x128xf32> -> vector<16x128xf32>
    %c0_i32 = arith.constant 0 : i32
    %c8_i32_17 = arith.constant 8 : i32
    %26 = arith.muli %c0_i32, %c8_i32_17 : i32
    %27 = tpu.assume_multiple %26, 8 : i32
    %28 = arith.index_cast %27 : i32 to index
    %c0_18 = arith.constant 0 : index
    %29 = vector.load %arg8[%28, %c0_18] : memref<64x768xf32, #tpu.memory_space<vmem>>, vector<8x384xf32>
    %c7_i32 = arith.constant 7 : i32
    %30 = arith.subi %c7_i32, %c0_i32 : i32
    %c8_i32_19 = arith.constant 8 : i32
    %31 = arith.muli %30, %c8_i32_19 : i32
    %32 = tpu.assume_multiple %31, 8 : i32
    %33 = arith.index_cast %32 : i32 to index
    %c384 = arith.constant 384 : index
    %34 = vector.load %arg8[%33, %c384] : memref<64x768xf32, #tpu.memory_space<vmem>>, vector<8x384xf32>
    %35 = tpu.concatenate %29, %34 in 0 : vector<8x384xf32>, vector<8x384xf32> -> vector<16x384xf32>
    %c0_20 = arith.constant 0 : index
    %c0_21 = arith.constant 0 : index
    %36 = vector.load %arg9[%c0_20, %c0_21] : memref<16x128xf32, #tpu.memory_space<vmem>>, vector<16x128xf32>
    %37 = vector.broadcast %16 : vector<16x1xf32> to vector<16x128xf32>
    %38 = arith.mulf %36, %37 : vector<16x128xf32>
    %39 = vector.broadcast %18 : vector<16x1xf32> to vector<16x128xf32>
    %40 = arith.mulf %36, %39 : vector<16x128xf32>
    %41 = tpu.concatenate %38, %40 in 1 : vector<16x128xf32>, vector<16x128xf32> -> vector<16x256xf32>
    %c8_i32_22 = arith.constant 8 : i32
    %42 = vector.broadcast %c8_i32_22 : i32 to vector<16x1xi32>
    %43 = arith.cmpi slt, %12, %42 : vector<16x1xi32>
    %44 = vector.broadcast %c0_i32 : i32 to vector<16x1xi32>
    %45 = vector.broadcast %30 : i32 to vector<16x1xi32>
    %46 = arith.select %43, %44, %45 : vector<16x1xi1>, vector<16x1xi32>
    %47 = arith.cmpi slt, %46, %11 : vector<16x1xi32>
    %c0_23 = arith.constant 0 : index
    %c0_24 = arith.constant 0 : index
    %48 = vector.load %arg4[%c0_23, %c0_24] : memref<256x384xf32, #tpu.memory_space<vmem>>, vector<256x384xf32>
    %cst_25 = arith.constant dense<0.000000e+00> : vector<16x384xf32>
    %49 = tpu.matmul %41, %48, %cst_25 {dimension_numbers = #tpu.dot_dimension_numbers<[1], [0], [0], [1], [0, 0, 1, 1], [], []>} : vector<16x256xf32>, vector<256x384xf32>, vector<16x384xf32> -> vector<16x384xf32>
    %50 = vector.extract_strided_slice %35 {offsets = [0, 0], sizes = [16, 128], strides = [1, 1]} : vector<16x384xf32> to vector<16x128xf32>
    %51 = vector.extract_strided_slice %49 {offsets = [0, 0], sizes = [16, 128], strides = [1, 1]} : vector<16x384xf32> to vector<16x128xf32>
    %52 = arith.addf %50, %51 : vector<16x128xf32>
    %53 = arith.negf %52 : vector<16x128xf32>
    %54 = math.exp %53 : vector<16x128xf32>
    %cst_26 = arith.constant 1.000000e+00 : f32
    %55 = vector.broadcast %cst_26 : f32 to vector<16x128xf32>
    %56 = arith.addf %55, %54 : vector<16x128xf32>
    %57 = arith.divf %55, %56 : vector<16x128xf32>
    %58 = vector.extract_strided_slice %35 {offsets = [0, 128], sizes = [16, 128], strides = [1, 1]} : vector<16x384xf32> to vector<16x128xf32>
    %59 = vector.extract_strided_slice %49 {offsets = [0, 128], sizes = [16, 128], strides = [1, 1]} : vector<16x384xf32> to vector<16x128xf32>
    %60 = arith.addf %58, %59 : vector<16x128xf32>
    %61 = arith.negf %60 : vector<16x128xf32>
    %62 = math.exp %61 : vector<16x128xf32>
    %cst_27 = arith.constant 1.000000e+00 : f32
    %63 = vector.broadcast %cst_27 : f32 to vector<16x128xf32>
    %64 = arith.addf %63, %62 : vector<16x128xf32>
    %65 = arith.divf %63, %64 : vector<16x128xf32>
    %66 = vector.extract_strided_slice %35 {offsets = [0, 256], sizes = [16, 128], strides = [1, 1]} : vector<16x384xf32> to vector<16x128xf32>
    %67 = vector.extract_strided_slice %49 {offsets = [0, 256], sizes = [16, 128], strides = [1, 1]} : vector<16x384xf32> to vector<16x128xf32>
    %68 = arith.addf %67, %25 : vector<16x128xf32>
    %69 = arith.mulf %57, %68 : vector<16x128xf32>
    %70 = arith.addf %66, %69 : vector<16x128xf32>
    %71 = math.tanh %70 : vector<16x128xf32>
    %cst_28 = arith.constant 1.000000e+00 : f32
    %72 = vector.broadcast %cst_28 : f32 to vector<16x128xf32>
    %73 = arith.subf %72, %65 : vector<16x128xf32>
    %74 = arith.mulf %73, %71 : vector<16x128xf32>
    %75 = arith.mulf %65, %36 : vector<16x128xf32>
    %76 = arith.addf %74, %75 : vector<16x128xf32>
    %77 = vector.shape_cast %47 : vector<16x1xi1> to vector<16x1xi1>
    %78 = vector.broadcast %77 : vector<16x1xi1> to vector<16x128xi1>
    %79 = arith.select %78, %76, %36 : vector<16x128xi1>, vector<16x128xf32>
    %c0_29 = arith.constant 0 : index
    %c0_30 = arith.constant 0 : index
    %80 = vector.load %arg9[%c0_29, %c0_30] : memref<16x128xf32, #tpu.memory_space<vmem>>, vector<16x128xf32>
    tpu.vector_store %arg9[%c0_29, %c0_30], %79 {strides = array<i32>} : memref<16x128xf32, #tpu.memory_space<vmem>>, vector<16x128xf32>,
    %cst_31 = arith.constant 0.000000e+00 : f32
    %81 = vector.shape_cast %47 : vector<16x1xi1> to vector<16x1xi1>
    %82 = vector.broadcast %81 : vector<16x1xi1> to vector<16x128xi1>
    %83 = vector.broadcast %cst_31 : f32 to vector<16x128xf32>
    %84 = arith.select %82, %76, %83 : vector<16x128xi1>, vector<16x128xf32>
    %85 = vector.extract_strided_slice %84 {offsets = [0, 0], sizes = [8, 128], strides = [1, 1]} : vector<16x128xf32> to vector<8x128xf32>
    %86 = arith.index_cast %c0_i32 : i32 to index
    %c0_32 = arith.constant 0 : index
    %c0_33 = arith.constant 0 : index
    %87 = vector.load %arg10[%86, %c0_32, %c0_33] : memref<8x8x256xf32, #tpu.memory_space<vmem>>, vector<1x8x128xf32>
    %88 = vector.shape_cast %87 : vector<1x8x128xf32> to vector<8x128xf32>
    %89 = vector.shape_cast %85 : vector<8x128xf32> to vector<1x8x128xf32>
    tpu.vector_store %arg10[%86, %c0_32, %c0_33], %89 {strides = array<i32>} : memref<8x8x256xf32, #tpu.memory_space<vmem>>, vector<1x8x128xf32>,
    %90 = vector.extract_strided_slice %84 {offsets = [8, 0], sizes = [8, 128], strides = [1, 1]} : vector<16x128xf32> to vector<8x128xf32>
    %91 = arith.index_cast %30 : i32 to index
    %c0_34 = arith.constant 0 : index
    %c128_35 = arith.constant 128 : index
    %92 = vector.load %arg10[%91, %c0_34, %c128_35] : memref<8x8x256xf32, #tpu.memory_space<vmem>>, vector<1x8x128xf32>
    %93 = vector.shape_cast %92 : vector<1x8x128xf32> to vector<8x128xf32>
    %94 = vector.shape_cast %90 : vector<8x128xf32> to vector<1x8x128xf32>
    tpu.vector_store %arg10[%91, %c0_34, %c128_35], %94 {strides = array<i32>} : memref<8x8x256xf32, #tpu.memory_space<vmem>>, vector<1x8x128xf32>,
    %c1_i32 = arith.constant 1 : i32
    %c8_i32_36 = arith.constant 8 : i32
    %95 = arith.muli %c1_i32, %c8_i32_36 : i32
    %96 = tpu.assume_multiple %95, 8 : i32
    %97 = arith.index_cast %96 : i32 to index
    %c0_37 = arith.constant 0 : index
    %98 = vector.load %arg8[%97, %c0_37] : memref<64x768xf32, #tpu.memory_space<vmem>>, vector<8x384xf32>
    %c7_i32_38 = arith.constant 7 : i32
    %99 = arith.subi %c7_i32_38, %c1_i32 : i32
    %c8_i32_39 = arith.constant 8 : i32
    %100 = arith.muli %99, %c8_i32_39 : i32
    %101 = tpu.assume_multiple %100, 8 : i32
    %102 = arith.index_cast %101 : i32 to index
    %c384_40 = arith.constant 384 : index
    %103 = vector.load %arg8[%102, %c384_40] : memref<64x768xf32, #tpu.memory_space<vmem>>, vector<8x384xf32>
    %104 = tpu.concatenate %98, %103 in 0 : vector<8x384xf32>, vector<8x384xf32> -> vector<16x384xf32>
    %c0_41 = arith.constant 0 : index
    %c0_42 = arith.constant 0 : index
    %105 = vector.load %arg9[%c0_41, %c0_42] : memref<16x128xf32, #tpu.memory_space<vmem>>, vector<16x128xf32>
    %106 = vector.broadcast %16 : vector<16x1xf32> to vector<16x128xf32>
    %107 = arith.mulf %105, %106 : vector<16x128xf32>
    %108 = vector.broadcast %18 : vector<16x1xf32> to vector<16x128xf32>
    %109 = arith.mulf %105, %108 : vector<16x128xf32>
    %110 = tpu.concatenate %107, %109 in 1 : vector<16x128xf32>, vector<16x128xf32> -> vector<16x256xf32>
    %c8_i32_43 = arith.constant 8 : i32
    %111 = vector.broadcast %c8_i32_43 : i32 to vector<16x1xi32>
    %112 = arith.cmpi slt, %12, %111 : vector<16x1xi32>
    %113 = vector.broadcast %c1_i32 : i32 to vector<16x1xi32>
    %114 = vector.broadcast %99 : i32 to vector<16x1xi32>
    %115 = arith.select %112, %113, %114 : vector<16x1xi1>, vector<16x1xi32>
    %116 = arith.cmpi slt, %115, %11 : vector<16x1xi32>
    %c0_44 = arith.constant 0 : index
    %c0_45 = arith.constant 0 : index
    %117 = vector.load %arg4[%c0_44, %c0_45] : memref<256x384xf32, #tpu.memory_space<vmem>>, vector<256x384xf32>
    %cst_46 = arith.constant dense<0.000000e+00> : vector<16x384xf32>
    %118 = tpu.matmul %110, %117, %cst_46 {dimension_numbers = #tpu.dot_dimension_numbers<[1], [0], [0], [1], [0, 0, 1, 1], [], []>} : vector<16x256xf32>, vector<256x384xf32>, vector<16x384xf32> -> vector<16x384xf32>
    %119 = vector.extract_strided_slice %104 {offsets = [0, 0], sizes = [16, 128], strides = [1, 1]} : vector<16x384xf32> to vector<16x128xf32>
    %120 = vector.extract_strided_slice %118 {offsets = [0, 0], sizes = [16, 128], strides = [1, 1]} : vector<16x384xf32> to vector<16x128xf32>
    %121 = arith.addf %119, %120 : vector<16x128xf32>
    %122 = arith.negf %121 : vector<16x128xf32>
    %123 = math.exp %122 : vector<16x128xf32>
    %cst_47 = arith.constant 1.000000e+00 : f32
    %124 = vector.broadcast %cst_47 : f32 to vector<16x128xf32>
    %125 = arith.addf %124, %123 : vector<16x128xf32>
    %126 = arith.divf %124, %125 : vector<16x128xf32>
    %127 = vector.extract_strided_slice %104 {offsets = [0, 128], sizes = [16, 128], strides = [1, 1]} : vector<16x384xf32> to vector<16x128xf32>
    %128 = vector.extract_strided_slice %118 {offsets = [0, 128], sizes = [16, 128], strides = [1, 1]} : vector<16x384xf32> to vector<16x128xf32>
    %129 = arith.addf %127, %128 : vector<16x128xf32>
    %130 = arith.negf %129 : vector<16x128xf32>
    %131 = math.exp %130 : vector<16x128xf32>
    %cst_48 = arith.constant 1.000000e+00 : f32
    %132 = vector.broadcast %cst_48 : f32 to vector<16x128xf32>
    %133 = arith.addf %132, %131 : vector<16x128xf32>
    %134 = arith.divf %132, %133 : vector<16x128xf32>
    %135 = vector.extract_strided_slice %104 {offsets = [0, 256], sizes = [16, 128], strides = [1, 1]} : vector<16x384xf32> to vector<16x128xf32>
    %136 = vector.extract_strided_slice %118 {offsets = [0, 256], sizes = [16, 128], strides = [1, 1]} : vector<16x384xf32> to vector<16x128xf32>
    %137 = arith.addf %136, %25 : vector<16x128xf32>
    %138 = arith.mulf %126, %137 : vector<16x128xf32>
    %139 = arith.addf %135, %138 : vector<16x128xf32>
    %140 = math.tanh %139 : vector<16x128xf32>
    %cst_49 = arith.constant 1.000000e+00 : f32
    %141 = vector.broadcast %cst_49 : f32 to vector<16x128xf32>
    %142 = arith.subf %141, %134 : vector<16x128xf32>
    %143 = arith.mulf %142, %140 : vector<16x128xf32>
    %144 = arith.mulf %134, %105 : vector<16x128xf32>
    %145 = arith.addf %143, %144 : vector<16x128xf32>
    %146 = vector.shape_cast %116 : vector<16x1xi1> to vector<16x1xi1>
    %147 = vector.broadcast %146 : vector<16x1xi1> to vector<16x128xi1>
    %148 = arith.select %147, %145, %105 : vector<16x128xi1>, vector<16x128xf32>
    %c0_50 = arith.constant 0 : index
    %c0_51 = arith.constant 0 : index
    %149 = vector.load %arg9[%c0_50, %c0_51] : memref<16x128xf32, #tpu.memory_space<vmem>>, vector<16x128xf32>
    tpu.vector_store %arg9[%c0_50, %c0_51], %148 {strides = array<i32>} : memref<16x128xf32, #tpu.memory_space<vmem>>, vector<16x128xf32>,
    %cst_52 = arith.constant 0.000000e+00 : f32
    %150 = vector.shape_cast %116 : vector<16x1xi1> to vector<16x1xi1>
    %151 = vector.broadcast %150 : vector<16x1xi1> to vector<16x128xi1>
    %152 = vector.broadcast %cst_52 : f32 to vector<16x128xf32>
    %153 = arith.select %151, %145, %152 : vector<16x128xi1>, vector<16x128xf32>
    %154 = vector.extract_strided_slice %153 {offsets = [0, 0], sizes = [8, 128], strides = [1, 1]} : vector<16x128xf32> to vector<8x128xf32>
    %155 = arith.index_cast %c1_i32 : i32 to index
    %c0_53 = arith.constant 0 : index
    %c0_54 = arith.constant 0 : index
    %156 = vector.load %arg10[%155, %c0_53, %c0_54] : memref<8x8x256xf32, #tpu.memory_space<vmem>>, vector<1x8x128xf32>
    %157 = vector.shape_cast %156 : vector<1x8x128xf32> to vector<8x128xf32>
    %158 = vector.shape_cast %154 : vector<8x128xf32> to vector<1x8x128xf32>
    tpu.vector_store %arg10[%155, %c0_53, %c0_54], %158 {strides = array<i32>} : memref<8x8x256xf32, #tpu.memory_space<vmem>>, vector<1x8x128xf32>,
    %159 = vector.extract_strided_slice %153 {offsets = [8, 0], sizes = [8, 128], strides = [1, 1]} : vector<16x128xf32> to vector<8x128xf32>
    %160 = arith.index_cast %99 : i32 to index
    %c0_55 = arith.constant 0 : index
    %c128_56 = arith.constant 128 : index
    %161 = vector.load %arg10[%160, %c0_55, %c128_56] : memref<8x8x256xf32, #tpu.memory_space<vmem>>, vector<1x8x128xf32>
    %162 = vector.shape_cast %161 : vector<1x8x128xf32> to vector<8x128xf32>
    %163 = vector.shape_cast %159 : vector<8x128xf32> to vector<1x8x128xf32>
    tpu.vector_store %arg10[%160, %c0_55, %c128_56], %163 {strides = array<i32>} : memref<8x8x256xf32, #tpu.memory_space<vmem>>, vector<1x8x128xf32>,
    %c2_i32 = arith.constant 2 : i32
    %c8_i32_57 = arith.constant 8 : i32
    %164 = arith.muli %c2_i32, %c8_i32_57 : i32
    %165 = tpu.assume_multiple %164, 8 : i32
    %166 = arith.index_cast %165 : i32 to index
    %c0_58 = arith.constant 0 : index
    %167 = vector.load %arg8[%166, %c0_58] : memref<64x768xf32, #tpu.memory_space<vmem>>, vector<8x384xf32>
    %c7_i32_59 = arith.constant 7 : i32
    %168 = arith.subi %c7_i32_59, %c2_i32 : i32
    %c8_i32_60 = arith.constant 8 : i32
    %169 = arith.muli %168, %c8_i32_60 : i32
    %170 = tpu.assume_multiple %169, 8 : i32
    %171 = arith.index_cast %170 : i32 to index
    %c384_61 = arith.constant 384 : index
    %172 = vector.load %arg8[%171, %c384_61] : memref<64x768xf32, #tpu.memory_space<vmem>>, vector<8x384xf32>
    %173 = tpu.concatenate %167, %172 in 0 : vector<8x384xf32>, vector<8x384xf32> -> vector<16x384xf32>
    %c0_62 = arith.constant 0 : index
    %c0_63 = arith.constant 0 : index
    %174 = vector.load %arg9[%c0_62, %c0_63] : memref<16x128xf32, #tpu.memory_space<vmem>>, vector<16x128xf32>
    %175 = vector.broadcast %16 : vector<16x1xf32> to vector<16x128xf32>
    %176 = arith.mulf %174, %175 : vector<16x128xf32>
    %177 = vector.broadcast %18 : vector<16x1xf32> to vector<16x128xf32>
    %178 = arith.mulf %174, %177 : vector<16x128xf32>
    %179 = tpu.concatenate %176, %178 in 1 : vector<16x128xf32>, vector<16x128xf32> -> vector<16x256xf32>
    %c8_i32_64 = arith.constant 8 : i32
    %180 = vector.broadcast %c8_i32_64 : i32 to vector<16x1xi32>
    %181 = arith.cmpi slt, %12, %180 : vector<16x1xi32>
    %182 = vector.broadcast %c2_i32 : i32 to vector<16x1xi32>
    %183 = vector.broadcast %168 : i32 to vector<16x1xi32>
    %184 = arith.select %181, %182, %183 : vector<16x1xi1>, vector<16x1xi32>
    %185 = arith.cmpi slt, %184, %11 : vector<16x1xi32>
    %c0_65 = arith.constant 0 : index
    %c0_66 = arith.constant 0 : index
    %186 = vector.load %arg4[%c0_65, %c0_66] : memref<256x384xf32, #tpu.memory_space<vmem>>, vector<256x384xf32>
    %cst_67 = arith.constant dense<0.000000e+00> : vector<16x384xf32>
    %187 = tpu.matmul %179, %186, %cst_67 {dimension_numbers = #tpu.dot_dimension_numbers<[1], [0], [0], [1], [0, 0, 1, 1], [], []>} : vector<16x256xf32>, vector<256x384xf32>, vector<16x384xf32> -> vector<16x384xf32>
    %188 = vector.extract_strided_slice %173 {offsets = [0, 0], sizes = [16, 128], strides = [1, 1]} : vector<16x384xf32> to vector<16x128xf32>
    %189 = vector.extract_strided_slice %187 {offsets = [0, 0], sizes = [16, 128], strides = [1, 1]} : vector<16x384xf32> to vector<16x128xf32>
    %190 = arith.addf %188, %189 : vector<16x128xf32>
    %191 = arith.negf %190 : vector<16x128xf32>
    %192 = math.exp %191 : vector<16x128xf32>
    %cst_68 = arith.constant 1.000000e+00 : f32
    %193 = vector.broadcast %cst_68 : f32 to vector<16x128xf32>
    %194 = arith.addf %193, %192 : vector<16x128xf32>
    %195 = arith.divf %193, %194 : vector<16x128xf32>
    %196 = vector.extract_strided_slice %173 {offsets = [0, 128], sizes = [16, 128], strides = [1, 1]} : vector<16x384xf32> to vector<16x128xf32>
    %197 = vector.extract_strided_slice %187 {offsets = [0, 128], sizes = [16, 128], strides = [1, 1]} : vector<16x384xf32> to vector<16x128xf32>
    %198 = arith.addf %196, %197 : vector<16x128xf32>
    %199 = arith.negf %198 : vector<16x128xf32>
    %200 = math.exp %199 : vector<16x128xf32>
    %cst_69 = arith.constant 1.000000e+00 : f32
    %201 = vector.broadcast %cst_69 : f32 to vector<16x128xf32>
    %202 = arith.addf %201, %200 : vector<16x128xf32>
    %203 = arith.divf %201, %202 : vector<16x128xf32>
    %204 = vector.extract_strided_slice %173 {offsets = [0, 256], sizes = [16, 128], strides = [1, 1]} : vector<16x384xf32> to vector<16x128xf32>
    %205 = vector.extract_strided_slice %187 {offsets = [0, 256], sizes = [16, 128], strides = [1, 1]} : vector<16x384xf32> to vector<16x128xf32>
    %206 = arith.addf %205, %25 : vector<16x128xf32>
    %207 = arith.mulf %195, %206 : vector<16x128xf32>
    %208 = arith.addf %204, %207 : vector<16x128xf32>
    %209 = math.tanh %208 : vector<16x128xf32>
    %cst_70 = arith.constant 1.000000e+00 : f32
    %210 = vector.broadcast %cst_70 : f32 to vector<16x128xf32>
    %211 = arith.subf %210, %203 : vector<16x128xf32>
    %212 = arith.mulf %211, %209 : vector<16x128xf32>
    %213 = arith.mulf %203, %174 : vector<16x128xf32>
    %214 = arith.addf %212, %213 : vector<16x128xf32>
    %215 = vector.shape_cast %185 : vector<16x1xi1> to vector<16x1xi1>
    %216 = vector.broadcast %215 : vector<16x1xi1> to vector<16x128xi1>
    %217 = arith.select %216, %214, %174 : vector<16x128xi1>, vector<16x128xf32>
    %c0_71 = arith.constant 0 : index
    %c0_72 = arith.constant 0 : index
    %218 = vector.load %arg9[%c0_71, %c0_72] : memref<16x128xf32, #tpu.memory_space<vmem>>, vector<16x128xf32>
    tpu.vector_store %arg9[%c0_71, %c0_72], %217 {strides = array<i32>} : memref<16x128xf32, #tpu.memory_space<vmem>>, vector<16x128xf32>,
    %cst_73 = arith.constant 0.000000e+00 : f32
    %219 = vector.shape_cast %185 : vector<16x1xi1> to vector<16x1xi1>
    %220 = vector.broadcast %219 : vector<16x1xi1> to vector<16x128xi1>
    %221 = vector.broadcast %cst_73 : f32 to vector<16x128xf32>
    %222 = arith.select %220, %214, %221 : vector<16x128xi1>, vector<16x128xf32>
    %223 = vector.extract_strided_slice %222 {offsets = [0, 0], sizes = [8, 128], strides = [1, 1]} : vector<16x128xf32> to vector<8x128xf32>
    %224 = arith.index_cast %c2_i32 : i32 to index
    %c0_74 = arith.constant 0 : index
    %c0_75 = arith.constant 0 : index
    %225 = vector.load %arg10[%224, %c0_74, %c0_75] : memref<8x8x256xf32, #tpu.memory_space<vmem>>, vector<1x8x128xf32>
    %226 = vector.shape_cast %225 : vector<1x8x128xf32> to vector<8x128xf32>
    %227 = vector.shape_cast %223 : vector<8x128xf32> to vector<1x8x128xf32>
    tpu.vector_store %arg10[%224, %c0_74, %c0_75], %227 {strides = array<i32>} : memref<8x8x256xf32, #tpu.memory_space<vmem>>, vector<1x8x128xf32>,
    %228 = vector.extract_strided_slice %222 {offsets = [8, 0], sizes = [8, 128], strides = [1, 1]} : vector<16x128xf32> to vector<8x128xf32>
    %229 = arith.index_cast %168 : i32 to index
    %c0_76 = arith.constant 0 : index
    %c128_77 = arith.constant 128 : index
    %230 = vector.load %arg10[%229, %c0_76, %c128_77] : memref<8x8x256xf32, #tpu.memory_space<vmem>>, vector<1x8x128xf32>
    %231 = vector.shape_cast %230 : vector<1x8x128xf32> to vector<8x128xf32>
    %232 = vector.shape_cast %228 : vector<8x128xf32> to vector<1x8x128xf32>
    tpu.vector_store %arg10[%229, %c0_76, %c128_77], %232 {strides = array<i32>} : memref<8x8x256xf32, #tpu.memory_space<vmem>>, vector<1x8x128xf32>,
    %c3_i32 = arith.constant 3 : i32
    %c8_i32_78 = arith.constant 8 : i32
    %233 = arith.muli %c3_i32, %c8_i32_78 : i32
    %234 = tpu.assume_multiple %233, 8 : i32
    %235 = arith.index_cast %234 : i32 to index
    %c0_79 = arith.constant 0 : index
    %236 = vector.load %arg8[%235, %c0_79] : memref<64x768xf32, #tpu.memory_space<vmem>>, vector<8x384xf32>
    %c7_i32_80 = arith.constant 7 : i32
    %237 = arith.subi %c7_i32_80, %c3_i32 : i32
    %c8_i32_81 = arith.constant 8 : i32
    %238 = arith.muli %237, %c8_i32_81 : i32
    %239 = tpu.assume_multiple %238, 8 : i32
    %240 = arith.index_cast %239 : i32 to index
    %c384_82 = arith.constant 384 : index
    %241 = vector.load %arg8[%240, %c384_82] : memref<64x768xf32, #tpu.memory_space<vmem>>, vector<8x384xf32>
    %242 = tpu.concatenate %236, %241 in 0 : vector<8x384xf32>, vector<8x384xf32> -> vector<16x384xf32>
    %c0_83 = arith.constant 0 : index
    %c0_84 = arith.constant 0 : index
    %243 = vector.load %arg9[%c0_83, %c0_84] : memref<16x128xf32, #tpu.memory_space<vmem>>, vector<16x128xf32>
    %244 = vector.broadcast %16 : vector<16x1xf32> to vector<16x128xf32>
    %245 = arith.mulf %243, %244 : vector<16x128xf32>
    %246 = vector.broadcast %18 : vector<16x1xf32> to vector<16x128xf32>
    %247 = arith.mulf %243, %246 : vector<16x128xf32>
    %248 = tpu.concatenate %245, %247 in 1 : vector<16x128xf32>, vector<16x128xf32> -> vector<16x256xf32>
    %c8_i32_85 = arith.constant 8 : i32
    %249 = vector.broadcast %c8_i32_85 : i32 to vector<16x1xi32>
    %250 = arith.cmpi slt, %12, %249 : vector<16x1xi32>
    %251 = vector.broadcast %c3_i32 : i32 to vector<16x1xi32>
    %252 = vector.broadcast %237 : i32 to vector<16x1xi32>
    %253 = arith.select %250, %251, %252 : vector<16x1xi1>, vector<16x1xi32>
    %254 = arith.cmpi slt, %253, %11 : vector<16x1xi32>
    %c0_86 = arith.constant 0 : index
    %c0_87 = arith.constant 0 : index
    %255 = vector.load %arg4[%c0_86, %c0_87] : memref<256x384xf32, #tpu.memory_space<vmem>>, vector<256x384xf32>
    %cst_88 = arith.constant dense<0.000000e+00> : vector<16x384xf32>
    %256 = tpu.matmul %248, %255, %cst_88 {dimension_numbers = #tpu.dot_dimension_numbers<[1], [0], [0], [1], [0, 0, 1, 1], [], []>} : vector<16x256xf32>, vector<256x384xf32>, vector<16x384xf32> -> vector<16x384xf32>
    %257 = vector.extract_strided_slice %242 {offsets = [0, 0], sizes = [16, 128], strides = [1, 1]} : vector<16x384xf32> to vector<16x128xf32>
    %258 = vector.extract_strided_slice %256 {offsets = [0, 0], sizes = [16, 128], strides = [1, 1]} : vector<16x384xf32> to vector<16x128xf32>
    %259 = arith.addf %257, %258 : vector<16x128xf32>
    %260 = arith.negf %259 : vector<16x128xf32>
    %261 = math.exp %260 : vector<16x128xf32>
    %cst_89 = arith.constant 1.000000e+00 : f32
    %262 = vector.broadcast %cst_89 : f32 to vector<16x128xf32>
    %263 = arith.addf %262, %261 : vector<16x128xf32>
    %264 = arith.divf %262, %263 : vector<16x128xf32>
    %265 = vector.extract_strided_slice %242 {offsets = [0, 128], sizes = [16, 128], strides = [1, 1]} : vector<16x384xf32> to vector<16x128xf32>
    %266 = vector.extract_strided_slice %256 {offsets = [0, 128], sizes = [16, 128], strides = [1, 1]} : vector<16x384xf32> to vector<16x128xf32>
    %267 = arith.addf %265, %266 : vector<16x128xf32>
    %268 = arith.negf %267 : vector<16x128xf32>
    %269 = math.exp %268 : vector<16x128xf32>
    %cst_90 = arith.constant 1.000000e+00 : f32
    %270 = vector.broadcast %cst_90 : f32 to vector<16x128xf32>
    %271 = arith.addf %270, %269 : vector<16x128xf32>
    %272 = arith.divf %270, %271 : vector<16x128xf32>
    %273 = vector.extract_strided_slice %242 {offsets = [0, 256], sizes = [16, 128], strides = [1, 1]} : vector<16x384xf32> to vector<16x128xf32>
    %274 = vector.extract_strided_slice %256 {offsets = [0, 256], sizes = [16, 128], strides = [1, 1]} : vector<16x384xf32> to vector<16x128xf32>
    %275 = arith.addf %274, %25 : vector<16x128xf32>
    %276 = arith.mulf %264, %275 : vector<16x128xf32>
    %277 = arith.addf %273, %276 : vector<16x128xf32>
    %278 = math.tanh %277 : vector<16x128xf32>
    %cst_91 = arith.constant 1.000000e+00 : f32
    %279 = vector.broadcast %cst_91 : f32 to vector<16x128xf32>
    %280 = arith.subf %279, %272 : vector<16x128xf32>
    %281 = arith.mulf %280, %278 : vector<16x128xf32>
    %282 = arith.mulf %272, %243 : vector<16x128xf32>
    %283 = arith.addf %281, %282 : vector<16x128xf32>
    %284 = vector.shape_cast %254 : vector<16x1xi1> to vector<16x1xi1>
    %285 = vector.broadcast %284 : vector<16x1xi1> to vector<16x128xi1>
    %286 = arith.select %285, %283, %243 : vector<16x128xi1>, vector<16x128xf32>
    %c0_92 = arith.constant 0 : index
    %c0_93 = arith.constant 0 : index
    %287 = vector.load %arg9[%c0_92, %c0_93] : memref<16x128xf32, #tpu.memory_space<vmem>>, vector<16x128xf32>
    tpu.vector_store %arg9[%c0_92, %c0_93], %286 {strides = array<i32>} : memref<16x128xf32, #tpu.memory_space<vmem>>, vector<16x128xf32>,
    %cst_94 = arith.constant 0.000000e+00 : f32
    %288 = vector.shape_cast %254 : vector<16x1xi1> to vector<16x1xi1>
    %289 = vector.broadcast %288 : vector<16x1xi1> to vector<16x128xi1>
    %290 = vector.broadcast %cst_94 : f32 to vector<16x128xf32>
    %291 = arith.select %289, %283, %290 : vector<16x128xi1>, vector<16x128xf32>
    %292 = vector.extract_strided_slice %291 {offsets = [0, 0], sizes = [8, 128], strides = [1, 1]} : vector<16x128xf32> to vector<8x128xf32>
    %293 = arith.index_cast %c3_i32 : i32 to index
    %c0_95 = arith.constant 0 : index
    %c0_96 = arith.constant 0 : index
    %294 = vector.load %arg10[%293, %c0_95, %c0_96] : memref<8x8x256xf32, #tpu.memory_space<vmem>>, vector<1x8x128xf32>
    %295 = vector.shape_cast %294 : vector<1x8x128xf32> to vector<8x128xf32>
    %296 = vector.shape_cast %292 : vector<8x128xf32> to vector<1x8x128xf32>
    tpu.vector_store %arg10[%293, %c0_95, %c0_96], %296 {strides = array<i32>} : memref<8x8x256xf32, #tpu.memory_space<vmem>>, vector<1x8x128xf32>,
    %297 = vector.extract_strided_slice %291 {offsets = [8, 0], sizes = [8, 128], strides = [1, 1]} : vector<16x128xf32> to vector<8x128xf32>
    %298 = arith.index_cast %237 : i32 to index
    %c0_97 = arith.constant 0 : index
    %c128_98 = arith.constant 128 : index
    %299 = vector.load %arg10[%298, %c0_97, %c128_98] : memref<8x8x256xf32, #tpu.memory_space<vmem>>, vector<1x8x128xf32>
    %300 = vector.shape_cast %299 : vector<1x8x128xf32> to vector<8x128xf32>
    %301 = vector.shape_cast %297 : vector<8x128xf32> to vector<1x8x128xf32>
    tpu.vector_store %arg10[%298, %c0_97, %c128_98], %301 {strides = array<i32>} : memref<8x8x256xf32, #tpu.memory_space<vmem>>, vector<1x8x128xf32>,
    %c4_i32 = arith.constant 4 : i32
    %c8_i32_99 = arith.constant 8 : i32
    %302 = arith.muli %c4_i32, %c8_i32_99 : i32
    %303 = tpu.assume_multiple %302, 8 : i32
    %304 = arith.index_cast %303 : i32 to index
    %c0_100 = arith.constant 0 : index
    %305 = vector.load %arg8[%304, %c0_100] : memref<64x768xf32, #tpu.memory_space<vmem>>, vector<8x384xf32>
    %c7_i32_101 = arith.constant 7 : i32
    %306 = arith.subi %c7_i32_101, %c4_i32 : i32
    %c8_i32_102 = arith.constant 8 : i32
    %307 = arith.muli %306, %c8_i32_102 : i32
    %308 = tpu.assume_multiple %307, 8 : i32
    %309 = arith.index_cast %308 : i32 to index
    %c384_103 = arith.constant 384 : index
    %310 = vector.load %arg8[%309, %c384_103] : memref<64x768xf32, #tpu.memory_space<vmem>>, vector<8x384xf32>
    %311 = tpu.concatenate %305, %310 in 0 : vector<8x384xf32>, vector<8x384xf32> -> vector<16x384xf32>
    %c0_104 = arith.constant 0 : index
    %c0_105 = arith.constant 0 : index
    %312 = vector.load %arg9[%c0_104, %c0_105] : memref<16x128xf32, #tpu.memory_space<vmem>>, vector<16x128xf32>
    %313 = vector.broadcast %16 : vector<16x1xf32> to vector<16x128xf32>
    %314 = arith.mulf %312, %313 : vector<16x128xf32>
    %315 = vector.broadcast %18 : vector<16x1xf32> to vector<16x128xf32>
    %316 = arith.mulf %312, %315 : vector<16x128xf32>
    %317 = tpu.concatenate %314, %316 in 1 : vector<16x128xf32>, vector<16x128xf32> -> vector<16x256xf32>
    %c8_i32_106 = arith.constant 8 : i32
    %318 = vector.broadcast %c8_i32_106 : i32 to vector<16x1xi32>
    %319 = arith.cmpi slt, %12, %318 : vector<16x1xi32>
    %320 = vector.broadcast %c4_i32 : i32 to vector<16x1xi32>
    %321 = vector.broadcast %306 : i32 to vector<16x1xi32>
    %322 = arith.select %319, %320, %321 : vector<16x1xi1>, vector<16x1xi32>
    %323 = arith.cmpi slt, %322, %11 : vector<16x1xi32>
    %c0_107 = arith.constant 0 : index
    %c0_108 = arith.constant 0 : index
    %324 = vector.load %arg4[%c0_107, %c0_108] : memref<256x384xf32, #tpu.memory_space<vmem>>, vector<256x384xf32>
    %cst_109 = arith.constant dense<0.000000e+00> : vector<16x384xf32>
    %325 = tpu.matmul %317, %324, %cst_109 {dimension_numbers = #tpu.dot_dimension_numbers<[1], [0], [0], [1], [0, 0, 1, 1], [], []>} : vector<16x256xf32>, vector<256x384xf32>, vector<16x384xf32> -> vector<16x384xf32>
    %326 = vector.extract_strided_slice %311 {offsets = [0, 0], sizes = [16, 128], strides = [1, 1]} : vector<16x384xf32> to vector<16x128xf32>
    %327 = vector.extract_strided_slice %325 {offsets = [0, 0], sizes = [16, 128], strides = [1, 1]} : vector<16x384xf32> to vector<16x128xf32>
    %328 = arith.addf %326, %327 : vector<16x128xf32>
    %329 = arith.negf %328 : vector<16x128xf32>
    %330 = math.exp %329 : vector<16x128xf32>
    %cst_110 = arith.constant 1.000000e+00 : f32
    %331 = vector.broadcast %cst_110 : f32 to vector<16x128xf32>
    %332 = arith.addf %331, %330 : vector<16x128xf32>
    %333 = arith.divf %331, %332 : vector<16x128xf32>
    %334 = vector.extract_strided_slice %311 {offsets = [0, 128], sizes = [16, 128], strides = [1, 1]} : vector<16x384xf32> to vector<16x128xf32>
    %335 = vector.extract_strided_slice %325 {offsets = [0, 128], sizes = [16, 128], strides = [1, 1]} : vector<16x384xf32> to vector<16x128xf32>
    %336 = arith.addf %334, %335 : vector<16x128xf32>
    %337 = arith.negf %336 : vector<16x128xf32>
    %338 = math.exp %337 : vector<16x128xf32>
    %cst_111 = arith.constant 1.000000e+00 : f32
    %339 = vector.broadcast %cst_111 : f32 to vector<16x128xf32>
    %340 = arith.addf %339, %338 : vector<16x128xf32>
    %341 = arith.divf %339, %340 : vector<16x128xf32>
    %342 = vector.extract_strided_slice %311 {offsets = [0, 256], sizes = [16, 128], strides = [1, 1]} : vector<16x384xf32> to vector<16x128xf32>
    %343 = vector.extract_strided_slice %325 {offsets = [0, 256], sizes = [16, 128], strides = [1, 1]} : vector<16x384xf32> to vector<16x128xf32>
    %344 = arith.addf %343, %25 : vector<16x128xf32>
    %345 = arith.mulf %333, %344 : vector<16x128xf32>
    %346 = arith.addf %342, %345 : vector<16x128xf32>
    %347 = math.tanh %346 : vector<16x128xf32>
    %cst_112 = arith.constant 1.000000e+00 : f32
    %348 = vector.broadcast %cst_112 : f32 to vector<16x128xf32>
    %349 = arith.subf %348, %341 : vector<16x128xf32>
    %350 = arith.mulf %349, %347 : vector<16x128xf32>
    %351 = arith.mulf %341, %312 : vector<16x128xf32>
    %352 = arith.addf %350, %351 : vector<16x128xf32>
    %353 = vector.shape_cast %323 : vector<16x1xi1> to vector<16x1xi1>
    %354 = vector.broadcast %353 : vector<16x1xi1> to vector<16x128xi1>
    %355 = arith.select %354, %352, %312 : vector<16x128xi1>, vector<16x128xf32>
    %c0_113 = arith.constant 0 : index
    %c0_114 = arith.constant 0 : index
    %356 = vector.load %arg9[%c0_113, %c0_114] : memref<16x128xf32, #tpu.memory_space<vmem>>, vector<16x128xf32>
    tpu.vector_store %arg9[%c0_113, %c0_114], %355 {strides = array<i32>} : memref<16x128xf32, #tpu.memory_space<vmem>>, vector<16x128xf32>,
    %cst_115 = arith.constant 0.000000e+00 : f32
    %357 = vector.shape_cast %323 : vector<16x1xi1> to vector<16x1xi1>
    %358 = vector.broadcast %357 : vector<16x1xi1> to vector<16x128xi1>
    %359 = vector.broadcast %cst_115 : f32 to vector<16x128xf32>
    %360 = arith.select %358, %352, %359 : vector<16x128xi1>, vector<16x128xf32>
    %361 = vector.extract_strided_slice %360 {offsets = [0, 0], sizes = [8, 128], strides = [1, 1]} : vector<16x128xf32> to vector<8x128xf32>
    %362 = arith.index_cast %c4_i32 : i32 to index
    %c0_116 = arith.constant 0 : index
    %c0_117 = arith.constant 0 : index
    %363 = vector.load %arg10[%362, %c0_116, %c0_117] : memref<8x8x256xf32, #tpu.memory_space<vmem>>, vector<1x8x128xf32>
    %364 = vector.shape_cast %363 : vector<1x8x128xf32> to vector<8x128xf32>
    %365 = vector.shape_cast %361 : vector<8x128xf32> to vector<1x8x128xf32>
    tpu.vector_store %arg10[%362, %c0_116, %c0_117], %365 {strides = array<i32>} : memref<8x8x256xf32, #tpu.memory_space<vmem>>, vector<1x8x128xf32>,
    %366 = vector.extract_strided_slice %360 {offsets = [8, 0], sizes = [8, 128], strides = [1, 1]} : vector<16x128xf32> to vector<8x128xf32>
    %367 = arith.index_cast %306 : i32 to index
    %c0_118 = arith.constant 0 : index
    %c128_119 = arith.constant 128 : index
    %368 = vector.load %arg10[%367, %c0_118, %c128_119] : memref<8x8x256xf32, #tpu.memory_space<vmem>>, vector<1x8x128xf32>
    %369 = vector.shape_cast %368 : vector<1x8x128xf32> to vector<8x128xf32>
    %370 = vector.shape_cast %366 : vector<8x128xf32> to vector<1x8x128xf32>
    tpu.vector_store %arg10[%367, %c0_118, %c128_119], %370 {strides = array<i32>} : memref<8x8x256xf32, #tpu.memory_space<vmem>>, vector<1x8x128xf32>,
    %c5_i32 = arith.constant 5 : i32
    %c8_i32_120 = arith.constant 8 : i32
    %371 = arith.muli %c5_i32, %c8_i32_120 : i32
    %372 = tpu.assume_multiple %371, 8 : i32
    %373 = arith.index_cast %372 : i32 to index
    %c0_121 = arith.constant 0 : index
    %374 = vector.load %arg8[%373, %c0_121] : memref<64x768xf32, #tpu.memory_space<vmem>>, vector<8x384xf32>
    %c7_i32_122 = arith.constant 7 : i32
    %375 = arith.subi %c7_i32_122, %c5_i32 : i32
    %c8_i32_123 = arith.constant 8 : i32
    %376 = arith.muli %375, %c8_i32_123 : i32
    %377 = tpu.assume_multiple %376, 8 : i32
    %378 = arith.index_cast %377 : i32 to index
    %c384_124 = arith.constant 384 : index
    %379 = vector.load %arg8[%378, %c384_124] : memref<64x768xf32, #tpu.memory_space<vmem>>, vector<8x384xf32>
    %380 = tpu.concatenate %374, %379 in 0 : vector<8x384xf32>, vector<8x384xf32> -> vector<16x384xf32>
    %c0_125 = arith.constant 0 : index
    %c0_126 = arith.constant 0 : index
    %381 = vector.load %arg9[%c0_125, %c0_126] : memref<16x128xf32, #tpu.memory_space<vmem>>, vector<16x128xf32>
    %382 = vector.broadcast %16 : vector<16x1xf32> to vector<16x128xf32>
    %383 = arith.mulf %381, %382 : vector<16x128xf32>
    %384 = vector.broadcast %18 : vector<16x1xf32> to vector<16x128xf32>
    %385 = arith.mulf %381, %384 : vector<16x128xf32>
    %386 = tpu.concatenate %383, %385 in 1 : vector<16x128xf32>, vector<16x128xf32> -> vector<16x256xf32>
    %c8_i32_127 = arith.constant 8 : i32
    %387 = vector.broadcast %c8_i32_127 : i32 to vector<16x1xi32>
    %388 = arith.cmpi slt, %12, %387 : vector<16x1xi32>
    %389 = vector.broadcast %c5_i32 : i32 to vector<16x1xi32>
    %390 = vector.broadcast %375 : i32 to vector<16x1xi32>
    %391 = arith.select %388, %389, %390 : vector<16x1xi1>, vector<16x1xi32>
    %392 = arith.cmpi slt, %391, %11 : vector<16x1xi32>
    %c0_128 = arith.constant 0 : index
    %c0_129 = arith.constant 0 : index
    %393 = vector.load %arg4[%c0_128, %c0_129] : memref<256x384xf32, #tpu.memory_space<vmem>>, vector<256x384xf32>
    %cst_130 = arith.constant dense<0.000000e+00> : vector<16x384xf32>
    %394 = tpu.matmul %386, %393, %cst_130 {dimension_numbers = #tpu.dot_dimension_numbers<[1], [0], [0], [1], [0, 0, 1, 1], [], []>} : vector<16x256xf32>, vector<256x384xf32>, vector<16x384xf32> -> vector<16x384xf32>
    %395 = vector.extract_strided_slice %380 {offsets = [0, 0], sizes = [16, 128], strides = [1, 1]} : vector<16x384xf32> to vector<16x128xf32>
    %396 = vector.extract_strided_slice %394 {offsets = [0, 0], sizes = [16, 128], strides = [1, 1]} : vector<16x384xf32> to vector<16x128xf32>
    %397 = arith.addf %395, %396 : vector<16x128xf32>
    %398 = arith.negf %397 : vector<16x128xf32>
    %399 = math.exp %398 : vector<16x128xf32>
    %cst_131 = arith.constant 1.000000e+00 : f32
    %400 = vector.broadcast %cst_131 : f32 to vector<16x128xf32>
    %401 = arith.addf %400, %399 : vector<16x128xf32>
    %402 = arith.divf %400, %401 : vector<16x128xf32>
    %403 = vector.extract_strided_slice %380 {offsets = [0, 128], sizes = [16, 128], strides = [1, 1]} : vector<16x384xf32> to vector<16x128xf32>
    %404 = vector.extract_strided_slice %394 {offsets = [0, 128], sizes = [16, 128], strides = [1, 1]} : vector<16x384xf32> to vector<16x128xf32>
    %405 = arith.addf %403, %404 : vector<16x128xf32>
    %406 = arith.negf %405 : vector<16x128xf32>
    %407 = math.exp %406 : vector<16x128xf32>
    %cst_132 = arith.constant 1.000000e+00 : f32
    %408 = vector.broadcast %cst_132 : f32 to vector<16x128xf32>
    %409 = arith.addf %408, %407 : vector<16x128xf32>
    %410 = arith.divf %408, %409 : vector<16x128xf32>
    %411 = vector.extract_strided_slice %380 {offsets = [0, 256], sizes = [16, 128], strides = [1, 1]} : vector<16x384xf32> to vector<16x128xf32>
    %412 = vector.extract_strided_slice %394 {offsets = [0, 256], sizes = [16, 128], strides = [1, 1]} : vector<16x384xf32> to vector<16x128xf32>
    %413 = arith.addf %412, %25 : vector<16x128xf32>
    %414 = arith.mulf %402, %413 : vector<16x128xf32>
    %415 = arith.addf %411, %414 : vector<16x128xf32>
    %416 = math.tanh %415 : vector<16x128xf32>
    %cst_133 = arith.constant 1.000000e+00 : f32
    %417 = vector.broadcast %cst_133 : f32 to vector<16x128xf32>
    %418 = arith.subf %417, %410 : vector<16x128xf32>
    %419 = arith.mulf %418, %416 : vector<16x128xf32>
    %420 = arith.mulf %410, %381 : vector<16x128xf32>
    %421 = arith.addf %419, %420 : vector<16x128xf32>
    %422 = vector.shape_cast %392 : vector<16x1xi1> to vector<16x1xi1>
    %423 = vector.broadcast %422 : vector<16x1xi1> to vector<16x128xi1>
    %424 = arith.select %423, %421, %381 : vector<16x128xi1>, vector<16x128xf32>
    %c0_134 = arith.constant 0 : index
    %c0_135 = arith.constant 0 : index
    %425 = vector.load %arg9[%c0_134, %c0_135] : memref<16x128xf32, #tpu.memory_space<vmem>>, vector<16x128xf32>
    tpu.vector_store %arg9[%c0_134, %c0_135], %424 {strides = array<i32>} : memref<16x128xf32, #tpu.memory_space<vmem>>, vector<16x128xf32>,
    %cst_136 = arith.constant 0.000000e+00 : f32
    %426 = vector.shape_cast %392 : vector<16x1xi1> to vector<16x1xi1>
    %427 = vector.broadcast %426 : vector<16x1xi1> to vector<16x128xi1>
    %428 = vector.broadcast %cst_136 : f32 to vector<16x128xf32>
    %429 = arith.select %427, %421, %428 : vector<16x128xi1>, vector<16x128xf32>
    %430 = vector.extract_strided_slice %429 {offsets = [0, 0], sizes = [8, 128], strides = [1, 1]} : vector<16x128xf32> to vector<8x128xf32>
    %431 = arith.index_cast %c5_i32 : i32 to index
    %c0_137 = arith.constant 0 : index
    %c0_138 = arith.constant 0 : index
    %432 = vector.load %arg10[%431, %c0_137, %c0_138] : memref<8x8x256xf32, #tpu.memory_space<vmem>>, vector<1x8x128xf32>
    %433 = vector.shape_cast %432 : vector<1x8x128xf32> to vector<8x128xf32>
    %434 = vector.shape_cast %430 : vector<8x128xf32> to vector<1x8x128xf32>
    tpu.vector_store %arg10[%431, %c0_137, %c0_138], %434 {strides = array<i32>} : memref<8x8x256xf32, #tpu.memory_space<vmem>>, vector<1x8x128xf32>,
    %435 = vector.extract_strided_slice %429 {offsets = [8, 0], sizes = [8, 128], strides = [1, 1]} : vector<16x128xf32> to vector<8x128xf32>
    %436 = arith.index_cast %375 : i32 to index
    %c0_139 = arith.constant 0 : index
    %c128_140 = arith.constant 128 : index
    %437 = vector.load %arg10[%436, %c0_139, %c128_140] : memref<8x8x256xf32, #tpu.memory_space<vmem>>, vector<1x8x128xf32>
    %438 = vector.shape_cast %437 : vector<1x8x128xf32> to vector<8x128xf32>
    %439 = vector.shape_cast %435 : vector<8x128xf32> to vector<1x8x128xf32>
    tpu.vector_store %arg10[%436, %c0_139, %c128_140], %439 {strides = array<i32>} : memref<8x8x256xf32, #tpu.memory_space<vmem>>, vector<1x8x128xf32>,
    %c6_i32 = arith.constant 6 : i32
    %c8_i32_141 = arith.constant 8 : i32
    %440 = arith.muli %c6_i32, %c8_i32_141 : i32
    %441 = tpu.assume_multiple %440, 8 : i32
    %442 = arith.index_cast %441 : i32 to index
    %c0_142 = arith.constant 0 : index
    %443 = vector.load %arg8[%442, %c0_142] : memref<64x768xf32, #tpu.memory_space<vmem>>, vector<8x384xf32>
    %c7_i32_143 = arith.constant 7 : i32
    %444 = arith.subi %c7_i32_143, %c6_i32 : i32
    %c8_i32_144 = arith.constant 8 : i32
    %445 = arith.muli %444, %c8_i32_144 : i32
    %446 = tpu.assume_multiple %445, 8 : i32
    %447 = arith.index_cast %446 : i32 to index
    %c384_145 = arith.constant 384 : index
    %448 = vector.load %arg8[%447, %c384_145] : memref<64x768xf32, #tpu.memory_space<vmem>>, vector<8x384xf32>
    %449 = tpu.concatenate %443, %448 in 0 : vector<8x384xf32>, vector<8x384xf32> -> vector<16x384xf32>
    %c0_146 = arith.constant 0 : index
    %c0_147 = arith.constant 0 : index
    %450 = vector.load %arg9[%c0_146, %c0_147] : memref<16x128xf32, #tpu.memory_space<vmem>>, vector<16x128xf32>
    %451 = vector.broadcast %16 : vector<16x1xf32> to vector<16x128xf32>
    %452 = arith.mulf %450, %451 : vector<16x128xf32>
    %453 = vector.broadcast %18 : vector<16x1xf32> to vector<16x128xf32>
    %454 = arith.mulf %450, %453 : vector<16x128xf32>
    %455 = tpu.concatenate %452, %454 in 1 : vector<16x128xf32>, vector<16x128xf32> -> vector<16x256xf32>
    %c8_i32_148 = arith.constant 8 : i32
    %456 = vector.broadcast %c8_i32_148 : i32 to vector<16x1xi32>
    %457 = arith.cmpi slt, %12, %456 : vector<16x1xi32>
    %458 = vector.broadcast %c6_i32 : i32 to vector<16x1xi32>
    %459 = vector.broadcast %444 : i32 to vector<16x1xi32>
    %460 = arith.select %457, %458, %459 : vector<16x1xi1>, vector<16x1xi32>
    %461 = arith.cmpi slt, %460, %11 : vector<16x1xi32>
    %c0_149 = arith.constant 0 : index
    %c0_150 = arith.constant 0 : index
    %462 = vector.load %arg4[%c0_149, %c0_150] : memref<256x384xf32, #tpu.memory_space<vmem>>, vector<256x384xf32>
    %cst_151 = arith.constant dense<0.000000e+00> : vector<16x384xf32>
    %463 = tpu.matmul %455, %462, %cst_151 {dimension_numbers = #tpu.dot_dimension_numbers<[1], [0], [0], [1], [0, 0, 1, 1], [], []>} : vector<16x256xf32>, vector<256x384xf32>, vector<16x384xf32> -> vector<16x384xf32>
    %464 = vector.extract_strided_slice %449 {offsets = [0, 0], sizes = [16, 128], strides = [1, 1]} : vector<16x384xf32> to vector<16x128xf32>
    %465 = vector.extract_strided_slice %463 {offsets = [0, 0], sizes = [16, 128], strides = [1, 1]} : vector<16x384xf32> to vector<16x128xf32>
    %466 = arith.addf %464, %465 : vector<16x128xf32>
    %467 = arith.negf %466 : vector<16x128xf32>
    %468 = math.exp %467 : vector<16x128xf32>
    %cst_152 = arith.constant 1.000000e+00 : f32
    %469 = vector.broadcast %cst_152 : f32 to vector<16x128xf32>
    %470 = arith.addf %469, %468 : vector<16x128xf32>
    %471 = arith.divf %469, %470 : vector<16x128xf32>
    %472 = vector.extract_strided_slice %449 {offsets = [0, 128], sizes = [16, 128], strides = [1, 1]} : vector<16x384xf32> to vector<16x128xf32>
    %473 = vector.extract_strided_slice %463 {offsets = [0, 128], sizes = [16, 128], strides = [1, 1]} : vector<16x384xf32> to vector<16x128xf32>
    %474 = arith.addf %472, %473 : vector<16x128xf32>
    %475 = arith.negf %474 : vector<16x128xf32>
    %476 = math.exp %475 : vector<16x128xf32>
    %cst_153 = arith.constant 1.000000e+00 : f32
    %477 = vector.broadcast %cst_153 : f32 to vector<16x128xf32>
    %478 = arith.addf %477, %476 : vector<16x128xf32>
    %479 = arith.divf %477, %478 : vector<16x128xf32>
    %480 = vector.extract_strided_slice %449 {offsets = [0, 256], sizes = [16, 128], strides = [1, 1]} : vector<16x384xf32> to vector<16x128xf32>
    %481 = vector.extract_strided_slice %463 {offsets = [0, 256], sizes = [16, 128], strides = [1, 1]} : vector<16x384xf32> to vector<16x128xf32>
    %482 = arith.addf %481, %25 : vector<16x128xf32>
    %483 = arith.mulf %471, %482 : vector<16x128xf32>
    %484 = arith.addf %480, %483 : vector<16x128xf32>
    %485 = math.tanh %484 : vector<16x128xf32>
    %cst_154 = arith.constant 1.000000e+00 : f32
    %486 = vector.broadcast %cst_154 : f32 to vector<16x128xf32>
    %487 = arith.subf %486, %479 : vector<16x128xf32>
    %488 = arith.mulf %487, %485 : vector<16x128xf32>
    %489 = arith.mulf %479, %450 : vector<16x128xf32>
    %490 = arith.addf %488, %489 : vector<16x128xf32>
    %491 = vector.shape_cast %461 : vector<16x1xi1> to vector<16x1xi1>
    %492 = vector.broadcast %491 : vector<16x1xi1> to vector<16x128xi1>
    %493 = arith.select %492, %490, %450 : vector<16x128xi1>, vector<16x128xf32>
    %c0_155 = arith.constant 0 : index
    %c0_156 = arith.constant 0 : index
    %494 = vector.load %arg9[%c0_155, %c0_156] : memref<16x128xf32, #tpu.memory_space<vmem>>, vector<16x128xf32>
    tpu.vector_store %arg9[%c0_155, %c0_156], %493 {strides = array<i32>} : memref<16x128xf32, #tpu.memory_space<vmem>>, vector<16x128xf32>,
    %cst_157 = arith.constant 0.000000e+00 : f32
    %495 = vector.shape_cast %461 : vector<16x1xi1> to vector<16x1xi1>
    %496 = vector.broadcast %495 : vector<16x1xi1> to vector<16x128xi1>
    %497 = vector.broadcast %cst_157 : f32 to vector<16x128xf32>
    %498 = arith.select %496, %490, %497 : vector<16x128xi1>, vector<16x128xf32>
    %499 = vector.extract_strided_slice %498 {offsets = [0, 0], sizes = [8, 128], strides = [1, 1]} : vector<16x128xf32> to vector<8x128xf32>
    %500 = arith.index_cast %c6_i32 : i32 to index
    %c0_158 = arith.constant 0 : index
    %c0_159 = arith.constant 0 : index
    %501 = vector.load %arg10[%500, %c0_158, %c0_159] : memref<8x8x256xf32, #tpu.memory_space<vmem>>, vector<1x8x128xf32>
    %502 = vector.shape_cast %501 : vector<1x8x128xf32> to vector<8x128xf32>
    %503 = vector.shape_cast %499 : vector<8x128xf32> to vector<1x8x128xf32>
    tpu.vector_store %arg10[%500, %c0_158, %c0_159], %503 {strides = array<i32>} : memref<8x8x256xf32, #tpu.memory_space<vmem>>, vector<1x8x128xf32>,
    %504 = vector.extract_strided_slice %498 {offsets = [8, 0], sizes = [8, 128], strides = [1, 1]} : vector<16x128xf32> to vector<8x128xf32>
    %505 = arith.index_cast %444 : i32 to index
    %c0_160 = arith.constant 0 : index
    %c128_161 = arith.constant 128 : index
    %506 = vector.load %arg10[%505, %c0_160, %c128_161] : memref<8x8x256xf32, #tpu.memory_space<vmem>>, vector<1x8x128xf32>
    %507 = vector.shape_cast %506 : vector<1x8x128xf32> to vector<8x128xf32>
    %508 = vector.shape_cast %504 : vector<8x128xf32> to vector<1x8x128xf32>
    tpu.vector_store %arg10[%505, %c0_160, %c128_161], %508 {strides = array<i32>} : memref<8x8x256xf32, #tpu.memory_space<vmem>>, vector<1x8x128xf32>,
    %c7_i32_162 = arith.constant 7 : i32
    %c8_i32_163 = arith.constant 8 : i32
    %509 = arith.muli %c7_i32_162, %c8_i32_163 : i32
    %510 = tpu.assume_multiple %509, 8 : i32
    %511 = arith.index_cast %510 : i32 to index
    %c0_164 = arith.constant 0 : index
    %512 = vector.load %arg8[%511, %c0_164] : memref<64x768xf32, #tpu.memory_space<vmem>>, vector<8x384xf32>
    %c7_i32_165 = arith.constant 7 : i32
    %513 = arith.subi %c7_i32_165, %c7_i32_162 : i32
    %c8_i32_166 = arith.constant 8 : i32
    %514 = arith.muli %513, %c8_i32_166 : i32
    %515 = tpu.assume_multiple %514, 8 : i32
    %516 = arith.index_cast %515 : i32 to index
    %c384_167 = arith.constant 384 : index
    %517 = vector.load %arg8[%516, %c384_167] : memref<64x768xf32, #tpu.memory_space<vmem>>, vector<8x384xf32>
    %518 = tpu.concatenate %512, %517 in 0 : vector<8x384xf32>, vector<8x384xf32> -> vector<16x384xf32>
    %c0_168 = arith.constant 0 : index
    %c0_169 = arith.constant 0 : index
    %519 = vector.load %arg9[%c0_168, %c0_169] : memref<16x128xf32, #tpu.memory_space<vmem>>, vector<16x128xf32>
    %520 = vector.broadcast %16 : vector<16x1xf32> to vector<16x128xf32>
    %521 = arith.mulf %519, %520 : vector<16x128xf32>
    %522 = vector.broadcast %18 : vector<16x1xf32> to vector<16x128xf32>
    %523 = arith.mulf %519, %522 : vector<16x128xf32>
    %524 = tpu.concatenate %521, %523 in 1 : vector<16x128xf32>, vector<16x128xf32> -> vector<16x256xf32>
    %c8_i32_170 = arith.constant 8 : i32
    %525 = vector.broadcast %c8_i32_170 : i32 to vector<16x1xi32>
    %526 = arith.cmpi slt, %12, %525 : vector<16x1xi32>
    %527 = vector.broadcast %c7_i32_162 : i32 to vector<16x1xi32>
    %528 = vector.broadcast %513 : i32 to vector<16x1xi32>
    %529 = arith.select %526, %527, %528 : vector<16x1xi1>, vector<16x1xi32>
    %530 = arith.cmpi slt, %529, %11 : vector<16x1xi32>
    %c0_171 = arith.constant 0 : index
    %c0_172 = arith.constant 0 : index
    %531 = vector.load %arg4[%c0_171, %c0_172] : memref<256x384xf32, #tpu.memory_space<vmem>>, vector<256x384xf32>
    %cst_173 = arith.constant dense<0.000000e+00> : vector<16x384xf32>
    %532 = tpu.matmul %524, %531, %cst_173 {dimension_numbers = #tpu.dot_dimension_numbers<[1], [0], [0], [1], [0, 0, 1, 1], [], []>} : vector<16x256xf32>, vector<256x384xf32>, vector<16x384xf32> -> vector<16x384xf32>
    %533 = vector.extract_strided_slice %518 {offsets = [0, 0], sizes = [16, 128], strides = [1, 1]} : vector<16x384xf32> to vector<16x128xf32>
    %534 = vector.extract_strided_slice %532 {offsets = [0, 0], sizes = [16, 128], strides = [1, 1]} : vector<16x384xf32> to vector<16x128xf32>
    %535 = arith.addf %533, %534 : vector<16x128xf32>
    %536 = arith.negf %535 : vector<16x128xf32>
    %537 = math.exp %536 : vector<16x128xf32>
    %cst_174 = arith.constant 1.000000e+00 : f32
    %538 = vector.broadcast %cst_174 : f32 to vector<16x128xf32>
    %539 = arith.addf %538, %537 : vector<16x128xf32>
    %540 = arith.divf %538, %539 : vector<16x128xf32>
    %541 = vector.extract_strided_slice %518 {offsets = [0, 128], sizes = [16, 128], strides = [1, 1]} : vector<16x384xf32> to vector<16x128xf32>
    %542 = vector.extract_strided_slice %532 {offsets = [0, 128], sizes = [16, 128], strides = [1, 1]} : vector<16x384xf32> to vector<16x128xf32>
    %543 = arith.addf %541, %542 : vector<16x128xf32>
    %544 = arith.negf %543 : vector<16x128xf32>
    %545 = math.exp %544 : vector<16x128xf32>
    %cst_175 = arith.constant 1.000000e+00 : f32
    %546 = vector.broadcast %cst_175 : f32 to vector<16x128xf32>
    %547 = arith.addf %546, %545 : vector<16x128xf32>
    %548 = arith.divf %546, %547 : vector<16x128xf32>
    %549 = vector.extract_strided_slice %518 {offsets = [0, 256], sizes = [16, 128], strides = [1, 1]} : vector<16x384xf32> to vector<16x128xf32>
    %550 = vector.extract_strided_slice %532 {offsets = [0, 256], sizes = [16, 128], strides = [1, 1]} : vector<16x384xf32> to vector<16x128xf32>
    %551 = arith.addf %550, %25 : vector<16x128xf32>
    %552 = arith.mulf %540, %551 : vector<16x128xf32>
    %553 = arith.addf %549, %552 : vector<16x128xf32>
    %554 = math.tanh %553 : vector<16x128xf32>
    %cst_176 = arith.constant 1.000000e+00 : f32
    %555 = vector.broadcast %cst_176 : f32 to vector<16x128xf32>
    %556 = arith.subf %555, %548 : vector<16x128xf32>
    %557 = arith.mulf %556, %554 : vector<16x128xf32>
    %558 = arith.mulf %548, %519 : vector<16x128xf32>
    %559 = arith.addf %557, %558 : vector<16x128xf32>
    %560 = vector.shape_cast %530 : vector<16x1xi1> to vector<16x1xi1>
    %561 = vector.broadcast %560 : vector<16x1xi1> to vector<16x128xi1>
    %562 = arith.select %561, %559, %519 : vector<16x128xi1>, vector<16x128xf32>
    %c0_177 = arith.constant 0 : index
    %c0_178 = arith.constant 0 : index
    %563 = vector.load %arg9[%c0_177, %c0_178] : memref<16x128xf32, #tpu.memory_space<vmem>>, vector<16x128xf32>
    tpu.vector_store %arg9[%c0_177, %c0_178], %562 {strides = array<i32>} : memref<16x128xf32, #tpu.memory_space<vmem>>, vector<16x128xf32>,
    %cst_179 = arith.constant 0.000000e+00 : f32
    %564 = vector.shape_cast %530 : vector<16x1xi1> to vector<16x1xi1>
    %565 = vector.broadcast %564 : vector<16x1xi1> to vector<16x128xi1>
    %566 = vector.broadcast %cst_179 : f32 to vector<16x128xf32>
    %567 = arith.select %565, %559, %566 : vector<16x128xi1>, vector<16x128xf32>
    %568 = vector.extract_strided_slice %567 {offsets = [0, 0], sizes = [8, 128], strides = [1, 1]} : vector<16x128xf32> to vector<8x128xf32>
    %569 = arith.index_cast %c7_i32_162 : i32 to index
    %c0_180 = arith.constant 0 : index
    %c0_181 = arith.constant 0 : index
    %570 = vector.load %arg10[%569, %c0_180, %c0_181] : memref<8x8x256xf32, #tpu.memory_space<vmem>>, vector<1x8x128xf32>
    %571 = vector.shape_cast %570 : vector<1x8x128xf32> to vector<8x128xf32>
    %572 = vector.shape_cast %568 : vector<8x128xf32> to vector<1x8x128xf32>
    tpu.vector_store %arg10[%569, %c0_180, %c0_181], %572 {strides = array<i32>} : memref<8x8x256xf32, #tpu.memory_space<vmem>>, vector<1x8x128xf32>,
    %573 = vector.extract_strided_slice %567 {offsets = [8, 0], sizes = [8, 128], strides = [1, 1]} : vector<16x128xf32> to vector<8x128xf32>
    %574 = arith.index_cast %513 : i32 to index
    %c0_182 = arith.constant 0 : index
    %c128_183 = arith.constant 128 : index
    %575 = vector.load %arg10[%574, %c0_182, %c128_183] : memref<8x8x256xf32, #tpu.memory_space<vmem>>, vector<1x8x128xf32>
    %576 = vector.shape_cast %575 : vector<1x8x128xf32> to vector<8x128xf32>
    %577 = vector.shape_cast %573 : vector<8x128xf32> to vector<1x8x128xf32>
    tpu.vector_store %arg10[%574, %c0_182, %c128_183], %577 {strides = array<i32>} : memref<8x8x256xf32, #tpu.memory_space<vmem>>, vector<1x8x128xf32>,
    %c8_i32_184 = arith.constant 8 : i32
    %c0_185 = arith.constant 0 : index
    %c0_186 = arith.constant 0 : index
    %c0_187 = arith.constant 0 : index
    %578 = vector.load %arg10[%c0_185, %c0_186, %c0_187] : memref<8x8x256xf32, #tpu.memory_space<vmem>>, vector<8x8x256xf32>
    %579 = vector.extract_strided_slice %578 {offsets = [0, 0, 0], sizes = [8, 8, 128], strides = [1, 1, 1]} : vector<8x8x256xf32> to vector<8x8x128xf32>
    %580 = vector.extract_strided_slice %578 {offsets = [0, 0, 128], sizes = [8, 8, 128], strides = [1, 1, 1]} : vector<8x8x256xf32> to vector<8x8x128xf32>
    %581 = arith.addf %579, %580 : vector<8x8x128xf32>
    %cst_188 = arith.constant 5.000000e-01 : f32
    %582 = vector.broadcast %cst_188 : f32 to vector<8x8x128xf32>
    %583 = arith.mulf %581, %582 : vector<8x8x128xf32>
    %584 = arith.mulf %583, %583 : vector<8x8x128xf32>
    %cst_189 = arith.constant dense<0.000000e+00> : vector<8x8xf32>
    %585 = vector.multi_reduction <add>, %584, %cst_189 [2] : vector<8x8x128xf32> to vector<8x8xf32>
    %586 = vector.shape_cast %585 : vector<8x8xf32> to vector<8x8x1xf32>
    %587 = math.sqrt %586 : vector<8x8x1xf32>
    %cst_190 = arith.constant 9.99999993E-9 : f32
    %588 = vector.broadcast %cst_190 : f32 to vector<8x8x1xf32>
    %589 = arith.addf %587, %588 : vector<8x8x1xf32>
    %590 = vector.broadcast %589 : vector<8x8x1xf32> to vector<8x8x128xf32>
    %591 = arith.divf %583, %590 : vector<8x8x128xf32>
    %c0_191 = arith.constant 0 : index
    %c0_192 = arith.constant 0 : index
    %c0_193 = arith.constant 0 : index
    %592 = vector.load %arg7[%c0_191, %c0_192, %c0_193] : memref<8x8x128xf32, #tpu.memory_space<vmem>>, vector<8x8x128xf32>
    tpu.vector_store %arg7[%c0_191, %c0_192, %c0_193], %591 {strides = array<i32>} : memref<8x8x128xf32, #tpu.memory_space<vmem>>, vector<8x8x128xf32>,
    return
  }
  func.func @transform_0(%arg0: i32) -> (i32, i32, i32) {
    %c0_i32 = arith.constant 0 : i32
    %c0_i32_0 = arith.constant 0 : i32
    %c0_i32_1 = arith.constant 0 : i32
    return %c0_i32, %arg0, %c0_i32_0 : i32, i32, i32
  }
  func.func @transform_1(%arg0: i32) -> (i32, i32) {
    %c0_i32 = arith.constant 0 : i32
    %c0_i32_0 = arith.constant 0 : i32
    return %arg0, %c0_i32 : i32, i32
  }
  func.func @transform_2(%arg0: i32) -> (i32, i32) {
    %c0_i32 = arith.constant 0 : i32
    %c0_i32_0 = arith.constant 0 : i32
    %c0_i32_1 = arith.constant 0 : i32
    return %c0_i32, %c0_i32_0 : i32, i32
  }
  func.func @transform_3(%arg0: i32) -> (i32, i32) {
    %c0_i32 = arith.constant 0 : i32
    %c0_i32_0 = arith.constant 0 : i32
    %c0_i32_1 = arith.constant 0 : i32
    return %c0_i32, %c0_i32_0 : i32, i32
  }
  func.func @transform_4(%arg0: i32) -> (i32, i32) {
    %c0_i32 = arith.constant 0 : i32
    %c0_i32_0 = arith.constant 0 : i32
    %c0_i32_1 = arith.constant 0 : i32
    return %c0_i32, %c0_i32_0 : i32, i32
  }
  func.func @transform_5(%arg0: i32) -> (i32, i32) {
    %c0_i32 = arith.constant 0 : i32
    %c0_i32_0 = arith.constant 0 : i32
    %c0_i32_1 = arith.constant 0 : i32
    return %c0_i32, %c0_i32_0 : i32, i32
  }
  func.func @transform_6(%arg0: i32) -> (i32, i32, i32) {
    %c0_i32 = arith.constant 0 : i32
    %c0_i32_0 = arith.constant 0 : i32
    %c0_i32_1 = arith.constant 0 : i32
    return %c0_i32, %arg0, %c0_i32_0 : i32, i32, i32
  }
}

</mosaic_0001>

<llo_original>
// kernel: tpu_custom_call.1
$region0: #{tpu_custom_call.1}
  #allocation0 [shape = 'u32[]', space=smem, size = 0x4, offset = 0x4, fixed_abs, tag = 'smem constant byte address 0x4 - core index']
  #allocation1 [shape = 'u32[144,128]{1,0:T(1,128)}', space=vmem, size = 0x12000, scoped, tag = 'internal scratch']
  #allocation2 [shape = 'f32[64,768]{1,0:T(8,128)}', space=vmem, size = 0x30000, scoped, tag = 'scratch operand']
  #allocation3 [shape = 'f32[16,128]{1,0:T(8,128)}', space=vmem, size = 0x2000, scoped, tag = 'scratch operand']
  #allocation4 [shape = 'f32[8,8,256]{2,1,0:T(8,128)}', space=vmem, size = 0x10000, scoped, tag = 'scratch operand']
  %s0 = inlined_call_operand.hbm [shape: f32[8,8,128], index: 0, kind: input, shape index: {}]
  %s1 = inlined_call_operand.vmem [shape: s32[8,1], index: 1, kind: input, shape index: {}]
  %s2 = inlined_call_operand.hbm [shape: f32[128,768], index: 2, kind: input, shape index: {}]
  %s3 = inlined_call_operand.hbm [shape: f32[256,384], index: 3, kind: input, shape index: {}]
  %s4 = inlined_call_operand.vmem [shape: f32[1,768], index: 4, kind: input, shape index: {}]
  %s5 = inlined_call_operand.vmem [shape: f32[1,256], index: 5, kind: input, shape index: {}]
  %s6 = inlined_call_operand.hbm [shape: f32[8,8,128], index: 6, kind: output, shape index: {}]
  %s7 = sld [smem:[#allocation0]]
  $region46: #{tpu_custom_call.1} parent=0
    _
  %s9 = ssub.s32 1, %s7
  %s10 = scalar_select 0, %s9, %s7
  $region1: #{tpu_custom_call.1} parent=0
    #allocation5 [shape = 'u8[32768]{0}', space=vmem, size = 0x8000, scoped, tag = 'input window, operand 0, single buffered']
    #allocation6 [shape = 's32[1]{0}', space=sflag, size = 0x4, scoped, tag = 'scoped memory for tpu_custom_call.1']
    #allocation7 [shape = 's32[1]{0}', space=sflag, size = 0x4, scoped, tag = 'scoped memory for tpu_custom_call.1']
    #allocation8 [shape = 'u8[393216]{0}', space=vmem, size = 0x60000, scoped, tag = 'input window, operand 2, single buffered']
    #allocation9 [shape = 's32[1]{0}', space=sflag, size = 0x4, scoped, tag = 'scoped memory for tpu_custom_call.1']
    #allocation10 [shape = 'u8[393216]{0}', space=vmem, size = 0x60000, scoped, tag = 'input window, operand 3, single buffered']
    #allocation11 [shape = 'u8[32768]{0}', space=vmem, size = 0x8000, scoped, tag = 'output window, operand 0, single buffered']
    %11 = vsyncpa [#allocation6], 0
    %12 = vsyncpa [#allocation9], 0
    %13 = vsyncpa [#allocation7], 0
    // Predicated region
    $region2: #{tpu_custom_call.1} parent=1 // pred_check
      _
    $region3: #{tpu_custom_call.1} parent=1 // pred_check_branch
      %15 = sbr.rel (0) target = $region5
    $region4: #{tpu_custom_call.1} parent=1 // pred_region
      %s17 = ssub.s32 1024, 1024
      %18 = vsyncadd [#allocation6], %s17
      %s19 = sshll.u32 [#allocation5], 4
      %s20 = int_to_ptr.vmem [resolvable:$true] %s19
      %25 = dma.hbm_to_vmem [thread:$0]  %s0, 1024, %s20, [#allocation6], 128, 128, 8
    $region5: #{tpu_custom_call.1} parent=1 // pred_fallthru
      _
    // Predicated region
    $region6: #{tpu_custom_call.1} parent=1 // pred_check
      _
    $region7: #{tpu_custom_call.1} parent=1 // pred_check_branch
      %27 = sbr.rel (0) target = $region9
    $region8: #{tpu_custom_call.1} parent=1 // pred_region
      _
    $region9: #{tpu_custom_call.1} parent=1 // pred_fallthru
      _
    // Predicated region
    $region10: #{tpu_custom_call.1} parent=1 // pred_check
      _
    $region11: #{tpu_custom_call.1} parent=1 // pred_check_branch
      %29 = sbr.rel (0) target = $region13
    $region12: #{tpu_custom_call.1} parent=1 // pred_region
      %s31 = ssub.s32 12288, 12288
      %32 = vsyncadd [#allocation9], %s31
      %s33 = sshll.u32 [#allocation8], 4
      %s34 = int_to_ptr.vmem [resolvable:$true] %s33
      %39 = dma.hbm_to_vmem [thread:$0]  %s2, 12288, %s34, [#allocation9], 768, 768, 48
    $region13: #{tpu_custom_call.1} parent=1 // pred_fallthru
      _
    // Predicated region
    $region14: #{tpu_custom_call.1} parent=1 // pred_check
      _
    $region15: #{tpu_custom_call.1} parent=1 // pred_check_branch
      %41 = sbr.rel (0) target = $region17
    $region16: #{tpu_custom_call.1} parent=1 // pred_region
      %s43 = ssub.s32 12288, 12288
      %44 = vsyncadd [#allocation9], %s43
      %s45 = sshll.u32 [#allocation10], 4
      %s46 = int_to_ptr.vmem [resolvable:$true] %s45
      %51 = dma.hbm_to_vmem [thread:$0]  %s3, 12288, %s46, [#allocation9], 384, 384, 24
    $region17: #{tpu_custom_call.1} parent=1 // pred_fallthru
      _
    // Predicated region
    $region18: #{tpu_custom_call.1} parent=1 // pred_check
      _
    $region19: #{tpu_custom_call.1} parent=1 // pred_check_branch
      %53 = sbr.rel (0) target = $region21
    $region20: #{tpu_custom_call.1} parent=1 // pred_region
      _
    $region21: #{tpu_custom_call.1} parent=1 // pred_fallthru
      _
    // Predicated region
    $region22: #{tpu_custom_call.1} parent=1 // pred_check
      _
    $region23: #{tpu_custom_call.1} parent=1 // pred_check_branch
      %55 = sbr.rel (0) target = $region25
    $region24: #{tpu_custom_call.1} parent=1 // pred_region
      _
    $region25: #{tpu_custom_call.1} parent=1 // pred_fallthru
      _
    // Predicated region
    $region26: #{tpu_custom_call.1} parent=1 // pred_check
      _
    $region27: #{tpu_custom_call.1} parent=1 // pred_check_branch
      %57 = sbr.rel (0) target = $region29
    $region28: #{tpu_custom_call.1} parent=1 // pred_region
      %58 = dma.done [#allocation6], 1024
    $region29: #{tpu_custom_call.1} parent=1 // pred_fallthru
      _
    // Predicated region
    $region30: #{tpu_custom_call.1} parent=1 // pred_check
      _
    $region31: #{tpu_custom_call.1} parent=1 // pred_check_branch
      %60 = sbr.rel (0) target = $region33
    $region32: #{tpu_custom_call.1} parent=1 // pred_region
      %61 = dma.done [#allocation9], 12288
    $region33: #{tpu_custom_call.1} parent=1 // pred_fallthru
      _
    // Predicated region
    $region34: #{tpu_custom_call.1} parent=1 // pred_check
      _
    $region35: #{tpu_custom_call.1} parent=1 // pred_check_branch
      %63 = sbr.rel (0) target = $region37
    $region36: #{tpu_custom_call.1} parent=1 // pred_region
      %64 = dma.done [#allocation9], 12288
    $region37: #{tpu_custom_call.1} parent=1 // pred_fallthru
      _
    %v65 = vld [vmem:[#allocation5] sm:$0xff]
    %v66 = vld [vmem:[#allocation5 + $0x8] sm:$0xff]
    %v67 = vld [vmem:[#allocation5 + $0x10] sm:$0xff]
    %v68 = vld [vmem:[#allocation5 + $0x18] sm:$0xff]
    %v69 = vld [vmem:[#allocation5 + $0x20] sm:$0xff]
    %v70 = vld [vmem:[#allocation5 + $0x28] sm:$0xff]
    %v71 = vld [vmem:[#allocation5 + $0x30] sm:$0xff]
    %v72 = vld [vmem:[#allocation5 + $0x38] sm:$0xff]
    %v73 = vld [vmem:[#allocation8] sm:$0xff]
    %v74 = vld [vmem:[#allocation8 + $0x8] sm:$0xff]
    %v75 = vld [vmem:[#allocation8 + $0x10] sm:$0xff]
    %v76 = vld [vmem:[#allocation8 + $0x18] sm:$0xff]
    %v77 = vld [vmem:[#allocation8 + $0x20] sm:$0xff]
    %v78 = vld [vmem:[#allocation8 + $0x28] sm:$0xff]
    %v79 = vld [vmem:[#allocation8 + $0x30] sm:$0xff]
    %v80 = vld [vmem:[#allocation8 + $0x38] sm:$0xff]
    %v81 = vld [vmem:[#allocation8 + $0x40] sm:$0xff]
    %v82 = vld [vmem:[#allocation8 + $0x48] sm:$0xff]
    %v83 = vld [vmem:[#allocation8 + $0x50] sm:$0xff]
    %v84 = vld [vmem:[#allocation8 + $0x58] sm:$0xff]
    %v85 = vld [vmem:[#allocation8 + $0x60] sm:$0xff]
    %v86 = vld [vmem:[#allocation8 + $0x68] sm:$0xff]
    %v87 = vld [vmem:[#allocation8 + $0x70] sm:$0xff]
    %v88 = vld [vmem:[#allocation8 + $0x78] sm:$0xff]
    %v89 = vld [vmem:[#allocation8 + $0x80] sm:$0xff]
    %v90 = vld [vmem:[#allocation8 + $0x88] sm:$0xff]
    %v91 = vld [vmem:[#allocation8 + $0x90] sm:$0xff]
    %v92 = vld [vmem:[#allocation8 + $0x98] sm:$0xff]
    %v93 = vld [vmem:[#allocation8 + $0xa0] sm:$0xff]
    %v94 = vld [vmem:[#allocation8 + $0xa8] sm:$0xff]
    %v95 = vld [vmem:[#allocation8 + $0xb0] sm:$0xff]
    %v96 = vld [vmem:[#allocation8 + $0xb8] sm:$0xff]
    %v97 = vld [vmem:[#allocation8 + $0xc0] sm:$0xff]
    %v98 = vld [vmem:[#allocation8 + $0xc8] sm:$0xff]
    %v99 = vld [vmem:[#allocation8 + $0xd0] sm:$0xff]
    %v100 = vld [vmem:[#allocation8 + $0xd8] sm:$0xff]
    %v101 = vld [vmem:[#allocation8 + $0xe0] sm:$0xff]
    %v102 = vld [vmem:[#allocation8 + $0xe8] sm:$0xff]
    %v103 = vld [vmem:[#allocation8 + $0xf0] sm:$0xff]
    %v104 = vld [vmem:[#allocation8 + $0xf8] sm:$0xff]
    %v105 = vld [vmem:[#allocation8 + $0x100] sm:$0xff]
    %v106 = vld [vmem:[#allocation8 + $0x108] sm:$0xff]
    %v107 = vld [vmem:[#allocation8 + $0x110] sm:$0xff]
    %v108 = vld [vmem:[#allocation8 + $0x118] sm:$0xff]
    %v109 = vld [vmem:[#allocation8 + $0x120] sm:$0xff]
    %v110 = vld [vmem:[#allocation8 + $0x128] sm:$0xff]
    %v111 = vld [vmem:[#allocation8 + $0x130] sm:$0xff]
    %v112 = vld [vmem:[#allocation8 + $0x138] sm:$0xff]
    %v113 = vld [vmem:[#allocation8 + $0x140] sm:$0xff]
    %v114 = vld [vmem:[#allocation8 + $0x148] sm:$0xff]
    %v115 = vld [vmem:[#allocation8 + $0x150] sm:$0xff]
    %v116 = vld [vmem:[#allocation8 + $0x158] sm:$0xff]
    %v117 = vld [vmem:[#allocation8 + $0x160] sm:$0xff]
    %v118 = vld [vmem:[#allocation8 + $0x168] sm:$0xff]
    %v119 = vld [vmem:[#allocation8 + $0x170] sm:$0xff]
    %v120 = vld [vmem:[#allocation8 + $0x178] sm:$0xff]
    %v121 = vld [vmem:[#allocation8 + $0x180] sm:$0xff]
    %v122 = vld [vmem:[#allocation8 + $0x188] sm:$0xff]
    %v123 = vld [vmem:[#allocation8 + $0x190] sm:$0xff]
    %v124 = vld [vmem:[#allocation8 + $0x198] sm:$0xff]
    %v125 = vld [vmem:[#allocation8 + $0x1a0] sm:$0xff]
    %v126 = vld [vmem:[#allocation8 + $0x1a8] sm:$0xff]
    %v127 = vld [vmem:[#allocation8 + $0x1b0] sm:$0xff]
    %v128 = vld [vmem:[#allocation8 + $0x1b8] sm:$0xff]
    %v129 = vld [vmem:[#allocation8 + $0x1c0] sm:$0xff]
    %v130 = vld [vmem:[#allocation8 + $0x1c8] sm:$0xff]
    %v131 = vld [vmem:[#allocation8 + $0x1d0] sm:$0xff]
    %v132 = vld [vmem:[#allocation8 + $0x1d8] sm:$0xff]
    %v133 = vld [vmem:[#allocation8 + $0x1e0] sm:$0xff]
    %v134 = vld [vmem:[#allocation8 + $0x1e8] sm:$0xff]
    %v135 = vld [vmem:[#allocation8 + $0x1f0] sm:$0xff]
    %v136 = vld [vmem:[#allocation8 + $0x1f8] sm:$0xff]
    %v137 = vld [vmem:[#allocation8 + $0x200] sm:$0xff]
    %v138 = vld [vmem:[#allocation8 + $0x208] sm:$0xff]
    %v139 = vld [vmem:[#allocation8 + $0x210] sm:$0xff]
    %v140 = vld [vmem:[#allocation8 + $0x218] sm:$0xff]
    %v141 = vld [vmem:[#allocation8 + $0x220] sm:$0xff]
    %v142 = vld [vmem:[#allocation8 + $0x228] sm:$0xff]
    %v143 = vld [vmem:[#allocation8 + $0x230] sm:$0xff]
    %v144 = vld [vmem:[#allocation8 + $0x238] sm:$0xff]
    %v145 = vld [vmem:[#allocation8 + $0x240] sm:$0xff]
    %v146 = vld [vmem:[#allocation8 + $0x248] sm:$0xff]
    %v147 = vld [vmem:[#allocation8 + $0x250] sm:$0xff]
    %v148 = vld [vmem:[#allocation8 + $0x258] sm:$0xff]
    %v149 = vld [vmem:[#allocation8 + $0x260] sm:$0xff]
    %v150 = vld [vmem:[#allocation8 + $0x268] sm:$0xff]
    %v151 = vld [vmem:[#allocation8 + $0x270] sm:$0xff]
    %v152 = vld [vmem:[#allocation8 + $0x278] sm:$0xff]
    %v153 = vld [vmem:[#allocation8 + $0x280] sm:$0xff]
    %v154 = vld [vmem:[#allocation8 + $0x288] sm:$0xff]
    %v155 = vld [vmem:[#allocation8 + $0x290] sm:$0xff]
    %v156 = vld [vmem:[#allocation8 + $0x298] sm:$0xff]
    %v157 = vld [vmem:[#allocation8 + $0x2a0] sm:$0xff]
    %v158 = vld [vmem:[#allocation8 + $0x2a8] sm:$0xff]
    %v159 = vld [vmem:[#allocation8 + $0x2b0] sm:$0xff]
    %v160 = vld [vmem:[#allocation8 + $0x2b8] sm:$0xff]
    %v161 = vld [vmem:[#allocation8 + $0x2c0] sm:$0xff]
    %v162 = vld [vmem:[#allocation8 + $0x2c8] sm:$0xff]
    %v163 = vld [vmem:[#allocation8 + $0x2d0] sm:$0xff]
    %v164 = vld [vmem:[#allocation8 + $0x2d8] sm:$0xff]
    %v165 = vld [vmem:[#allocation8 + $0x2e0] sm:$0xff]
    %v166 = vld [vmem:[#allocation8 + $0x2e8] sm:$0xff]
    %v167 = vld [vmem:[#allocation8 + $0x2f0] sm:$0xff]
    %v168 = vld [vmem:[#allocation8 + $0x2f8] sm:$0xff]
    %v169 = vld [vmem:[%s4] sm:$0x3f]
    %v171 = vlaneseq
    %v172 = vshrl.u32 %v171, 7
    %v173 = vsub.s32 0, %v172
    %v174 = vrot.slane %v169, %v173
    %v175 = vlaneseq
    %v176 = vshrl.u32 %v175, 7
    %v177 = vsub.s32 1, %v176
    %v178 = vrot.slane %v169, %v177
    %v179 = vlaneseq
    %v180 = vshrl.u32 %v179, 7
    %v181 = vsub.s32 2, %v180
    %v182 = vrot.slane %v169, %v181
    %v183 = vlaneseq
    %v184 = vshrl.u32 %v183, 7
    %v185 = vsub.s32 3, %v184
    %v186 = vrot.slane %v169, %v185
    %v187 = vlaneseq
    %v188 = vshrl.u32 %v187, 7
    %v189 = vsub.s32 4, %v188
    %v190 = vrot.slane %v169, %v189
    %v191 = vlaneseq
    %v192 = vshrl.u32 %v191, 7
    %v193 = vsub.s32 5, %v192
    %v194 = vrot.slane %v169, %v193
    %201 = vmatprep.subr.mxu0 %v164
    %202 = vmatpush1.msra.mxu0 %v163
    %203 = vmatprep.subr.mxu0 %v158
    %204 = vmatpush1.msra.mxu0 %v157
    %205 = vmatprep.subr.mxu0 %v152
    %206 = vmatpush1.msra.mxu0 %v151
    %207 = vmatprep.subr.mxu0 %v146
    %208 = vmatpush1.msra.mxu0 %v145
    %209 = vmatprep.subr.mxu0 %v140
    %210 = vmatpush1.msra.mxu0 %v139
    %211 = vmatprep.subr.mxu0 %v134
    %212 = vmatpush1.msra.mxu0 %v133
    %213 = vmatprep.subr.mxu0 %v128
    %214 = vmatpush1.msra.mxu0 %v127
    %215 = vmatprep.subr.mxu0 %v122
    %216 = vmatpush1.msra.mxu0 %v121
    %217 = vmatprep.subr.mxu0 %v116
    %218 = vmatpush1.msra.mxu0 %v115
    %219 = vmatprep.subr.mxu0 %v110
    %220 = vmatpush1.msra.mxu0 %v109
    %221 = vmatprep.subr.mxu0 %v104
    %222 = vmatpush1.msra.mxu0 %v103
    %223 = vmatprep.subr.mxu0 %v98
    %224 = vmatpush1.msra.mxu0 %v97
    %225 = vmatprep.subr.mxu0 %v92
    %226 = vmatpush1.msra.mxu0 %v91
    %227 = vmatprep.subr.mxu0 %v86
    %228 = vmatpush1.msra.mxu0 %v85
    %229 = vmatprep.subr.mxu0 %v80
    %230 = vmatpush1.msra.mxu0 %v79
    %231 = vmatprep.subr.mxu0 %v74
    %232 = vmatpush1.msra.mxu0 %v73
    %233 = vmatprep.subr.mxu0 0.0
    %234 = vmatpush2.msra.mxu0 0.0
    %235 = vmatprep.subr.mxu0 0.0
    %236 = vmatpush2.msra.mxu0 0.0
    %237 = vmatprep.subr.mxu0 0.0
    %238 = vmatpush2.msra.mxu0 0.0
    %239 = vmatprep.subr.mxu0 0.0
    %240 = vmatpush2.msra.mxu0 0.0
    %241 = vmatprep.subr.mxu0 0.0
    %242 = vmatpush2.msra.mxu0 0.0
    %243 = vmatprep.subr.mxu0 0.0
    %244 = vmatpush2.msra.mxu0 0.0
    %245 = vmatprep.subr.mxu0 0.0
    %246 = vmatpush2.msra.mxu0 0.0
    %247 = vmatprep.subr.mxu0 0.0
    %248 = vmatpush2.msra.mxu0 0.0
    %249 = vmatprep.subr.mxu0 0.0
    %250 = vmatpush2.msra.mxu0 0.0
    %251 = vmatprep.subr.mxu0 0.0
    %252 = vmatpush2.msra.mxu0 0.0
    %253 = vmatprep.subr.mxu0 0.0
    %254 = vmatpush2.msra.mxu0 0.0
    %255 = vmatprep.subr.mxu0 0.0
    %256 = vmatpush2.msra.mxu0 0.0
    %257 = vmatprep.subr.mxu0 0.0
    %258 = vmatpush2.msra.mxu0 0.0
    %259 = vmatprep.subr.mxu0 0.0
    %260 = vmatpush2.msra.mxu0 0.0
    %261 = vmatprep.subr.mxu0 0.0
    %262 = vmatpush2.msra.mxu0 0.0
    %263 = vmatprep.subr.mxu0 0.0
    %264 = vmatpush2.msra.mxu0 0.0
    %265 = vmatprep.mubr.f32.mxu0 0.0
    %266 = vmatmul.mubr.f32.gmra.mxu0 %v65
    %v267 = vpop.f32.mrf.mxu0
    %v268 = vadd.f32 %v174, %v267
    %v269 = vpop.f32.mrf.mxu0
    %v270 = vadd.f32 %v178, %v269
    %271 = vmatprep.mubr.f32.mxu0 0.0
    %272 = vmatmul.mubr.f32.gmra.mxu0 %v66
    %v273 = vpop.f32.mrf.mxu0
    %v274 = vadd.f32 %v174, %v273
    %v275 = vpop.f32.mrf.mxu0
    %v276 = vadd.f32 %v178, %v275
    %277 = vmatprep.mubr.f32.mxu0 0.0
    %278 = vmatmul.mubr.f32.gmra.mxu0 %v67
    %v279 = vpop.f32.mrf.mxu0
    %v280 = vadd.f32 %v174, %v279
    %v281 = vpop.f32.mrf.mxu0
    %v282 = vadd.f32 %v178, %v281
    %283 = vmatprep.mubr.f32.mxu0 0.0
    %284 = vmatmul.mubr.f32.gmra.mxu0 %v68
    %v285 = vpop.f32.mrf.mxu0
    %v286 = vadd.f32 %v174, %v285
    %v287 = vpop.f32.mrf.mxu0
    %v288 = vadd.f32 %v178, %v287
    %289 = vmatprep.mubr.f32.mxu0 0.0
    %290 = vmatmul.mubr.f32.gmra.mxu0 %v69
    %v291 = vpop.f32.mrf.mxu0
    %v292 = vadd.f32 %v174, %v291
    %v293 = vpop.f32.mrf.mxu0
    %v294 = vadd.f32 %v178, %v293
    %295 = vmatprep.mubr.f32.mxu0 0.0
    %296 = vmatmul.mubr.f32.gmra.mxu0 %v70
    %v297 = vpop.f32.mrf.mxu0
    %v298 = vadd.f32 %v174, %v297
    %v299 = vpop.f32.mrf.mxu0
    %v300 = vadd.f32 %v178, %v299
    %301 = vmatprep.mubr.f32.mxu0 0.0
    %302 = vmatmul.mubr.f32.gmra.mxu0 %v71
    %v303 = vpop.f32.mrf.mxu0
    %v304 = vadd.f32 %v174, %v303
    %v305 = vpop.f32.mrf.mxu0
    %v306 = vadd.f32 %v178, %v305
    %307 = vmatprep.mubr.f32.mxu0 0.0
    %308 = vmatmul.mubr.f32.gmra.mxu0 %v72
    %v309 = vpop.f32.mrf.mxu0
    %v310 = vadd.f32 %v174, %v309
    %v311 = vpop.f32.mrf.mxu0
    %v312 = vadd.f32 %v178, %v311
    %313 = vdwg.mxu0
    %314 = vmatprep.subr.mxu0 %v166
    %315 = vmatpush1.msra.mxu0 %v165
    %316 = vmatprep.subr.mxu0 %v160
    %317 = vmatpush1.msra.mxu0 %v159
    %318 = vmatprep.subr.mxu0 %v154
    %319 = vmatpush1.msra.mxu0 %v153
    %320 = vmatprep.subr.mxu0 %v148
    %321 = vmatpush1.msra.mxu0 %v147
    %322 = vmatprep.subr.mxu0 %v142
    %323 = vmatpush1.msra.mxu0 %v141
    %324 = vmatprep.subr.mxu0 %v136
    %325 = vmatpush1.msra.mxu0 %v135
    %326 = vmatprep.subr.mxu0 %v130
    %327 = vmatpush1.msra.mxu0 %v129
    %328 = vmatprep.subr.mxu0 %v124
    %329 = vmatpush1.msra.mxu0 %v123
    %330 = vmatprep.subr.mxu0 %v118
    %331 = vmatpush1.msra.mxu0 %v117
    %332 = vmatprep.subr.mxu0 %v112
    %333 = vmatpush1.msra.mxu0 %v111
    %334 = vmatprep.subr.mxu0 %v106
    %335 = vmatpush1.msra.mxu0 %v105
    %336 = vmatprep.subr.mxu0 %v100
    %337 = vmatpush1.msra.mxu0 %v99
    %338 = vmatprep.subr.mxu0 %v94
    %339 = vmatpush1.msra.mxu0 %v93
    %340 = vmatprep.subr.mxu0 %v88
    %341 = vmatpush1.msra.mxu0 %v87
    %342 = vmatprep.subr.mxu0 %v82
    %343 = vmatpush1.msra.mxu0 %v81
    %344 = vmatprep.subr.mxu0 %v76
    %345 = vmatpush1.msra.mxu0 %v75
    %346 = vmatprep.subr.mxu0 0.0
    %347 = vmatpush2.msra.mxu0 0.0
    %348 = vmatprep.subr.mxu0 0.0
    %349 = vmatpush2.msra.mxu0 0.0
    %350 = vmatprep.subr.mxu0 0.0
    %351 = vmatpush2.msra.mxu0 0.0
    %352 = vmatprep.subr.mxu0 0.0
    %353 = vmatpush2.msra.mxu0 0.0
    %354 = vmatprep.subr.mxu0 0.0
    %355 = vmatpush2.msra.mxu0 0.0
    %356 = vmatprep.subr.mxu0 0.0
    %357 = vmatpush2.msra.mxu0 0.0
    %358 = vmatprep.subr.mxu0 0.0
    %359 = vmatpush2.msra.mxu0 0.0
    %360 = vmatprep.subr.mxu0 0.0
    %361 = vmatpush2.msra.mxu0 0.0
    %362 = vmatprep.subr.mxu0 0.0
    %363 = vmatpush2.msra.mxu0 0.0
    %364 = vmatprep.subr.mxu0 0.0
    %365 = vmatpush2.msra.mxu0 0.0
    %366 = vmatprep.subr.mxu0 0.0
    %367 = vmatpush2.msra.mxu0 0.0
    %368 = vmatprep.subr.mxu0 0.0
    %369 = vmatpush2.msra.mxu0 0.0
    %370 = vmatprep.subr.mxu0 0.0
    %371 = vmatpush2.msra.mxu0 0.0
    %372 = vmatprep.subr.mxu0 0.0
    %373 = vmatpush2.msra.mxu0 0.0
    %374 = vmatprep.subr.mxu0 0.0
    %375 = vmatpush2.msra.mxu0 0.0
    %376 = vmatprep.subr.mxu0 0.0
    %377 = vmatpush2.msra.mxu0 0.0
    %378 = vmatprep.mubr.f32.mxu0 0.0
    %379 = vmatmul.mubr.f32.gmra.mxu0 %v65
    %v380 = vpop.f32.mrf.mxu0
    %v381 = vadd.f32 %v182, %v380
    %v382 = vpop.f32.mrf.mxu0
    %v383 = vadd.f32 %v186, %v382
    %384 = vmatprep.mubr.f32.mxu0 0.0
    %385 = vmatmul.mubr.f32.gmra.mxu0 %v66
    %v386 = vpop.f32.mrf.mxu0
    %v387 = vadd.f32 %v182, %v386
    %v388 = vpop.f32.mrf.mxu0
    %v389 = vadd.f32 %v186, %v388
    %390 = vmatprep.mubr.f32.mxu0 0.0
    %391 = vmatmul.mubr.f32.gmra.mxu0 %v67
    %v392 = vpop.f32.mrf.mxu0
    %v393 = vadd.f32 %v182, %v392
    %v394 = vpop.f32.mrf.mxu0
    %v395 = vadd.f32 %v186, %v394
    %396 = vmatprep.mubr.f32.mxu0 0.0
    %397 = vmatmul.mubr.f32.gmra.mxu0 %v68
    %v398 = vpop.f32.mrf.mxu0
    %v399 = vadd.f32 %v182, %v398
    %v400 = vpop.f32.mrf.mxu0
    %v401 = vadd.f32 %v186, %v400
    %402 = vmatprep.mubr.f32.mxu0 0.0
    %403 = vmatmul.mubr.f32.gmra.mxu0 %v69
    %v404 = vpop.f32.mrf.mxu0
    %v405 = vadd.f32 %v182, %v404
    %v406 = vpop.f32.mrf.mxu0
    %v407 = vadd.f32 %v186, %v406
    %408 = vmatprep.mubr.f32.mxu0 0.0
    %409 = vmatmul.mubr.f32.gmra.mxu0 %v70
    %v410 = vpop.f32.mrf.mxu0
    %v411 = vadd.f32 %v182, %v410
    %v412 = vpop.f32.mrf.mxu0
    %v413 = vadd.f32 %v186, %v412
    %414 = vmatprep.mubr.f32.mxu0 0.0
    %415 = vmatmul.mubr.f32.gmra.mxu0 %v71
    %v416 = vpop.f32.mrf.mxu0
    %v417 = vadd.f32 %v182, %v416
    %v418 = vpop.f32.mrf.mxu0
    %v419 = vadd.f32 %v186, %v418
    %420 = vmatprep.mubr.f32.mxu0 0.0
    %421 = vmatmul.mubr.f32.gmra.mxu0 %v72
    %v422 = vpop.f32.mrf.mxu0
    %v423 = vadd.f32 %v182, %v422
    %v424 = vpop.f32.mrf.mxu0
    %v425 = vadd.f32 %v186, %v424
    %426 = vdwg.mxu0
    %427 = vmatprep.subr.mxu0 %v168
    %428 = vmatpush1.msra.mxu0 %v167
    %429 = vmatprep.subr.mxu0 %v162
    %430 = vmatpush1.msra.mxu0 %v161
    %431 = vmatprep.subr.mxu0 %v156
    %432 = vmatpush1.msra.mxu0 %v155
    %433 = vmatprep.subr.mxu0 %v150
    %434 = vmatpush1.msra.mxu0 %v149
    %435 = vmatprep.subr.mxu0 %v144
    %436 = vmatpush1.msra.mxu0 %v143
    %437 = vmatprep.subr.mxu0 %v138
    %438 = vmatpush1.msra.mxu0 %v137
    %439 = vmatprep.subr.mxu0 %v132
    %440 = vmatpush1.msra.mxu0 %v131
    %441 = vmatprep.subr.mxu0 %v126
    %442 = vmatpush1.msra.mxu0 %v125
    %443 = vmatprep.subr.mxu0 %v120
    %444 = vmatpush1.msra.mxu0 %v119
    %445 = vmatprep.subr.mxu0 %v114
    %446 = vmatpush1.msra.mxu0 %v113
    %447 = vmatprep.subr.mxu0 %v108
    %448 = vmatpush1.msra.mxu0 %v107
    %449 = vmatprep.subr.mxu0 %v102
    %450 = vmatpush1.msra.mxu0 %v101
    %451 = vmatprep.subr.mxu0 %v96
    %452 = vmatpush1.msra.mxu0 %v95
    %453 = vmatprep.subr.mxu0 %v90
    %454 = vmatpush1.msra.mxu0 %v89
    %455 = vmatprep.subr.mxu0 %v84
    %456 = vmatpush1.msra.mxu0 %v83
    %457 = vmatprep.subr.mxu0 %v78
    %458 = vmatpush1.msra.mxu0 %v77
    %459 = vmatprep.subr.mxu0 0.0
    %460 = vmatpush2.msra.mxu0 0.0
    %461 = vmatprep.subr.mxu0 0.0
    %462 = vmatpush2.msra.mxu0 0.0
    %463 = vmatprep.subr.mxu0 0.0
    %464 = vmatpush2.msra.mxu0 0.0
    %465 = vmatprep.subr.mxu0 0.0
    %466 = vmatpush2.msra.mxu0 0.0
    %467 = vmatprep.subr.mxu0 0.0
    %468 = vmatpush2.msra.mxu0 0.0
    %469 = vmatprep.subr.mxu0 0.0
    %470 = vmatpush2.msra.mxu0 0.0
    %471 = vmatprep.subr.mxu0 0.0
    %472 = vmatpush2.msra.mxu0 0.0
    %473 = vmatprep.subr.mxu0 0.0
    %474 = vmatpush2.msra.mxu0 0.0
    %475 = vmatprep.subr.mxu0 0.0
    %476 = vmatpush2.msra.mxu0 0.0
    %477 = vmatprep.subr.mxu0 0.0
    %478 = vmatpush2.msra.mxu0 0.0
    %479 = vmatprep.subr.mxu0 0.0
    %480 = vmatpush2.msra.mxu0 0.0
    %481 = vmatprep.subr.mxu0 0.0
    %482 = vmatpush2.msra.mxu0 0.0
    %483 = vmatprep.subr.mxu0 0.0
    %484 = vmatpush2.msra.mxu0 0.0
    %485 = vmatprep.subr.mxu0 0.0
    %486 = vmatpush2.msra.mxu0 0.0
    %487 = vmatprep.subr.mxu0 0.0
    %488 = vmatpush2.msra.mxu0 0.0
    %489 = vmatprep.subr.mxu0 0.0
    %490 = vmatpush2.msra.mxu0 0.0
    %491 = vmatprep.mubr.f32.mxu0 0.0
    %492 = vmatmul.mubr.f32.gmra.mxu0 %v65
    %v493 = vpop.f32.mrf.mxu0
    %v494 = vadd.f32 %v190, %v493
    %v495 = vpop.f32.mrf.mxu0
    %v496 = vadd.f32 %v194, %v495
    %497 = vmatprep.mubr.f32.mxu0 0.0
    %498 = vmatmul.mubr.f32.gmra.mxu0 %v66
    %v499 = vpop.f32.mrf.mxu0
    %v500 = vadd.f32 %v190, %v499
    %v501 = vpop.f32.mrf.mxu0
    %v502 = vadd.f32 %v194, %v501
    %503 = vmatprep.mubr.f32.mxu0 0.0
    %504 = vmatmul.mubr.f32.gmra.mxu0 %v67
    %v505 = vpop.f32.mrf.mxu0
    %v506 = vadd.f32 %v190, %v505
    %v507 = vpop.f32.mrf.mxu0
    %v508 = vadd.f32 %v194, %v507
    %509 = vmatprep.mubr.f32.mxu0 0.0
    %510 = vmatmul.mubr.f32.gmra.mxu0 %v68
    %v511 = vpop.f32.mrf.mxu0
    %v512 = vadd.f32 %v190, %v511
    %v513 = vpop.f32.mrf.mxu0
    %v514 = vadd.f32 %v194, %v513
    %515 = vmatprep.mubr.f32.mxu0 0.0
    %516 = vmatmul.mubr.f32.gmra.mxu0 %v69
    %v517 = vpop.f32.mrf.mxu0
    %v518 = vadd.f32 %v190, %v517
    %v519 = vpop.f32.mrf.mxu0
    %v520 = vadd.f32 %v194, %v519
    %521 = vmatprep.mubr.f32.mxu0 0.0
    %522 = vmatmul.mubr.f32.gmra.mxu0 %v70
    %v523 = vpop.f32.mrf.mxu0
    %v524 = vadd.f32 %v190, %v523
    %v525 = vpop.f32.mrf.mxu0
    %v526 = vadd.f32 %v194, %v525
    %527 = vmatprep.mubr.f32.mxu0 0.0
    %528 = vmatmul.mubr.f32.gmra.mxu0 %v71
    %v529 = vpop.f32.mrf.mxu0
    %v530 = vadd.f32 %v190, %v529
    %v531 = vpop.f32.mrf.mxu0
    %v532 = vadd.f32 %v194, %v531
    %533 = vmatprep.mubr.f32.mxu0 0.0
    %534 = vmatmul.mubr.f32.gmra.mxu0 %v72
    %v535 = vpop.f32.mrf.mxu0
    %v536 = vadd.f32 %v190, %v535
    %v537 = vpop.f32.mrf.mxu0
    %v538 = vadd.f32 %v194, %v537
    %539 = vdwg.mxu0
    %540 = vst [vmem:[#allocation2] sm:$0xff] %v268
    %541 = vst [vmem:[#allocation2 + $0x8] sm:$0xff] %v270
    %542 = vst [vmem:[#allocation2 + $0x10] sm:$0xff] %v381
    %543 = vst [vmem:[#allocation2 + $0x18] sm:$0xff] %v383
    %544 = vst [vmem:[#allocation2 + $0x20] sm:$0xff] %v494
    %545 = vst [vmem:[#allocation2 + $0x28] sm:$0xff] %v496
    %546 = vst [vmem:[#allocation2 + $0x30] sm:$0xff] %v274
    %547 = vst [vmem:[#allocation2 + $0x38] sm:$0xff] %v276
    %548 = vst [vmem:[#allocation2 + $0x40] sm:$0xff] %v387
    %549 = vst [vmem:[#allocation2 + $0x48] sm:$0xff] %v389
    %550 = vst [vmem:[#allocation2 + $0x50] sm:$0xff] %v500
    %551 = vst [vmem:[#allocation2 + $0x58] sm:$0xff] %v502
    %552 = vst [vmem:[#allocation2 + $0x60] sm:$0xff] %v280
    %553 = vst [vmem:[#allocation2 + $0x68] sm:$0xff] %v282
    %554 = vst [vmem:[#allocation2 + $0x70] sm:$0xff] %v393
    %555 = vst [vmem:[#allocation2 + $0x78] sm:$0xff] %v395
    %556 = vst [vmem:[#allocation2 + $0x80] sm:$0xff] %v506
    %557 = vst [vmem:[#allocation2 + $0x88] sm:$0xff] %v508
    %558 = vst [vmem:[#allocation2 + $0x90] sm:$0xff] %v286
    %559 = vst [vmem:[#allocation2 + $0x98] sm:$0xff] %v288
    %560 = vst [vmem:[#allocation2 + $0xa0] sm:$0xff] %v399
    %561 = vst [vmem:[#allocation2 + $0xa8] sm:$0xff] %v401
    %562 = vst [vmem:[#allocation2 + $0xb0] sm:$0xff] %v512
    %563 = vst [vmem:[#allocation2 + $0xb8] sm:$0xff] %v514
    %564 = vst [vmem:[#allocation2 + $0xc0] sm:$0xff] %v292
    %565 = vst [vmem:[#allocation2 + $0xc8] sm:$0xff] %v294
    %566 = vst [vmem:[#allocation2 + $0xd0] sm:$0xff] %v405
    %567 = vst [vmem:[#allocation2 + $0xd8] sm:$0xff] %v407
    %568 = vst [vmem:[#allocation2 + $0xe0] sm:$0xff] %v518
    %569 = vst [vmem:[#allocation2 + $0xe8] sm:$0xff] %v520
    %570 = vst [vmem:[#allocation2 + $0xf0] sm:$0xff] %v298
    %571 = vst [vmem:[#allocation2 + $0xf8] sm:$0xff] %v300
    %572 = vst [vmem:[#allocation2 + $0x100] sm:$0xff] %v411
    %573 = vst [vmem:[#allocation2 + $0x108] sm:$0xff] %v413
    %574 = vst [vmem:[#allocation2 + $0x110] sm:$0xff] %v524
    %575 = vst [vmem:[#allocation2 + $0x118] sm:$0xff] %v526
    %576 = vst [vmem:[#allocation2 + $0x120] sm:$0xff] %v304
    %577 = vst [vmem:[#allocation2 + $0x128] sm:$0xff] %v306
    %578 = vst [vmem:[#allocation2 + $0x130] sm:$0xff] %v417
    %579 = vst [vmem:[#allocation2 + $0x138] sm:$0xff] %v419
    %580 = vst [vmem:[#allocation2 + $0x140] sm:$0xff] %v530
    %581 = vst [vmem:[#allocation2 + $0x148] sm:$0xff] %v532
    %582 = vst [vmem:[#allocation2 + $0x150] sm:$0xff] %v310
    %583 = vst [vmem:[#allocation2 + $0x158] sm:$0xff] %v312
    %584 = vst [vmem:[#allocation2 + $0x160] sm:$0xff] %v423
    %585 = vst [vmem:[#allocation2 + $0x168] sm:$0xff] %v425
    %586 = vst [vmem:[#allocation2 + $0x170] sm:$0xff] %v536
    %587 = vst [vmem:[#allocation2 + $0x178] sm:$0xff] %v538
    %588 = vst [vmem:[#allocation3] sm:$0xff] 0.0
    %589 = vst [vmem:[#allocation3 + $0x8] sm:$0xff] 0.0
    %v590 = vld [vmem:[%s1] sm:$0xff]
    %v591 = vlaneseq
    %v592 = vshrl.u32 %v591, 7
    %v593 = vadd.s32 %v592, 8
    %vm594 = vcmp.lt.s32.totalorder %v592, 8
    %vm595 = vcmp.lt.s32.totalorder %v593, 8
    %v596 = vsel %vm594, 1, 0
    %v597 = vsel %vm595, 1, 0
    %v598 = vcvt.s32.f32 %v596
    %v599 = vcvt.s32.f32 %v597
    %v600 = vsub.f32 1.0, %v598
    %v601 = vsub.f32 1.0, %v599
    %v602 = vld [vmem:[%s5] sm:$0x1]
    %v604 = vlaneseq
    %v605 = vshrl.u32 %v604, 7
    %v606 = vsub.s32 0, %v605
    %v607 = vrot.slane %v602, %v606
    %v609 = vld [vmem:[%s5 + $0x1] sm:$0x1]
    %v611 = vlaneseq
    %v612 = vshrl.u32 %v611, 7
    %v613 = vsub.s32 0, %v612
    %v614 = vrot.slane %v609, %v613
    %s616 = smul.u32 0, 6
    %s617 = smul.addr %s616, 8
    %s618 = scalar_lea.vmem [#allocation2], %s617
    %v619 = vld [vmem:[%s618] sm:$0xff]
    %v620 = vld [vmem:[%s618 + $0x8] sm:$0xff]
    %v621 = vld [vmem:[%s618 + $0x10] sm:$0xff]
    %s622 = smul.u32 7, 6
    %s623 = smul.addr %s622, 8
    %s624 = scalar_lea.vmem [#allocation2], %s623
    %v625 = vld [vmem:[%s624 + $0x18] sm:$0xff]
    %v626 = vld [vmem:[%s624 + $0x20] sm:$0xff]
    %v627 = vld [vmem:[%s624 + $0x28] sm:$0xff]
    %v628 = vld [vmem:[#allocation3] sm:$0xff]
    %v629 = vld [vmem:[#allocation3 + $0x8] sm:$0xff]
    %v630 = vmul.f32 %v628, %v598
    %v631 = vmul.f32 %v629, %v599
    %v632 = vmul.f32 %v628, %v600
    %v633 = vmul.f32 %v629, %v601
    %v634 = vsel %vm594, 0, 7
    %v635 = vsel %vm595, 0, 7
    %vm636 = vcmp.lt.s32.totalorder %v634, %v590
    %vm637 = vcmp.lt.s32.totalorder %v635, %v590
    %v638 = vld [vmem:[#allocation10] sm:$0xff]
    %v639 = vld [vmem:[#allocation10 + $0x8] sm:$0xff]
    %v640 = vld [vmem:[#allocation10 + $0x10] sm:$0xff]
    %v641 = vld [vmem:[#allocation10 + $0x18] sm:$0xff]
    %v642 = vld [vmem:[#allocation10 + $0x20] sm:$0xff]
    %v643 = vld [vmem:[#allocation10 + $0x28] sm:$0xff]
    %v644 = vld [vmem:[#allocation10 + $0x30] sm:$0xff]
    %v645 = vld [vmem:[#allocation10 + $0x38] sm:$0xff]
    %v646 = vld [vmem:[#allocation10 + $0x40] sm:$0xff]
    %v647 = vld [vmem:[#allocation10 + $0x48] sm:$0xff]
    %v648 = vld [vmem:[#allocation10 + $0x50] sm:$0xff]
    %v649 = vld [vmem:[#allocation10 + $0x58] sm:$0xff]
    %v650 = vld [vmem:[#allocation10 + $0x60] sm:$0xff]
    %v651 = vld [vmem:[#allocation10 + $0x68] sm:$0xff]
    %v652 = vld [vmem:[#allocation10 + $0x70] sm:$0xff]
    %v653 = vld [vmem:[#allocation10 + $0x78] sm:$0xff]
    %v654 = vld [vmem:[#allocation10 + $0x80] sm:$0xff]
    %v655 = vld [vmem:[#allocation10 + $0x88] sm:$0xff]
    %v656 = vld [vmem:[#allocation10 + $0x90] sm:$0xff]
    %v657 = vld [vmem:[#allocation10 + $0x98] sm:$0xff]
    %v658 = vld [vmem:[#allocation10 + $0xa0] sm:$0xff]
    %v659 = vld [vmem:[#allocation10 + $0xa8] sm:$0xff]
    %v660 = vld [vmem:[#allocation10 + $0xb0] sm:$0xff]
    %v661 = vld [vmem:[#allocation10 + $0xb8] sm:$0xff]
    %v662 = vld [vmem:[#allocation10 + $0xc0] sm:$0xff]
    %v663 = vld [vmem:[#allocation10 + $0xc8] sm:$0xff]
    %v664 = vld [vmem:[#allocation10 + $0xd0] sm:$0xff]
    %v665 = vld [vmem:[#allocation10 + $0xd8] sm:$0xff]
    %v666 = vld [vmem:[#allocation10 + $0xe0] sm:$0xff]
    %v667 = vld [vmem:[#allocation10 + $0xe8] sm:$0xff]
    %v668 = vld [vmem:[#allocation10 + $0xf0] sm:$0xff]
    %v669 = vld [vmem:[#allocation10 + $0xf8] sm:$0xff]
    %v670 = vld [vmem:[#allocation10 + $0x100] sm:$0xff]
    %v671 = vld [vmem:[#allocation10 + $0x108] sm:$0xff]
    %v672 = vld [vmem:[#allocation10 + $0x110] sm:$0xff]
    %v673 = vld [vmem:[#allocation10 + $0x118] sm:$0xff]
    %v674 = vld [vmem:[#allocation10 + $0x120] sm:$0xff]
    %v675 = vld [vmem:[#allocation10 + $0x128] sm:$0xff]
    %v676 = vld [vmem:[#allocation10 + $0x130] sm:$0xff]
    %v677 = vld [vmem:[#allocation10 + $0x138] sm:$0xff]
    %v678 = vld [vmem:[#allocation10 + $0x140] sm:$0xff]
    %v679 = vld [vmem:[#allocation10 + $0x148] sm:$0xff]
    %v680 = vld [vmem:[#allocation10 + $0x150] sm:$0xff]
    %v681 = vld [vmem:[#allocation10 + $0x158] sm:$0xff]
    %v682 = vld [vmem:[#allocation10 + $0x160] sm:$0xff]
    %v683 = vld [vmem:[#allocation10 + $0x168] sm:$0xff]
    %v684 = vld [vmem:[#allocation10 + $0x170] sm:$0xff]
    %v685 = vld [vmem:[#allocation10 + $0x178] sm:$0xff]
    %v686 = vld [vmem:[#allocation10 + $0x180] sm:$0xff]
    %v687 = vld [vmem:[#allocation10 + $0x188] sm:$0xff]
    %v688 = vld [vmem:[#allocation10 + $0x190] sm:$0xff]
    %v689 = vld [vmem:[#allocation10 + $0x198] sm:$0xff]
    %v690 = vld [vmem:[#allocation10 + $0x1a0] sm:$0xff]
    %v691 = vld [vmem:[#allocation10 + $0x1a8] sm:$0xff]
    %v692 = vld [vmem:[#allocation10 + $0x1b0] sm:$0xff]
    %v693 = vld [vmem:[#allocation10 + $0x1b8] sm:$0xff]
    %v694 = vld [vmem:[#allocation10 + $0x1c0] sm:$0xff]
    %v695 = vld [vmem:[#allocation10 + $0x1c8] sm:$0xff]
    %v696 = vld [vmem:[#allocation10 + $0x1d0] sm:$0xff]
    %v697 = vld [vmem:[#allocation10 + $0x1d8] sm:$0xff]
    %v698 = vld [vmem:[#allocation10 + $0x1e0] sm:$0xff]
    %v699 = vld [vmem:[#allocation10 + $0x1e8] sm:$0xff]
    %v700 = vld [vmem:[#allocation10 + $0x1f0] sm:$0xff]
    %v701 = vld [vmem:[#allocation10 + $0x1f8] sm:$0xff]
    %v702 = vld [vmem:[#allocation10 + $0x200] sm:$0xff]
    %v703 = vld [vmem:[#allocation10 + $0x208] sm:$0xff]
    %v704 = vld [vmem:[#allocation10 + $0x210] sm:$0xff]
    %v705 = vld [vmem:[#allocation10 + $0x218] sm:$0xff]
    %v706 = vld [vmem:[#allocation10 + $0x220] sm:$0xff]
    %v707 = vld [vmem:[#allocation10 + $0x228] sm:$0xff]
    %v708 = vld [vmem:[#allocation10 + $0x230] sm:$0xff]
    %v709 = vld [vmem:[#allocation10 + $0x238] sm:$0xff]
    %v710 = vld [vmem:[#allocation10 + $0x240] sm:$0xff]
    %v711 = vld [vmem:[#allocation10 + $0x248] sm:$0xff]
    %v712 = vld [vmem:[#allocation10 + $0x250] sm:$0xff]
    %v713 = vld [vmem:[#allocation10 + $0x258] sm:$0xff]
    %v714 = vld [vmem:[#allocation10 + $0x260] sm:$0xff]
    %v715 = vld [vmem:[#allocation10 + $0x268] sm:$0xff]
    %v716 = vld [vmem:[#allocation10 + $0x270] sm:$0xff]
    %v717 = vld [vmem:[#allocation10 + $0x278] sm:$0xff]
    %v718 = vld [vmem:[#allocation10 + $0x280] sm:$0xff]
    %v719 = vld [vmem:[#allocation10 + $0x288] sm:$0xff]
    %v720 = vld [vmem:[#allocation10 + $0x290] sm:$0xff]
    %v721 = vld [vmem:[#allocation10 + $0x298] sm:$0xff]
    %v722 = vld [vmem:[#allocation10 + $0x2a0] sm:$0xff]
    %v723 = vld [vmem:[#allocation10 + $0x2a8] sm:$0xff]
    %v724 = vld [vmem:[#allocation10 + $0x2b0] sm:$0xff]
    %v725 = vld [vmem:[#allocation10 + $0x2b8] sm:$0xff]
    %v726 = vld [vmem:[#allocation10 + $0x2c0] sm:$0xff]
    %v727 = vld [vmem:[#allocation10 + $0x2c8] sm:$0xff]
    %v728 = vld [vmem:[#allocation10 + $0x2d0] sm:$0xff]
    %v729 = vld [vmem:[#allocation10 + $0x2d8] sm:$0xff]
    %v730 = vld [vmem:[#allocation10 + $0x2e0] sm:$0xff]
    %v731 = vld [vmem:[#allocation10 + $0x2e8] sm:$0xff]
    %v732 = vld [vmem:[#allocation10 + $0x2f0] sm:$0xff]
    %v733 = vld [vmem:[#allocation10 + $0x2f8] sm:$0xff]
    %734 = vmatprep.subr.mxu0 %v684
    %735 = vmatpush1.msra.mxu0 %v683
    %736 = vmatprep.subr.mxu0 %v681
    %737 = vmatpush1.msra.mxu0 %v680
    %738 = vmatprep.subr.mxu0 %v678
    %739 = vmatpush1.msra.mxu0 %v677
    %740 = vmatprep.subr.mxu0 %v675
    %741 = vmatpush1.msra.mxu0 %v674
    %742 = vmatprep.subr.mxu0 %v672
    %743 = vmatpush1.msra.mxu0 %v671
    %744 = vmatprep.subr.mxu0 %v669
    %745 = vmatpush1.msra.mxu0 %v668
    %746 = vmatprep.subr.mxu0 %v666
    %747 = vmatpush1.msra.mxu0 %v665
    %748 = vmatprep.subr.mxu0 %v663
    %749 = vmatpush1.msra.mxu0 %v662
    %750 = vmatprep.subr.mxu0 %v660
    %751 = vmatpush1.msra.mxu0 %v659
    %752 = vmatprep.subr.mxu0 %v657
    %753 = vmatpush1.msra.mxu0 %v656
    %754 = vmatprep.subr.mxu0 %v654
    %755 = vmatpush1.msra.mxu0 %v653
    %756 = vmatprep.subr.mxu0 %v651
    %757 = vmatpush1.msra.mxu0 %v650
    %758 = vmatprep.subr.mxu0 %v648
    %759 = vmatpush1.msra.mxu0 %v647
    %760 = vmatprep.subr.mxu0 %v645
    %761 = vmatpush1.msra.mxu0 %v644
    %762 = vmatprep.subr.mxu0 %v642
    %763 = vmatpush1.msra.mxu0 %v641
    %764 = vmatprep.subr.mxu0 %v639
    %765 = vmatpush1.msra.mxu0 %v638
    %766 = vmatprep.subr.mxu0 %v732
    %767 = vmatpush2.msra.mxu0 %v731
    %768 = vmatprep.subr.mxu0 %v729
    %769 = vmatpush2.msra.mxu0 %v728
    %770 = vmatprep.subr.mxu0 %v726
    %771 = vmatpush2.msra.mxu0 %v725
    %772 = vmatprep.subr.mxu0 %v723
    %773 = vmatpush2.msra.mxu0 %v722
    %774 = vmatprep.subr.mxu0 %v720
    %775 = vmatpush2.msra.mxu0 %v719
    %776 = vmatprep.subr.mxu0 %v717
    %777 = vmatpush2.msra.mxu0 %v716
    %778 = vmatprep.subr.mxu0 %v714
    %779 = vmatpush2.msra.mxu0 %v713
    %780 = vmatprep.subr.mxu0 %v711
    %781 = vmatpush2.msra.mxu0 %v710
    %782 = vmatprep.subr.mxu0 %v708
    %783 = vmatpush2.msra.mxu0 %v707
    %784 = vmatprep.subr.mxu0 %v705
    %785 = vmatpush2.msra.mxu0 %v704
    %786 = vmatprep.subr.mxu0 %v702
    %787 = vmatpush2.msra.mxu0 %v701
    %788 = vmatprep.subr.mxu0 %v699
    %789 = vmatpush2.msra.mxu0 %v698
    %790 = vmatprep.subr.mxu0 %v696
    %791 = vmatpush2.msra.mxu0 %v695
    %792 = vmatprep.subr.mxu0 %v693
    %793 = vmatpush2.msra.mxu0 %v692
    %794 = vmatprep.subr.mxu0 %v690
    %795 = vmatpush2.msra.mxu0 %v689
    %796 = vmatprep.subr.mxu0 %v687
    %797 = vmatpush2.msra.mxu0 %v686
    %798 = vmatprep.mubr.f32.mxu0 %v632
    %799 = vmatmul.mubr.f32.gmra.mxu0 %v630
    %v800 = vpop.f32.mrf.mxu0
    %v801 = vadd.f32 0.0, %v800
    %v802 = vpop.f32.mrf.mxu0
    %v803 = vadd.f32 0.0, %v802
    %804 = vmatprep.mubr.f32.mxu0 %v633
    %805 = vmatmul.mubr.f32.gmra.mxu0 %v631
    %v806 = vpop.f32.mrf.mxu0
    %v807 = vadd.f32 0.0, %v806
    %v808 = vpop.f32.mrf.mxu0
    %v809 = vadd.f32 0.0, %v808
    %810 = vdwg.mxu0
    %811 = vmatprep.subr.mxu0 0.0
    %812 = vmatpush1.msra.mxu0 %v685
    %813 = vmatprep.subr.mxu0 0.0
    %814 = vmatpush1.msra.mxu0 %v682
    %815 = vmatprep.subr.mxu0 0.0
    %816 = vmatpush1.msra.mxu0 %v679
    %817 = vmatprep.subr.mxu0 0.0
    %818 = vmatpush1.msra.mxu0 %v676
    %819 = vmatprep.subr.mxu0 0.0
    %820 = vmatpush1.msra.mxu0 %v673
    %821 = vmatprep.subr.mxu0 0.0
    %822 = vmatpush1.msra.mxu0 %v670
    %823 = vmatprep.subr.mxu0 0.0
    %824 = vmatpush1.msra.mxu0 %v667
    %825 = vmatprep.subr.mxu0 0.0
    %826 = vmatpush1.msra.mxu0 %v664
    %827 = vmatprep.subr.mxu0 0.0
    %828 = vmatpush1.msra.mxu0 %v661
    %829 = vmatprep.subr.mxu0 0.0
    %830 = vmatpush1.msra.mxu0 %v658
    %831 = vmatprep.subr.mxu0 0.0
    %832 = vmatpush1.msra.mxu0 %v655
    %833 = vmatprep.subr.mxu0 0.0
    %834 = vmatpush1.msra.mxu0 %v652
    %835 = vmatprep.subr.mxu0 0.0
    %836 = vmatpush1.msra.mxu0 %v649
    %837 = vmatprep.subr.mxu0 0.0
    %838 = vmatpush1.msra.mxu0 %v646
    %839 = vmatprep.subr.mxu0 0.0
    %840 = vmatpush1.msra.mxu0 %v643
    %841 = vmatprep.subr.mxu0 0.0
    %842 = vmatpush1.msra.mxu0 %v640
    %843 = vmatprep.subr.mxu0 0.0
    %844 = vmatpush2.msra.mxu0 %v733
    %845 = vmatprep.subr.mxu0 0.0
    %846 = vmatpush2.msra.mxu0 %v730
    %847 = vmatprep.subr.mxu0 0.0
    %848 = vmatpush2.msra.mxu0 %v727
    %849 = vmatprep.subr.mxu0 0.0
    %850 = vmatpush2.msra.mxu0 %v724
    %851 = vmatprep.subr.mxu0 0.0
    %852 = vmatpush2.msra.mxu0 %v721
    %853 = vmatprep.subr.mxu0 0.0
    %854 = vmatpush2.msra.mxu0 %v718
    %855 = vmatprep.subr.mxu0 0.0
    %856 = vmatpush2.msra.mxu0 %v715
    %857 = vmatprep.subr.mxu0 0.0
    %858 = vmatpush2.msra.mxu0 %v712
    %859 = vmatprep.subr.mxu0 0.0
    %860 = vmatpush2.msra.mxu0 %v709
    %861 = vmatprep.subr.mxu0 0.0
    %862 = vmatpush2.msra.mxu0 %v706
    %863 = vmatprep.subr.mxu0 0.0
    %864 = vmatpush2.msra.mxu0 %v703
    %865 = vmatprep.subr.mxu0 0.0
    %866 = vmatpush2.msra.mxu0 %v700
    %867 = vmatprep.subr.mxu0 0.0
    %868 = vmatpush2.msra.mxu0 %v697
    %869 = vmatprep.subr.mxu0 0.0
    %870 = vmatpush2.msra.mxu0 %v694
    %871 = vmatprep.subr.mxu0 0.0
    %872 = vmatpush2.msra.mxu0 %v691
    %873 = vmatprep.subr.mxu0 0.0
    %874 = vmatpush2.msra.mxu0 %v688
    %875 = vmatprep.mubr.f32.mxu0 %v632
    %876 = vmatmul.mubr.f32.gmra.mxu0 %v630
    %v877 = vpop.f32.mrf.mxu0
    %v878 = vadd.f32 0.0, %v877
    %v879 = vpop.f32.mrf.mxu0
    %880 = vmatprep.mubr.f32.mxu0 %v633
    %881 = vmatmul.mubr.f32.gmra.mxu0 %v631
    %v882 = vpop.f32.mrf.mxu0
    %v883 = vadd.f32 0.0, %v882
    %v884 = vpop.f32.mrf.mxu0
    %885 = vdwg.mxu0
    %v886 = vadd.f32 %v619, %v801
    %v887 = vadd.f32 %v625, %v807
    %v888 = vxor.u32 %v886, 2147483648
    %v889 = vxor.u32 %v887, 2147483648
    %v890 = vmul.f32 %v888, 1.442695
    %v891 = vpow.pop %v890
    %v892 = vmul.f32 %v889, 1.442695
    %v893 = vpow.pop %v892
    %v894 = vadd.f32 %v891, 1.0
    %v895 = vadd.f32 %v893, 1.0
    %v896 = vrcp.pop %v894
    %v897 = vmul.f32 1.0, %v896
    %v898 = vrcp.pop %v895
    %v899 = vmul.f32 1.0, %v898
    %v900 = vadd.f32 %v620, %v803
    %v901 = vadd.f32 %v626, %v809
    %v902 = vxor.u32 %v900, 2147483648
    %v903 = vxor.u32 %v901, 2147483648
    %v904 = vmul.f32 %v902, 1.442695
    %v905 = vpow.pop %v904
    %v906 = vmul.f32 %v903, 1.442695
    %v907 = vpow.pop %v906
    %v908 = vadd.f32 %v905, 1.0
    %v909 = vadd.f32 %v907, 1.0
    %v910 = vrcp.pop %v908
    %v911 = vmul.f32 1.0, %v910
    %v912 = vrcp.pop %v909
    %v913 = vmul.f32 1.0, %v912
    %v914 = vadd.f32 %v878, %v607
    %v915 = vadd.f32 %v883, %v614
    %v916 = vmul.f32 %v897, %v914
    %v917 = vmul.f32 %v899, %v915
    %v918 = vadd.f32 %v621, %v916
    %v919 = vadd.f32 %v627, %v917
    %v920 = vtanh.pop %v918
    %v921 = vtanh.pop %v919
    %v922 = vsub.f32 1.0, %v911
    %v923 = vsub.f32 1.0, %v913
    %v924 = vmul.f32 %v922, %v920
    %v925 = vmul.f32 %v923, %v921
    %v926 = vmul.f32 %v911, %v628
    %v927 = vmul.f32 %v913, %v629
    %v928 = vadd.f32 %v924, %v926
    %v929 = vadd.f32 %v925, %v927
    %v930 = vsel %vm636, 1, 0
    %v931 = vsel %vm637, 1, 0
    %932 = vset.pattern.permute.xlu0 0
    %933 = vperm.xlu0 %932, %v930
    %v934 = vpop.permute.xlu0 %933
    %935 = vset.pattern.permute.xlu0 0
    %936 = vperm.xlu0 %935, %v931
    %v937 = vpop.permute.xlu0 %936
    %vm938 = vcmp.eq.s32.totalorder %v934, 1
    %vm939 = vcmp.eq.s32.totalorder %v937, 1
    %v940 = vsel %vm938, %v928, %v628
    %v941 = vsel %vm939, %v929, %v629
    %942 = vst [vmem:[#allocation3] sm:$0xff] %v940
    %943 = vst [vmem:[#allocation3 + $0x8] sm:$0xff] %v941
    %v944 = vsel %vm938, %v928, 0.0
    %v945 = vsel %vm939, %v929, 0.0
    %946 = vst [vmem:[#allocation4] sm:$0xff] %v944
    %s947 = scalar_lea.vmem [#allocation4], 112
    %948 = vst [vmem:[%s947 + $0x8] sm:$0xff] %v945
    %s949 = smul.u32 1, 6
    %s950 = smul.addr %s949, 8
    %s951 = scalar_lea.vmem [#allocation2], %s950
    %v952 = vld [vmem:[%s951] sm:$0xff]
    %v953 = vld [vmem:[%s951 + $0x8] sm:$0xff]
    %v954 = vld [vmem:[%s951 + $0x10] sm:$0xff]
    %s955 = smul.u32 6, 6
    %s956 = smul.addr %s955, 8
    %s957 = scalar_lea.vmem [#allocation2], %s956
    %v958 = vld [vmem:[%s957 + $0x18] sm:$0xff]
    %v959 = vld [vmem:[%s957 + $0x20] sm:$0xff]
    %v960 = vld [vmem:[%s957 + $0x28] sm:$0xff]
    %v961 = vld [vmem:[#allocation3] sm:$0xff]
    %v962 = vld [vmem:[#allocation3 + $0x8] sm:$0xff]
    %v963 = vmul.f32 %v961, %v598
    %v964 = vmul.f32 %v962, %v599
    %v965 = vmul.f32 %v961, %v600
    %v966 = vmul.f32 %v962, %v601
    %v967 = vsel %vm594, 1, 6
    %v968 = vsel %vm595, 1, 6
    %vm969 = vcmp.lt.s32.totalorder %v967, %v590
    %vm970 = vcmp.lt.s32.totalorder %v968, %v590
    %v971 = vld [vmem:[#allocation10] sm:$0xff]
    %v972 = vld [vmem:[#allocation10 + $0x8] sm:$0xff]
    %v973 = vld [vmem:[#allocation10 + $0x10] sm:$0xff]
    %v974 = vld [vmem:[#allocation10 + $0x18] sm:$0xff]
    %v975 = vld [vmem:[#allocation10 + $0x20] sm:$0xff]
    %v976 = vld [vmem:[#allocation10 + $0x28] sm:$0xff]
    %v977 = vld [vmem:[#allocation10 + $0x30] sm:$0xff]
    %v978 = vld [vmem:[#allocation10 + $0x38] sm:$0xff]
    %v979 = vld [vmem:[#allocation10 + $0x40] sm:$0xff]
    %v980 = vld [vmem:[#allocation10 + $0x48] sm:$0xff]
    %v981 = vld [vmem:[#allocation10 + $0x50] sm:$0xff]
    %v982 = vld [vmem:[#allocation10 + $0x58] sm:$0xff]
    %v983 = vld [vmem:[#allocation10 + $0x60] sm:$0xff]
    %v984 = vld [vmem:[#allocation10 + $0x68] sm:$0xff]
    %v985 = vld [vmem:[#allocation10 + $0x70] sm:$0xff]
    %v986 = vld [vmem:[#allocation10 + $0x78] sm:$0xff]
    %v987 = vld [vmem:[#allocation10 + $0x80] sm:$0xff]
    %v988 = vld [vmem:[#allocation10 + $0x88] sm:$0xff]
    %v989 = vld [vmem:[#allocation10 + $0x90] sm:$0xff]
    %v990 = vld [vmem:[#allocation10 + $0x98] sm:$0xff]
    %v991 = vld [vmem:[#allocation10 + $0xa0] sm:$0xff]
    %v992 = vld [vmem:[#allocation10 + $0xa8] sm:$0xff]
    %v993 = vld [vmem:[#allocation10 + $0xb0] sm:$0xff]
    %v994 = vld [vmem:[#allocation10 + $0xb8] sm:$0xff]
    %v995 = vld [vmem:[#allocation10 + $0xc0] sm:$0xff]
    %v996 = vld [vmem:[#allocation10 + $0xc8] sm:$0xff]
    %v997 = vld [vmem:[#allocation10 + $0xd0] sm:$0xff]
    %v998 = vld [vmem:[#allocation10 + $0xd8] sm:$0xff]
    %v999 = vld [vmem:[#allocation10 + $0xe0] sm:$0xff]
    %v1000 = vld [vmem:[#allocation10 + $0xe8] sm:$0xff]
    %v1001 = vld [vmem:[#allocation10 + $0xf0] sm:$0xff]
    %v1002 = vld [vmem:[#allocation10 + $0xf8] sm:$0xff]
    %v1003 = vld [vmem:[#allocation10 + $0x100] sm:$0xff]
    %v1004 = vld [vmem:[#allocation10 + $0x108] sm:$0xff]
    %v1005 = vld [vmem:[#allocation10 + $0x110] sm:$0xff]
    %v1006 = vld [vmem:[#allocation10 + $0x118] sm:$0xff]
    %v1007 = vld [vmem:[#allocation10 + $0x120] sm:$0xff]
    %v1008 = vld [vmem:[#allocation10 + $0x128] sm:$0xff]
    %v1009 = vld [vmem:[#allocation10 + $0x130] sm:$0xff]
    %v1010 = vld [vmem:[#allocation10 + $0x138] sm:$0xff]
    %v1011 = vld [vmem:[#allocation10 + $0x140] sm:$0xff]
    %v1012 = vld [vmem:[#allocation10 + $0x148] sm:$0xff]
    %v1013 = vld [vmem:[#allocation10 + $0x150] sm:$0xff]
    %v1014 = vld [vmem:[#allocation10 + $0x158] sm:$0xff]
    %v1015 = vld [vmem:[#allocation10 + $0x160] sm:$0xff]
    %v1016 = vld [vmem:[#allocation10 + $0x168] sm:$0xff]
    %v1017 = vld [vmem:[#allocation10 + $0x170] sm:$0xff]
    %v1018 = vld [vmem:[#allocation10 + $0x178] sm:$0xff]
    %v1019 = vld [vmem:[#allocation10 + $0x180] sm:$0xff]
    %v1020 = vld [vmem:[#allocation10 + $0x188] sm:$0xff]
    %v1021 = vld [vmem:[#allocation10 + $0x190] sm:$0xff]
    %v1022 = vld [vmem:[#allocation10 + $0x198] sm:$0xff]
    %v1023 = vld [vmem:[#allocation10 + $0x1a0] sm:$0xff]
    %v1024 = vld [vmem:[#allocation10 + $0x1a8] sm:$0xff]
    %v1025 = vld [vmem:[#allocation10 + $0x1b0] sm:$0xff]
    %v1026 = vld [vmem:[#allocation10 + $0x1b8] sm:$0xff]
    %v1027 = vld [vmem:[#allocation10 + $0x1c0] sm:$0xff]
    %v1028 = vld [vmem:[#allocation10 + $0x1c8] sm:$0xff]
    %v1029 = vld [vmem:[#allocation10 + $0x1d0] sm:$0xff]
    %v1030 = vld [vmem:[#allocation10 + $0x1d8] sm:$0xff]
    %v1031 = vld [vmem:[#allocation10 + $0x1e0] sm:$0xff]
    %v1032 = vld [vmem:[#allocation10 + $0x1e8] sm:$0xff]
    %v1033 = vld [vmem:[#allocation10 + $0x1f0] sm:$0xff]
    %v1034 = vld [vmem:[#allocation10 + $0x1f8] sm:$0xff]
    %v1035 = vld [vmem:[#allocation10 + $0x200] sm:$0xff]
    %v1036 = vld [vmem:[#allocation10 + $0x208] sm:$0xff]
    %v1037 = vld [vmem:[#allocation10 + $0x210] sm:$0xff]
    %v1038 = vld [vmem:[#allocation10 + $0x218] sm:$0xff]
    %v1039 = vld [vmem:[#allocation10 + $0x220] sm:$0xff]
    %v1040 = vld [vmem:[#allocation10 + $0x228] sm:$0xff]
    %v1041 = vld [vmem:[#allocation10 + $0x230] sm:$0xff]
    %v1042 = vld [vmem:[#allocation10 + $0x238] sm:$0xff]
    %v1043 = vld [vmem:[#allocation10 + $0x240] sm:$0xff]
    %v1044 = vld [vmem:[#allocation10 + $0x248] sm:$0xff]
    %v1045 = vld [vmem:[#allocation10 + $0x250] sm:$0xff]
    %v1046 = vld [vmem:[#allocation10 + $0x258] sm:$0xff]
    %v1047 = vld [vmem:[#allocation10 + $0x260] sm:$0xff]
    %v1048 = vld [vmem:[#allocation10 + $0x268] sm:$0xff]
    %v1049 = vld [vmem:[#allocation10 + $0x270] sm:$0xff]
    %v1050 = vld [vmem:[#allocation10 + $0x278] sm:$0xff]
    %v1051 = vld [vmem:[#allocation10 + $0x280] sm:$0xff]
    %v1052 = vld [vmem:[#allocation10 + $0x288] sm:$0xff]
    %v1053 = vld [vmem:[#allocation10 + $0x290] sm:$0xff]
    %v1054 = vld [vmem:[#allocation10 + $0x298] sm:$0xff]
    %v1055 = vld [vmem:[#allocation10 + $0x2a0] sm:$0xff]
    %v1056 = vld [vmem:[#allocation10 + $0x2a8] sm:$0xff]
    %v1057 = vld [vmem:[#allocation10 + $0x2b0] sm:$0xff]
    %v1058 = vld [vmem:[#allocation10 + $0x2b8] sm:$0xff]
    %v1059 = vld [vmem:[#allocation10 + $0x2c0] sm:$0xff]
    %v1060 = vld [vmem:[#allocation10 + $0x2c8] sm:$0xff]
    %v1061 = vld [vmem:[#allocation10 + $0x2d0] sm:$0xff]
    %v1062 = vld [vmem:[#allocation10 + $0x2d8] sm:$0xff]
    %v1063 = vld [vmem:[#allocation10 + $0x2e0] sm:$0xff]
    %v1064 = vld [vmem:[#allocation10 + $0x2e8] sm:$0xff]
    %v1065 = vld [vmem:[#allocation10 + $0x2f0] sm:$0xff]
    %v1066 = vld [vmem:[#allocation10 + $0x2f8] sm:$0xff]
    %1067 = vmatprep.subr.mxu0 %v1017
    %1068 = vmatpush1.msra.mxu0 %v1016
    %1069 = vmatprep.subr.mxu0 %v1014
    %1070 = vmatpush1.msra.mxu0 %v1013
    %1071 = vmatprep.subr.mxu0 %v1011
    %1072 = vmatpush1.msra.mxu0 %v1010
    %1073 = vmatprep.subr.mxu0 %v1008
    %1074 = vmatpush1.msra.mxu0 %v1007
    %1075 = vmatprep.subr.mxu0 %v1005
    %1076 = vmatpush1.msra.mxu0 %v1004
    %1077 = vmatprep.subr.mxu0 %v1002
    %1078 = vmatpush1.msra.mxu0 %v1001
    %1079 = vmatprep.subr.mxu0 %v999
    %1080 = vmatpush1.msra.mxu0 %v998
    %1081 = vmatprep.subr.mxu0 %v996
    %1082 = vmatpush1.msra.mxu0 %v995
    %1083 = vmatprep.subr.mxu0 %v993
    %1084 = vmatpush1.msra.mxu0 %v992
    %1085 = vmatprep.subr.mxu0 %v990
    %1086 = vmatpush1.msra.mxu0 %v989
    %1087 = vmatprep.subr.mxu0 %v987
    %1088 = vmatpush1.msra.mxu0 %v986
    %1089 = vmatprep.subr.mxu0 %v984
    %1090 = vmatpush1.msra.mxu0 %v983
    %1091 = vmatprep.subr.mxu0 %v981
    %1092 = vmatpush1.msra.mxu0 %v980
    %1093 = vmatprep.subr.mxu0 %v978
    %1094 = vmatpush1.msra.mxu0 %v977
    %1095 = vmatprep.subr.mxu0 %v975
    %1096 = vmatpush1.msra.mxu0 %v974
    %1097 = vmatprep.subr.mxu0 %v972
    %1098 = vmatpush1.msra.mxu0 %v971
    %1099 = vmatprep.subr.mxu0 %v1065
    %1100 = vmatpush2.msra.mxu0 %v1064
    %1101 = vmatprep.subr.mxu0 %v1062
    %1102 = vmatpush2.msra.mxu0 %v1061
    %1103 = vmatprep.subr.mxu0 %v1059
    %1104 = vmatpush2.msra.mxu0 %v1058
    %1105 = vmatprep.subr.mxu0 %v1056
    %1106 = vmatpush2.msra.mxu0 %v1055
    %1107 = vmatprep.subr.mxu0 %v1053
    %1108 = vmatpush2.msra.mxu0 %v1052
    %1109 = vmatprep.subr.mxu0 %v1050
    %1110 = vmatpush2.msra.mxu0 %v1049
    %1111 = vmatprep.subr.mxu0 %v1047
    %1112 = vmatpush2.msra.mxu0 %v1046
    %1113 = vmatprep.subr.mxu0 %v1044
    %1114 = vmatpush2.msra.mxu0 %v1043
    %1115 = vmatprep.subr.mxu0 %v1041
    %1116 = vmatpush2.msra.mxu0 %v1040
    %1117 = vmatprep.subr.mxu0 %v1038
    %1118 = vmatpush2.msra.mxu0 %v1037
    %1119 = vmatprep.subr.mxu0 %v1035
    %1120 = vmatpush2.msra.mxu0 %v1034
    %1121 = vmatprep.subr.mxu0 %v1032
    %1122 = vmatpush2.msra.mxu0 %v1031
    %1123 = vmatprep.subr.mxu0 %v1029
    %1124 = vmatpush2.msra.mxu0 %v1028
    %1125 = vmatprep.subr.mxu0 %v1026
    %1126 = vmatpush2.msra.mxu0 %v1025
    %1127 = vmatprep.subr.mxu0 %v1023
    %1128 = vmatpush2.msra.mxu0 %v1022
    %1129 = vmatprep.subr.mxu0 %v1020
    %1130 = vmatpush2.msra.mxu0 %v1019
    %1131 = vmatprep.mubr.f32.mxu0 %v965
    %1132 = vmatmul.mubr.f32.gmra.mxu0 %v963
    %v1133 = vpop.f32.mrf.mxu0
    %v1134 = vadd.f32 0.0, %v1133
    %v1135 = vpop.f32.mrf.mxu0
    %v1136 = vadd.f32 0.0, %v1135
    %1137 = vmatprep.mubr.f32.mxu0 %v966
    %1138 = vmatmul.mubr.f32.gmra.mxu0 %v964
    %v1139 = vpop.f32.mrf.mxu0
    %v1140 = vadd.f32 0.0, %v1139
    %v1141 = vpop.f32.mrf.mxu0
    %v1142 = vadd.f32 0.0, %v1141
    %1143 = vdwg.mxu0
    %1144 = vmatprep.subr.mxu0 0.0
    %1145 = vmatpush1.msra.mxu0 %v1018
    %1146 = vmatprep.subr.mxu0 0.0
    %1147 = vmatpush1.msra.mxu0 %v1015
    %1148 = vmatprep.subr.mxu0 0.0
    %1149 = vmatpush1.msra.mxu0 %v1012
    %1150 = vmatprep.subr.mxu0 0.0
    %1151 = vmatpush1.msra.mxu0 %v1009
    %1152 = vmatprep.subr.mxu0 0.0
    %1153 = vmatpush1.msra.mxu0 %v1006
    %1154 = vmatprep.subr.mxu0 0.0
    %1155 = vmatpush1.msra.mxu0 %v1003
    %1156 = vmatprep.subr.mxu0 0.0
    %1157 = vmatpush1.msra.mxu0 %v1000
    %1158 = vmatprep.subr.mxu0 0.0
    %1159 = vmatpush1.msra.mxu0 %v997
    %1160 = vmatprep.subr.mxu0 0.0
    %1161 = vmatpush1.msra.mxu0 %v994
    %1162 = vmatprep.subr.mxu0 0.0
    %1163 = vmatpush1.msra.mxu0 %v991
    %1164 = vmatprep.subr.mxu0 0.0
    %1165 = vmatpush1.msra.mxu0 %v988
    %1166 = vmatprep.subr.mxu0 0.0
    %1167 = vmatpush1.msra.mxu0 %v985
    %1168 = vmatprep.subr.mxu0 0.0
    %1169 = vmatpush1.msra.mxu0 %v982
    %1170 = vmatprep.subr.mxu0 0.0
    %1171 = vmatpush1.msra.mxu0 %v979
    %1172 = vmatprep.subr.mxu0 0.0
    %1173 = vmatpush1.msra.mxu0 %v976
    %1174 = vmatprep.subr.mxu0 0.0
    %1175 = vmatpush1.msra.mxu0 %v973
    %1176 = vmatprep.subr.mxu0 0.0
    %1177 = vmatpush2.msra.mxu0 %v1066
    %1178 = vmatprep.subr.mxu0 0.0
    %1179 = vmatpush2.msra.mxu0 %v1063
    %1180 = vmatprep.subr.mxu0 0.0
    %1181 = vmatpush2.msra.mxu0 %v1060
    %1182 = vmatprep.subr.mxu0 0.0
    %1183 = vmatpush2.msra.mxu0 %v1057
    %1184 = vmatprep.subr.mxu0 0.0
    %1185 = vmatpush2.msra.mxu0 %v1054
    %1186 = vmatprep.subr.mxu0 0.0
    %1187 = vmatpush2.msra.mxu0 %v1051
    %1188 = vmatprep.subr.mxu0 0.0
    %1189 = vmatpush2.msra.mxu0 %v1048
    %1190 = vmatprep.subr.mxu0 0.0
    %1191 = vmatpush2.msra.mxu0 %v1045
    %1192 = vmatprep.subr.mxu0 0.0
    %1193 = vmatpush2.msra.mxu0 %v1042
    %1194 = vmatprep.subr.mxu0 0.0
    %1195 = vmatpush2.msra.mxu0 %v1039
    %1196 = vmatprep.subr.mxu0 0.0
    %1197 = vmatpush2.msra.mxu0 %v1036
    %1198 = vmatprep.subr.mxu0 0.0
    %1199 = vmatpush2.msra.mxu0 %v1033
    %1200 = vmatprep.subr.mxu0 0.0
    %1201 = vmatpush2.msra.mxu0 %v1030
    %1202 = vmatprep.subr.mxu0 0.0
    %1203 = vmatpush2.msra.mxu0 %v1027
    %1204 = vmatprep.subr.mxu0 0.0
    %1205 = vmatpush2.msra.mxu0 %v1024
    %1206 = vmatprep.subr.mxu0 0.0
    %1207 = vmatpush2.msra.mxu0 %v1021
    %1208 = vmatprep.mubr.f32.mxu0 %v965
    %1209 = vmatmul.mubr.f32.gmra.mxu0 %v963
    %v1210 = vpop.f32.mrf.mxu0
    %v1211 = vadd.f32 0.0, %v1210
    %v1212 = vpop.f32.mrf.mxu0
    %1213 = vmatprep.mubr.f32.mxu0 %v966
    %1214 = vmatmul.mubr.f32.gmra.mxu0 %v964
    %v1215 = vpop.f32.mrf.mxu0
    %v1216 = vadd.f32 0.0, %v1215
    %v1217 = vpop.f32.mrf.mxu0
    %1218 = vdwg.mxu0
    %v1219 = vadd.f32 %v952, %v1134
    %v1220 = vadd.f32 %v958, %v1140
    %v1221 = vxor.u32 %v1219, 2147483648
    %v1222 = vxor.u32 %v1220, 2147483648
    %v1223 = vmul.f32 %v1221, 1.442695
    %v1224 = vpow.pop %v1223
    %v1225 = vmul.f32 %v1222, 1.442695
    %v1226 = vpow.pop %v1225
    %v1227 = vadd.f32 %v1224, 1.0
    %v1228 = vadd.f32 %v1226, 1.0
    %v1229 = vrcp.pop %v1227
    %v1230 = vmul.f32 1.0, %v1229
    %v1231 = vrcp.pop %v1228
    %v1232 = vmul.f32 1.0, %v1231
    %v1233 = vadd.f32 %v953, %v1136
    %v1234 = vadd.f32 %v959, %v1142
    %v1235 = vxor.u32 %v1233, 2147483648
    %v1236 = vxor.u32 %v1234, 2147483648
    %v1237 = vmul.f32 %v1235, 1.442695
    %v1238 = vpow.pop %v1237
    %v1239 = vmul.f32 %v1236, 1.442695
    %v1240 = vpow.pop %v1239
    %v1241 = vadd.f32 %v1238, 1.0
    %v1242 = vadd.f32 %v1240, 1.0
    %v1243 = vrcp.pop %v1241
    %v1244 = vmul.f32 1.0, %v1243
    %v1245 = vrcp.pop %v1242
    %v1246 = vmul.f32 1.0, %v1245
    %v1247 = vadd.f32 %v1211, %v607
    %v1248 = vadd.f32 %v1216, %v614
    %v1249 = vmul.f32 %v1230, %v1247
    %v1250 = vmul.f32 %v1232, %v1248
    %v1251 = vadd.f32 %v954, %v1249
    %v1252 = vadd.f32 %v960, %v1250
    %v1253 = vtanh.pop %v1251
    %v1254 = vtanh.pop %v1252
    %v1255 = vsub.f32 1.0, %v1244
    %v1256 = vsub.f32 1.0, %v1246
    %v1257 = vmul.f32 %v1255, %v1253
    %v1258 = vmul.f32 %v1256, %v1254
    %v1259 = vmul.f32 %v1244, %v961
    %v1260 = vmul.f32 %v1246, %v962
    %v1261 = vadd.f32 %v1257, %v1259
    %v1262 = vadd.f32 %v1258, %v1260
    %v1263 = vsel %vm969, 1, 0
    %v1264 = vsel %vm970, 1, 0
    %1265 = vset.pattern.permute.xlu0 0
    %1266 = vperm.xlu0 %1265, %v1263
    %v1267 = vpop.permute.xlu0 %1266
    %1268 = vset.pattern.permute.xlu0 0
    %1269 = vperm.xlu0 %1268, %v1264
    %v1270 = vpop.permute.xlu0 %1269
    %vm1271 = vcmp.eq.s32.totalorder %v1267, 1
    %vm1272 = vcmp.eq.s32.totalorder %v1270, 1
    %v1273 = vsel %vm1271, %v1261, %v961
    %v1274 = vsel %vm1272, %v1262, %v962
    %1275 = vst [vmem:[#allocation3] sm:$0xff] %v1273
    %1276 = vst [vmem:[#allocation3 + $0x8] sm:$0xff] %v1274
    %v1277 = vsel %vm1271, %v1261, 0.0
    %v1278 = vsel %vm1272, %v1262, 0.0
    %s1279 = scalar_lea.vmem [#allocation4], 16
    %1280 = vst [vmem:[%s1279] sm:$0xff] %v1277
    %s1281 = scalar_lea.vmem [#allocation4], 96
    %1282 = vst [vmem:[%s1281 + $0x8] sm:$0xff] %v1278
    %s1283 = smul.u32 2, 6
    %s1284 = smul.addr %s1283, 8
    %s1285 = scalar_lea.vmem [#allocation2], %s1284
    %v1286 = vld [vmem:[%s1285] sm:$0xff]
    %v1287 = vld [vmem:[%s1285 + $0x8] sm:$0xff]
    %v1288 = vld [vmem:[%s1285 + $0x10] sm:$0xff]
    %s1289 = smul.u32 5, 6
    %s1290 = smul.addr %s1289, 8
    %s1291 = scalar_lea.vmem [#allocation2], %s1290
    %v1292 = vld [vmem:[%s1291 + $0x18] sm:$0xff]
    %v1293 = vld [vmem:[%s1291 + $0x20] sm:$0xff]
    %v1294 = vld [vmem:[%s1291 + $0x28] sm:$0xff]
    %v1295 = vld [vmem:[#allocation3] sm:$0xff]
    %v1296 = vld [vmem:[#allocation3 + $0x8] sm:$0xff]
    %v1297 = vmul.f32 %v1295, %v598
    %v1298 = vmul.f32 %v1296, %v599
    %v1299 = vmul.f32 %v1295, %v600
    %v1300 = vmul.f32 %v1296, %v601
    %v1301 = vsel %vm594, 2, 5
    %v1302 = vsel %vm595, 2, 5
    %vm1303 = vcmp.lt.s32.totalorder %v1301, %v590
    %vm1304 = vcmp.lt.s32.totalorder %v1302, %v590
    %v1305 = vld [vmem:[#allocation10] sm:$0xff]
    %v1306 = vld [vmem:[#allocation10 + $0x8] sm:$0xff]
    %v1307 = vld [vmem:[#allocation10 + $0x10] sm:$0xff]
    %v1308 = vld [vmem:[#allocation10 + $0x18] sm:$0xff]
    %v1309 = vld [vmem:[#allocation10 + $0x20] sm:$0xff]
    %v1310 = vld [vmem:[#allocation10 + $0x28] sm:$0xff]
    %v1311 = vld [vmem:[#allocation10 + $0x30] sm:$0xff]
    %v1312 = vld [vmem:[#allocation10 + $0x38] sm:$0xff]
    %v1313 = vld [vmem:[#allocation10 + $0x40] sm:$0xff]
    %v1314 = vld [vmem:[#allocation10 + $0x48] sm:$0xff]
    %v1315 = vld [vmem:[#allocation10 + $0x50] sm:$0xff]
    %v1316 = vld [vmem:[#allocation10 + $0x58] sm:$0xff]
    %v1317 = vld [vmem:[#allocation10 + $0x60] sm:$0xff]
    %v1318 = vld [vmem:[#allocation10 + $0x68] sm:$0xff]
    %v1319 = vld [vmem:[#allocation10 + $0x70] sm:$0xff]
    %v1320 = vld [vmem:[#allocation10 + $0x78] sm:$0xff]
    %v1321 = vld [vmem:[#allocation10 + $0x80] sm:$0xff]
    %v1322 = vld [vmem:[#allocation10 + $0x88] sm:$0xff]
    %v1323 = vld [vmem:[#allocation10 + $0x90] sm:$0xff]
    %v1324 = vld [vmem:[#allocation10 + $0x98] sm:$0xff]
    %v1325 = vld [vmem:[#allocation10 + $0xa0] sm:$0xff]
    %v1326 = vld [vmem:[#allocation10 + $0xa8] sm:$0xff]
    %v1327 = vld [vmem:[#allocation10 + $0xb0] sm:$0xff]
    %v1328 = vld [vmem:[#allocation10 + $0xb8] sm:$0xff]
    %v1329 = vld [vmem:[#allocation10 + $0xc0] sm:$0xff]
    %v1330 = vld [vmem:[#allocation10 + $0xc8] sm:$0xff]
    %v1331 = vld [vmem:[#allocation10 + $0xd0] sm:$0xff]
    %v1332 = vld [vmem:[#allocation10 + $0xd8] sm:$0xff]
    %v1333 = vld [vmem:[#allocation10 + $0xe0] sm:$0xff]
    %v1334 = vld [vmem:[#allocation10 + $0xe8] sm:$0xff]
    %v1335 = vld [vmem:[#allocation10 + $0xf0] sm:$0xff]
    %v1336 = vld [vmem:[#allocation10 + $0xf8] sm:$0xff]
    %v1337 = vld [vmem:[#allocation10 + $0x100] sm:$0xff]
    %v1338 = vld [vmem:[#allocation10 + $0x108] sm:$0xff]
    %v1339 = vld [vmem:[#allocation10 + $0x110] sm:$0xff]
    %v1340 = vld [vmem:[#allocation10 + $0x118] sm:$0xff]
    %v1341 = vld [vmem:[#allocation10 + $0x120] sm:$0xff]
    %v1342 = vld [vmem:[#allocation10 + $0x128] sm:$0xff]
    %v1343 = vld [vmem:[#allocation10 + $0x130] sm:$0xff]
    %v1344 = vld [vmem:[#allocation10 + $0x138] sm:$0xff]
    %v1345 = vld [vmem:[#allocation10 + $0x140] sm:$0xff]
    %v1346 = vld [vmem:[#allocation10 + $0x148] sm:$0xff]
    %v1347 = vld [vmem:[#allocation10 + $0x150] sm:$0xff]
    %v1348 = vld [vmem:[#allocation10 + $0x158] sm:$0xff]
    %v1349 = vld [vmem:[#allocation10 + $0x160] sm:$0xff]
    %v1350 = vld [vmem:[#allocation10 + $0x168] sm:$0xff]
    %v1351 = vld [vmem:[#allocation10 + $0x170] sm:$0xff]
    %v1352 = vld [vmem:[#allocation10 + $0x178] sm:$0xff]
    %v1353 = vld [vmem:[#allocation10 + $0x180] sm:$0xff]
    %v1354 = vld [vmem:[#allocation10 + $0x188] sm:$0xff]
    %v1355 = vld [vmem:[#allocation10 + $0x190] sm:$0xff]
    %v1356 = vld [vmem:[#allocation10 + $0x198] sm:$0xff]
    %v1357 = vld [vmem:[#allocation10 + $0x1a0] sm:$0xff]
    %v1358 = vld [vmem:[#allocation10 + $0x1a8] sm:$0xff]
    %v1359 = vld [vmem:[#allocation10 + $0x1b0] sm:$0xff]
    %v1360 = vld [vmem:[#allocation10 + $0x1b8] sm:$0xff]
    %v1361 = vld [vmem:[#allocation10 + $0x1c0] sm:$0xff]
    %v1362 = vld [vmem:[#allocation10 + $0x1c8] sm:$0xff]
    %v1363 = vld [vmem:[#allocation10 + $0x1d0] sm:$0xff]
    %v1364 = vld [vmem:[#allocation10 + $0x1d8] sm:$0xff]
    %v1365 = vld [vmem:[#allocation10 + $0x1e0] sm:$0xff]
    %v1366 = vld [vmem:[#allocation10 + $0x1e8] sm:$0xff]
    %v1367 = vld [vmem:[#allocation10 + $0x1f0] sm:$0xff]
    %v1368 = vld [vmem:[#allocation10 + $0x1f8] sm:$0xff]
    %v1369 = vld [vmem:[#allocation10 + $0x200] sm:$0xff]
    %v1370 = vld [vmem:[#allocation10 + $0x208] sm:$0xff]
    %v1371 = vld [vmem:[#allocation10 + $0x210] sm:$0xff]
    %v1372 = vld [vmem:[#allocation10 + $0x218] sm:$0xff]
    %v1373 = vld [vmem:[#allocation10 + $0x220] sm:$0xff]
    %v1374 = vld [vmem:[#allocation10 + $0x228] sm:$0xff]
    %v1375 = vld [vmem:[#allocation10 + $0x230] sm:$0xff]
    %v1376 = vld [vmem:[#allocation10 + $0x238] sm:$0xff]
    %v1377 = vld [vmem:[#allocation10 + $0x240] sm:$0xff]
    %v1378 = vld [vmem:[#allocation10 + $0x248] sm:$0xff]
    %v1379 = vld [vmem:[#allocation10 + $0x250] sm:$0xff]
    %v1380 = vld [vmem:[#allocation10 + $0x258] sm:$0xff]
    %v1381 = vld [vmem:[#allocation10 + $0x260] sm:$0xff]
    %v1382 = vld [vmem:[#allocation10 + $0x268] sm:$0xff]
    %v1383 = vld [vmem:[#allocation10 + $0x270] sm:$0xff]
    %v1384 = vld [vmem:[#allocation10 + $0x278] sm:$0xff]
    %v1385 = vld [vmem:[#allocation10 + $0x280] sm:$0xff]
    %v1386 = vld [vmem:[#allocation10 + $0x288] sm:$0xff]
    %v1387 = vld [vmem:[#allocation10 + $0x290] sm:$0xff]
    %v1388 = vld [vmem:[#allocation10 + $0x298] sm:$0xff]
    %v1389 = vld [vmem:[#allocation10 + $0x2a0] sm:$0xff]
    %v1390 = vld [vmem:[#allocation10 + $0x2a8] sm:$0xff]
    %v1391 = vld [vmem:[#allocation10 + $0x2b0] sm:$0xff]
    %v1392 = vld [vmem:[#allocation10 + $0x2b8] sm:$0xff]
    %v1393 = vld [vmem:[#allocation10 + $0x2c0] sm:$0xff]
    %v1394 = vld [vmem:[#allocation10 + $0x2c8] sm:$0xff]
    %v1395 = vld [vmem:[#allocation10 + $0x2d0] sm:$0xff]
    %v1396 = vld [vmem:[#allocation10 + $0x2d8] sm:$0xff]
    %v1397 = vld [vmem:[#allocation10 + $0x2e0] sm:$0xff]
    %v1398 = vld [vmem:[#allocation10 + $0x2e8] sm:$0xff]
    %v1399 = vld [vmem:[#allocation10 + $0x2f0] sm:$0xff]
    %v1400 = vld [vmem:[#allocation10 + $0x2f8] sm:$0xff]
    %1401 = vmatprep.subr.mxu0 %v1351
    %1402 = vmatpush1.msra.mxu0 %v1350
    %1403 = vmatprep.subr.mxu0 %v1348
    %1404 = vmatpush1.msra.mxu0 %v1347
    %1405 = vmatprep.subr.mxu0 %v1345
    %1406 = vmatpush1.msra.mxu0 %v1344
    %1407 = vmatprep.subr.mxu0 %v1342
    %1408 = vmatpush1.msra.mxu0 %v1341
    %1409 = vmatprep.subr.mxu0 %v1339
    %1410 = vmatpush1.msra.mxu0 %v1338
    %1411 = vmatprep.subr.mxu0 %v1336
    %1412 = vmatpush1.msra.mxu0 %v1335
    %1413 = vmatprep.subr.mxu0 %v1333
    %1414 = vmatpush1.msra.mxu0 %v1332
    %1415 = vmatprep.subr.mxu0 %v1330
    %1416 = vmatpush1.msra.mxu0 %v1329
    %1417 = vmatprep.subr.mxu0 %v1327
    %1418 = vmatpush1.msra.mxu0 %v1326
    %1419 = vmatprep.subr.mxu0 %v1324
    %1420 = vmatpush1.msra.mxu0 %v1323
    %1421 = vmatprep.subr.mxu0 %v1321
    %1422 = vmatpush1.msra.mxu0 %v1320
    %1423 = vmatprep.subr.mxu0 %v1318
    %1424 = vmatpush1.msra.mxu0 %v1317
    %1425 = vmatprep.subr.mxu0 %v1315
    %1426 = vmatpush1.msra.mxu0 %v1314
    %1427 = vmatprep.subr.mxu0 %v1312
    %1428 = vmatpush1.msra.mxu0 %v1311
    %1429 = vmatprep.subr.mxu0 %v1309
    %1430 = vmatpush1.msra.mxu0 %v1308
    %1431 = vmatprep.subr.mxu0 %v1306
    %1432 = vmatpush1.msra.mxu0 %v1305
    %1433 = vmatprep.subr.mxu0 %v1399
    %1434 = vmatpush2.msra.mxu0 %v1398
    %1435 = vmatprep.subr.mxu0 %v1396
    %1436 = vmatpush2.msra.mxu0 %v1395
    %1437 = vmatprep.subr.mxu0 %v1393
    %1438 = vmatpush2.msra.mxu0 %v1392
    %1439 = vmatprep.subr.mxu0 %v1390
    %1440 = vmatpush2.msra.mxu0 %v1389
    %1441 = vmatprep.subr.mxu0 %v1387
    %1442 = vmatpush2.msra.mxu0 %v1386
    %1443 = vmatprep.subr.mxu0 %v1384
    %1444 = vmatpush2.msra.mxu0 %v1383
    %1445 = vmatprep.subr.mxu0 %v1381
    %1446 = vmatpush2.msra.mxu0 %v1380
    %1447 = vmatprep.subr.mxu0 %v1378
    %1448 = vmatpush2.msra.mxu0 %v1377
    %1449 = vmatprep.subr.mxu0 %v1375
    %1450 = vmatpush2.msra.mxu0 %v1374
    %1451 = vmatprep.subr.mxu0 %v1372
    %1452 = vmatpush2.msra.mxu0 %v1371
    %1453 = vmatprep.subr.mxu0 %v1369
    %1454 = vmatpush2.msra.mxu0 %v1368
    %1455 = vmatprep.subr.mxu0 %v1366
    %1456 = vmatpush2.msra.mxu0 %v1365
    %1457 = vmatprep.subr.mxu0 %v1363
    %1458 = vmatpush2.msra.mxu0 %v1362
    %1459 = vmatprep.subr.mxu0 %v1360
    %1460 = vmatpush2.msra.mxu0 %v1359
    %1461 = vmatprep.subr.mxu0 %v1357
    %1462 = vmatpush2.msra.mxu0 %v1356
    %1463 = vmatprep.subr.mxu0 %v1354
    %1464 = vmatpush2.msra.mxu0 %v1353
    %1465 = vmatprep.mubr.f32.mxu0 %v1299
    %1466 = vmatmul.mubr.f32.gmra.mxu0 %v1297
    %v1467 = vpop.f32.mrf.mxu0
    %v1468 = vadd.f32 0.0, %v1467
    %v1469 = vpop.f32.mrf.mxu0
    %v1470 = vadd.f32 0.0, %v1469
    %1471 = vmatprep.mubr.f32.mxu0 %v1300
    %1472 = vmatmul.mubr.f32.gmra.mxu0 %v1298
    %v1473 = vpop.f32.mrf.mxu0
    %v1474 = vadd.f32 0.0, %v1473
    %v1475 = vpop.f32.mrf.mxu0
    %v1476 = vadd.f32 0.0, %v1475
    %1477 = vdwg.mxu0
    %1478 = vmatprep.subr.mxu0 0.0
    %1479 = vmatpush1.msra.mxu0 %v1352
    %1480 = vmatprep.subr.mxu0 0.0
    %1481 = vmatpush1.msra.mxu0 %v1349
    %1482 = vmatprep.subr.mxu0 0.0
    %1483 = vmatpush1.msra.mxu0 %v1346
    %1484 = vmatprep.subr.mxu0 0.0
    %1485 = vmatpush1.msra.mxu0 %v1343
    %1486 = vmatprep.subr.mxu0 0.0
    %1487 = vmatpush1.msra.mxu0 %v1340
    %1488 = vmatprep.subr.mxu0 0.0
    %1489 = vmatpush1.msra.mxu0 %v1337
    %1490 = vmatprep.subr.mxu0 0.0
    %1491 = vmatpush1.msra.mxu0 %v1334
    %1492 = vmatprep.subr.mxu0 0.0
    %1493 = vmatpush1.msra.mxu0 %v1331
    %1494 = vmatprep.subr.mxu0 0.0
    %1495 = vmatpush1.msra.mxu0 %v1328
    %1496 = vmatprep.subr.mxu0 0.0
    %1497 = vmatpush1.msra.mxu0 %v1325
    %1498 = vmatprep.subr.mxu0 0.0
    %1499 = vmatpush1.msra.mxu0 %v1322
    %1500 = vmatprep.subr.mxu0 0.0
    %1501 = vmatpush1.msra.mxu0 %v1319
    %1502 = vmatprep.subr.mxu0 0.0
    %1503 = vmatpush1.msra.mxu0 %v1316
    %1504 = vmatprep.subr.mxu0 0.0
    %1505 = vmatpush1.msra.mxu0 %v1313
    %1506 = vmatprep.subr.mxu0 0.0
    %1507 = vmatpush1.msra.mxu0 %v1310
    %1508 = vmatprep.subr.mxu0 0.0
    %1509 = vmatpush1.msra.mxu0 %v1307
    %1510 = vmatprep.subr.mxu0 0.0
    %1511 = vmatpush2.msra.mxu0 %v1400
    %1512 = vmatprep.subr.mxu0 0.0
    %1513 = vmatpush2.msra.mxu0 %v1397
    %1514 = vmatprep.subr.mxu0 0.0
    %1515 = vmatpush2.msra.mxu0 %v1394
    %1516 = vmatprep.subr.mxu0 0.0
    %1517 = vmatpush2.msra.mxu0 %v1391
    %1518 = vmatprep.subr.mxu0 0.0
    %1519 = vmatpush2.msra.mxu0 %v1388
    %1520 = vmatprep.subr.mxu0 0.0
    %1521 = vmatpush2.msra.mxu0 %v1385
    %1522 = vmatprep.subr.mxu0 0.0
    %1523 = vmatpush2.msra.mxu0 %v1382
    %1524 = vmatprep.subr.mxu0 0.0
    %1525 = vmatpush2.msra.mxu0 %v1379
    %1526 = vmatprep.subr.mxu0 0.0
    %1527 = vmatpush2.msra.mxu0 %v1376
    %1528 = vmatprep.subr.mxu0 0.0
    %1529 = vmatpush2.msra.mxu0 %v1373
    %1530 = vmatprep.subr.mxu0 0.0
    %1531 = vmatpush2.msra.mxu0 %v1370
    %1532 = vmatprep.subr.mxu0 0.0
    %1533 = vmatpush2.msra.mxu0 %v1367
    %1534 = vmatprep.subr.mxu0 0.0
    %1535 = vmatpush2.msra.mxu0 %v1364
    %1536 = vmatprep.subr.mxu0 0.0
    %1537 = vmatpush2.msra.mxu0 %v1361
    %1538 = vmatprep.subr.mxu0 0.0
    %1539 = vmatpush2.msra.mxu0 %v1358
    %1540 = vmatprep.subr.mxu0 0.0
    %1541 = vmatpush2.msra.mxu0 %v1355
    %1542 = vmatprep.mubr.f32.mxu0 %v1299
    %1543 = vmatmul.mubr.f32.gmra.mxu0 %v1297
    %v1544 = vpop.f32.mrf.mxu0
    %v1545 = vadd.f32 0.0, %v1544
    %v1546 = vpop.f32.mrf.mxu0
    %1547 = vmatprep.mubr.f32.mxu0 %v1300
    %1548 = vmatmul.mubr.f32.gmra.mxu0 %v1298
    %v1549 = vpop.f32.mrf.mxu0
    %v1550 = vadd.f32 0.0, %v1549
    %v1551 = vpop.f32.mrf.mxu0
    %1552 = vdwg.mxu0
    %v1553 = vadd.f32 %v1286, %v1468
    %v1554 = vadd.f32 %v1292, %v1474
    %v1555 = vxor.u32 %v1553, 2147483648
    %v1556 = vxor.u32 %v1554, 2147483648
    %v1557 = vmul.f32 %v1555, 1.442695
    %v1558 = vpow.pop %v1557
    %v1559 = vmul.f32 %v1556, 1.442695
    %v1560 = vpow.pop %v1559
    %v1561 = vadd.f32 %v1558, 1.0
    %v1562 = vadd.f32 %v1560, 1.0
    %v1563 = vrcp.pop %v1561
    %v1564 = vmul.f32 1.0, %v1563
    %v1565 = vrcp.pop %v1562
    %v1566 = vmul.f32 1.0, %v1565
    %v1567 = vadd.f32 %v1287, %v1470
    %v1568 = vadd.f32 %v1293, %v1476
    %v1569 = vxor.u32 %v1567, 2147483648
    %v1570 = vxor.u32 %v1568, 2147483648
    %v1571 = vmul.f32 %v1569, 1.442695
    %v1572 = vpow.pop %v1571
    %v1573 = vmul.f32 %v1570, 1.442695
    %v1574 = vpow.pop %v1573
    %v1575 = vadd.f32 %v1572, 1.0
    %v1576 = vadd.f32 %v1574, 1.0
    %v1577 = vrcp.pop %v1575
    %v1578 = vmul.f32 1.0, %v1577
    %v1579 = vrcp.pop %v1576
    %v1580 = vmul.f32 1.0, %v1579
    %v1581 = vadd.f32 %v1545, %v607
    %v1582 = vadd.f32 %v1550, %v614
    %v1583 = vmul.f32 %v1564, %v1581
    %v1584 = vmul.f32 %v1566, %v1582
    %v1585 = vadd.f32 %v1288, %v1583
    %v1586 = vadd.f32 %v1294, %v1584
    %v1587 = vtanh.pop %v1585
    %v1588 = vtanh.pop %v1586
    %v1589 = vsub.f32 1.0, %v1578
    %v1590 = vsub.f32 1.0, %v1580
    %v1591 = vmul.f32 %v1589, %v1587
    %v1592 = vmul.f32 %v1590, %v1588
    %v1593 = vmul.f32 %v1578, %v1295
    %v1594 = vmul.f32 %v1580, %v1296
    %v1595 = vadd.f32 %v1591, %v1593
    %v1596 = vadd.f32 %v1592, %v1594
    %v1597 = vsel %vm1303, 1, 0
    %v1598 = vsel %vm1304, 1, 0
    %1599 = vset.pattern.permute.xlu0 0
    %1600 = vperm.xlu0 %1599, %v1597
    %v1601 = vpop.permute.xlu0 %1600
    %1602 = vset.pattern.permute.xlu0 0
    %1603 = vperm.xlu0 %1602, %v1598
    %v1604 = vpop.permute.xlu0 %1603
    %vm1605 = vcmp.eq.s32.totalorder %v1601, 1
    %vm1606 = vcmp.eq.s32.totalorder %v1604, 1
    %v1607 = vsel %vm1605, %v1595, %v1295
    %v1608 = vsel %vm1606, %v1596, %v1296
    %1609 = vst [vmem:[#allocation3] sm:$0xff] %v1607
    %1610 = vst [vmem:[#allocation3 + $0x8] sm:$0xff] %v1608
    %v1611 = vsel %vm1605, %v1595, 0.0
    %v1612 = vsel %vm1606, %v1596, 0.0
    %s1613 = scalar_lea.vmem [#allocation4], 32
    %1614 = vst [vmem:[%s1613] sm:$0xff] %v1611
    %s1615 = scalar_lea.vmem [#allocation4], 80
    %1616 = vst [vmem:[%s1615 + $0x8] sm:$0xff] %v1612
    %s1617 = smul.u32 3, 6
    %s1618 = smul.addr %s1617, 8
    %s1619 = scalar_lea.vmem [#allocation2], %s1618
    %v1620 = vld [vmem:[%s1619] sm:$0xff]
    %v1621 = vld [vmem:[%s1619 + $0x8] sm:$0xff]
    %v1622 = vld [vmem:[%s1619 + $0x10] sm:$0xff]
    %s1623 = smul.u32 4, 6
    %s1624 = smul.addr %s1623, 8
    %s1625 = scalar_lea.vmem [#allocation2], %s1624
    %v1626 = vld [vmem:[%s1625 + $0x18] sm:$0xff]
    %v1627 = vld [vmem:[%s1625 + $0x20] sm:$0xff]
    %v1628 = vld [vmem:[%s1625 + $0x28] sm:$0xff]
    %v1629 = vld [vmem:[#allocation3] sm:$0xff]
    %v1630 = vld [vmem:[#allocation3 + $0x8] sm:$0xff]
    %v1631 = vmul.f32 %v1629, %v598
    %v1632 = vmul.f32 %v1630, %v599
    %v1633 = vmul.f32 %v1629, %v600
    %v1634 = vmul.f32 %v1630, %v601
    %v1635 = vsel %vm594, 3, 4
    %v1636 = vsel %vm595, 3, 4
    %vm1637 = vcmp.lt.s32.totalorder %v1635, %v590
    %vm1638 = vcmp.lt.s32.totalorder %v1636, %v590
    %v1639 = vld [vmem:[#allocation10] sm:$0xff]
    %v1640 = vld [vmem:[#allocation10 + $0x8] sm:$0xff]
    %v1641 = vld [vmem:[#allocation10 + $0x10] sm:$0xff]
    %v1642 = vld [vmem:[#allocation10 + $0x18] sm:$0xff]
    %v1643 = vld [vmem:[#allocation10 + $0x20] sm:$0xff]
    %v1644 = vld [vmem:[#allocation10 + $0x28] sm:$0xff]
    %v1645 = vld [vmem:[#allocation10 + $0x30] sm:$0xff]
    %v1646 = vld [vmem:[#allocation10 + $0x38] sm:$0xff]
    %v1647 = vld [vmem:[#allocation10 + $0x40] sm:$0xff]
    %v1648 = vld [vmem:[#allocation10 + $0x48] sm:$0xff]
    %v1649 = vld [vmem:[#allocation10 + $0x50] sm:$0xff]
    %v1650 = vld [vmem:[#allocation10 + $0x58] sm:$0xff]
    %v1651 = vld [vmem:[#allocation10 + $0x60] sm:$0xff]
    %v1652 = vld [vmem:[#allocation10 + $0x68] sm:$0xff]
    %v1653 = vld [vmem:[#allocation10 + $0x70] sm:$0xff]
    %v1654 = vld [vmem:[#allocation10 + $0x78] sm:$0xff]
    %v1655 = vld [vmem:[#allocation10 + $0x80] sm:$0xff]
    %v1656 = vld [vmem:[#allocation10 + $0x88] sm:$0xff]
    %v1657 = vld [vmem:[#allocation10 + $0x90] sm:$0xff]
    %v1658 = vld [vmem:[#allocation10 + $0x98] sm:$0xff]
    %v1659 = vld [vmem:[#allocation10 + $0xa0] sm:$0xff]
    %v1660 = vld [vmem:[#allocation10 + $0xa8] sm:$0xff]
    %v1661 = vld [vmem:[#allocation10 + $0xb0] sm:$0xff]
    %v1662 = vld [vmem:[#allocation10 + $0xb8] sm:$0xff]
    %v1663 = vld [vmem:[#allocation10 + $0xc0] sm:$0xff]
    %v1664 = vld [vmem:[#allocation10 + $0xc8] sm:$0xff]
    %v1665 = vld [vmem:[#allocation10 + $0xd0] sm:$0xff]
    %v1666 = vld [vmem:[#allocation10 + $0xd8] sm:$0xff]
    %v1667 = vld [vmem:[#allocation10 + $0xe0] sm:$0xff]
    %v1668 = vld [vmem:[#allocation10 + $0xe8] sm:$0xff]
    %v1669 = vld [vmem:[#allocation10 + $0xf0] sm:$0xff]
    %v1670 = vld [vmem:[#allocation10 + $0xf8] sm:$0xff]
    %v1671 = vld [vmem:[#allocation10 + $0x100] sm:$0xff]
    %v1672 = vld [vmem:[#allocation10 + $0x108] sm:$0xff]
    %v1673 = vld [vmem:[#allocation10 + $0x110] sm:$0xff]
    %v1674 = vld [vmem:[#allocation10 + $0x118] sm:$0xff]
    %v1675 = vld [vmem:[#allocation10 + $0x120] sm:$0xff]
    %v1676 = vld [vmem:[#allocation10 + $0x128] sm:$0xff]
    %v1677 = vld [vmem:[#allocation10 + $0x130] sm:$0xff]
    %v1678 = vld [vmem:[#allocation10 + $0x138] sm:$0xff]
    %v1679 = vld [vmem:[#allocation10 + $0x140] sm:$0xff]
    %v1680 = vld [vmem:[#allocation10 + $0x148] sm:$0xff]
    %v1681 = vld [vmem:[#allocation10 + $0x150] sm:$0xff]
    %v1682 = vld [vmem:[#allocation10 + $0x158] sm:$0xff]
    %v1683 = vld [vmem:[#allocation10 + $0x160] sm:$0xff]
    %v1684 = vld [vmem:[#allocation10 + $0x168] sm:$0xff]
    %v1685 = vld [vmem:[#allocation10 + $0x170] sm:$0xff]
    %v1686 = vld [vmem:[#allocation10 + $0x178] sm:$0xff]
    %v1687 = vld [vmem:[#allocation10 + $0x180] sm:$0xff]
    %v1688 = vld [vmem:[#allocation10 + $0x188] sm:$0xff]
    %v1689 = vld [vmem:[#allocation10 + $0x190] sm:$0xff]
    %v1690 = vld [vmem:[#allocation10 + $0x198] sm:$0xff]
    %v1691 = vld [vmem:[#allocation10 + $0x1a0] sm:$0xff]
    %v1692 = vld [vmem:[#allocation10 + $0x1a8] sm:$0xff]
    %v1693 = vld [vmem:[#allocation10 + $0x1b0] sm:$0xff]
    %v1694 = vld [vmem:[#allocation10 + $0x1b8] sm:$0xff]
    %v1695 = vld [vmem:[#allocation10 + $0x1c0] sm:$0xff]
    %v1696 = vld [vmem:[#allocation10 + $0x1c8] sm:$0xff]
    %v1697 = vld [vmem:[#allocation10 + $0x1d0] sm:$0xff]
    %v1698 = vld [vmem:[#allocation10 + $0x1d8] sm:$0xff]
    %v1699 = vld [vmem:[#allocation10 + $0x1e0] sm:$0xff]
    %v1700 = vld [vmem:[#allocation10 + $0x1e8] sm:$0xff]
    %v1701 = vld [vmem:[#allocation10 + $0x1f0] sm:$0xff]
    %v1702 = vld [vmem:[#allocation10 + $0x1f8] sm:$0xff]
    %v1703 = vld [vmem:[#allocation10 + $0x200] sm:$0xff]
    %v1704 = vld [vmem:[#allocation10 + $0x208] sm:$0xff]
    %v1705 = vld [vmem:[#allocation10 + $0x210] sm:$0xff]
    %v1706 = vld [vmem:[#allocation10 + $0x218] sm:$0xff]
    %v1707 = vld [vmem:[#allocation10 + $0x220] sm:$0xff]
    %v1708 = vld [vmem:[#allocation10 + $0x228] sm:$0xff]
    %v1709 = vld [vmem:[#allocation10 + $0x230] sm:$0xff]
    %v1710 = vld [vmem:[#allocation10 + $0x238] sm:$0xff]
    %v1711 = vld [vmem:[#allocation10 + $0x240] sm:$0xff]
    %v1712 = vld [vmem:[#allocation10 + $0x248] sm:$0xff]
    %v1713 = vld [vmem:[#allocation10 + $0x250] sm:$0xff]
    %v1714 = vld [vmem:[#allocation10 + $0x258] sm:$0xff]
    %v1715 = vld [vmem:[#allocation10 + $0x260] sm:$0xff]
    %v1716 = vld [vmem:[#allocation10 + $0x268] sm:$0xff]
    %v1717 = vld [vmem:[#allocation10 + $0x270] sm:$0xff]
    %v1718 = vld [vmem:[#allocation10 + $0x278] sm:$0xff]
    %v1719 = vld [vmem:[#allocation10 + $0x280] sm:$0xff]
    %v1720 = vld [vmem:[#allocation10 + $0x288] sm:$0xff]
    %v1721 = vld [vmem:[#allocation10 + $0x290] sm:$0xff]
    %v1722 = vld [vmem:[#allocation10 + $0x298] sm:$0xff]
    %v1723 = vld [vmem:[#allocation10 + $0x2a0] sm:$0xff]
    %v1724 = vld [vmem:[#allocation10 + $0x2a8] sm:$0xff]
    %v1725 = vld [vmem:[#allocation10 + $0x2b0] sm:$0xff]
    %v1726 = vld [vmem:[#allocation10 + $0x2b8] sm:$0xff]
    %v1727 = vld [vmem:[#allocation10 + $0x2c0] sm:$0xff]
    %v1728 = vld [vmem:[#allocation10 + $0x2c8] sm:$0xff]
    %v1729 = vld [vmem:[#allocation10 + $0x2d0] sm:$0xff]
    %v1730 = vld [vmem:[#allocation10 + $0x2d8] sm:$0xff]
    %v1731 = vld [vmem:[#allocation10 + $0x2e0] sm:$0xff]
    %v1732 = vld [vmem:[#allocation10 + $0x2e8] sm:$0xff]
    %v1733 = vld [vmem:[#allocation10 + $0x2f0] sm:$0xff]
    %v1734 = vld [vmem:[#allocation10 + $0x2f8] sm:$0xff]
    %1735 = vmatprep.subr.mxu0 %v1685
    %1736 = vmatpush1.msra.mxu0 %v1684
    %1737 = vmatprep.subr.mxu0 %v1682
    %1738 = vmatpush1.msra.mxu0 %v1681
    %1739 = vmatprep.subr.mxu0 %v1679
    %1740 = vmatpush1.msra.mxu0 %v1678
    %1741 = vmatprep.subr.mxu0 %v1676
    %1742 = vmatpush1.msra.mxu0 %v1675
    %1743 = vmatprep.subr.mxu0 %v1673
    %1744 = vmatpush1.msra.mxu0 %v1672
    %1745 = vmatprep.subr.mxu0 %v1670
    %1746 = vmatpush1.msra.mxu0 %v1669
    %1747 = vmatprep.subr.mxu0 %v1667
    %1748 = vmatpush1.msra.mxu0 %v1666
    %1749 = vmatprep.subr.mxu0 %v1664
    %1750 = vmatpush1.msra.mxu0 %v1663
    %1751 = vmatprep.subr.mxu0 %v1661
    %1752 = vmatpush1.msra.mxu0 %v1660
    %1753 = vmatprep.subr.mxu0 %v1658
    %1754 = vmatpush1.msra.mxu0 %v1657
    %1755 = vmatprep.subr.mxu0 %v1655
    %1756 = vmatpush1.msra.mxu0 %v1654
    %1757 = vmatprep.subr.mxu0 %v1652
    %1758 = vmatpush1.msra.mxu0 %v1651
    %1759 = vmatprep.subr.mxu0 %v1649
    %1760 = vmatpush1.msra.mxu0 %v1648
    %1761 = vmatprep.subr.mxu0 %v1646
    %1762 = vmatpush1.msra.mxu0 %v1645
    %1763 = vmatprep.subr.mxu0 %v1643
    %1764 = vmatpush1.msra.mxu0 %v1642
    %1765 = vmatprep.subr.mxu0 %v1640
    %1766 = vmatpush1.msra.mxu0 %v1639
    %1767 = vmatprep.subr.mxu0 %v1733
    %1768 = vmatpush2.msra.mxu0 %v1732
    %1769 = vmatprep.subr.mxu0 %v1730
    %1770 = vmatpush2.msra.mxu0 %v1729
    %1771 = vmatprep.subr.mxu0 %v1727
    %1772 = vmatpush2.msra.mxu0 %v1726
    %1773 = vmatprep.subr.mxu0 %v1724
    %1774 = vmatpush2.msra.mxu0 %v1723
    %1775 = vmatprep.subr.mxu0 %v1721
    %1776 = vmatpush2.msra.mxu0 %v1720
    %1777 = vmatprep.subr.mxu0 %v1718
    %1778 = vmatpush2.msra.mxu0 %v1717
    %1779 = vmatprep.subr.mxu0 %v1715
    %1780 = vmatpush2.msra.mxu0 %v1714
    %1781 = vmatprep.subr.mxu0 %v1712
    %1782 = vmatpush2.msra.mxu0 %v1711
    %1783 = vmatprep.subr.mxu0 %v1709
    %1784 = vmatpush2.msra.mxu0 %v1708
    %1785 = vmatprep.subr.mxu0 %v1706
    %1786 = vmatpush2.msra.mxu0 %v1705
    %1787 = vmatprep.subr.mxu0 %v1703
    %1788 = vmatpush2.msra.mxu0 %v1702
    %1789 = vmatprep.subr.mxu0 %v1700
    %1790 = vmatpush2.msra.mxu0 %v1699
    %1791 = vmatprep.subr.mxu0 %v1697
    %1792 = vmatpush2.msra.mxu0 %v1696
    %1793 = vmatprep.subr.mxu0 %v1694
    %1794 = vmatpush2.msra.mxu0 %v1693
    %1795 = vmatprep.subr.mxu0 %v1691
    %1796 = vmatpush2.msra.mxu0 %v1690
    %1797 = vmatprep.subr.mxu0 %v1688
    %1798 = vmatpush2.msra.mxu0 %v1687
    %1799 = vmatprep.mubr.f32.mxu0 %v1633
    %1800 = vmatmul.mubr.f32.gmra.mxu0 %v1631
    %v1801 = vpop.f32.mrf.mxu0
    %v1802 = vadd.f32 0.0, %v1801
    %v1803 = vpop.f32.mrf.mxu0
    %v1804 = vadd.f32 0.0, %v1803
    %1805 = vmatprep.mubr.f32.mxu0 %v1634
    %1806 = vmatmul.mubr.f32.gmra.mxu0 %v1632
    %v1807 = vpop.f32.mrf.mxu0
    %v1808 = vadd.f32 0.0, %v1807
    %v1809 = vpop.f32.mrf.mxu0
    %v1810 = vadd.f32 0.0, %v1809
    %1811 = vdwg.mxu0
    %1812 = vmatprep.subr.mxu0 0.0
    %1813 = vmatpush1.msra.mxu0 %v1686
    %1814 = vmatprep.subr.mxu0 0.0
    %1815 = vmatpush1.msra.mxu0 %v1683
    %1816 = vmatprep.subr.mxu0 0.0
    %1817 = vmatpush1.msra.mxu0 %v1680
    %1818 = vmatprep.subr.mxu0 0.0
    %1819 = vmatpush1.msra.mxu0 %v1677
    %1820 = vmatprep.subr.mxu0 0.0
    %1821 = vmatpush1.msra.mxu0 %v1674
    %1822 = vmatprep.subr.mxu0 0.0
    %1823 = vmatpush1.msra.mxu0 %v1671
    %1824 = vmatprep.subr.mxu0 0.0
    %1825 = vmatpush1.msra.mxu0 %v1668
    %1826 = vmatprep.subr.mxu0 0.0
    %1827 = vmatpush1.msra.mxu0 %v1665
    %1828 = vmatprep.subr.mxu0 0.0
    %1829 = vmatpush1.msra.mxu0 %v1662
    %1830 = vmatprep.subr.mxu0 0.0
    %1831 = vmatpush1.msra.mxu0 %v1659
    %1832 = vmatprep.subr.mxu0 0.0
    %1833 = vmatpush1.msra.mxu0 %v1656
    %1834 = vmatprep.subr.mxu0 0.0
    %1835 = vmatpush1.msra.mxu0 %v1653
    %1836 = vmatprep.subr.mxu0 0.0
    %1837 = vmatpush1.msra.mxu0 %v1650
    %1838 = vmatprep.subr.mxu0 0.0
    %1839 = vmatpush1.msra.mxu0 %v1647
    %1840 = vmatprep.subr.mxu0 0.0
    %1841 = vmatpush1.msra.mxu0 %v1644
    %1842 = vmatprep.subr.mxu0 0.0
    %1843 = vmatpush1.msra.mxu0 %v1641
    %1844 = vmatprep.subr.mxu0 0.0
    %1845 = vmatpush2.msra.mxu0 %v1734
    %1846 = vmatprep.subr.mxu0 0.0
    %1847 = vmatpush2.msra.mxu0 %v1731
    %1848 = vmatprep.subr.mxu0 0.0
    %1849 = vmatpush2.msra.mxu0 %v1728
    %1850 = vmatprep.subr.mxu0 0.0
    %1851 = vmatpush2.msra.mxu0 %v1725
    %1852 = vmatprep.subr.mxu0 0.0
    %1853 = vmatpush2.msra.mxu0 %v1722
    %1854 = vmatprep.subr.mxu0 0.0
    %1855 = vmatpush2.msra.mxu0 %v1719
    %1856 = vmatprep.subr.mxu0 0.0
    %1857 = vmatpush2.msra.mxu0 %v1716
    %1858 = vmatprep.subr.mxu0 0.0
    %1859 = vmatpush2.msra.mxu0 %v1713
    %1860 = vmatprep.subr.mxu0 0.0
    %1861 = vmatpush2.msra.mxu0 %v1710
    %1862 = vmatprep.subr.mxu0 0.0
    %1863 = vmatpush2.msra.mxu0 %v1707
    %1864 = vmatprep.subr.mxu0 0.0
    %1865 = vmatpush2.msra.mxu0 %v1704
    %1866 = vmatprep.subr.mxu0 0.0
    %1867 = vmatpush2.msra.mxu0 %v1701
    %1868 = vmatprep.subr.mxu0 0.0
    %1869 = vmatpush2.msra.mxu0 %v1698
    %1870 = vmatprep.subr.mxu0 0.0
    %1871 = vmatpush2.msra.mxu0 %v1695
    %1872 = vmatprep.subr.mxu0 0.0
    %1873 = vmatpush2.msra.mxu0 %v1692
    %1874 = vmatprep.subr.mxu0 0.0
    %1875 = vmatpush2.msra.mxu0 %v1689
    %1876 = vmatprep.mubr.f32.mxu0 %v1633
    %1877 = vmatmul.mubr.f32.gmra.mxu0 %v1631
    %v1878 = vpop.f32.mrf.mxu0
    %v1879 = vadd.f32 0.0, %v1878
    %v1880 = vpop.f32.mrf.mxu0
    %1881 = vmatprep.mubr.f32.mxu0 %v1634
    %1882 = vmatmul.mubr.f32.gmra.mxu0 %v1632
    %v1883 = vpop.f32.mrf.mxu0
    %v1884 = vadd.f32 0.0, %v1883
    %v1885 = vpop.f32.mrf.mxu0
    %1886 = vdwg.mxu0
    %v1887 = vadd.f32 %v1620, %v1802
    %v1888 = vadd.f32 %v1626, %v1808
    %v1889 = vxor.u32 %v1887, 2147483648
    %v1890 = vxor.u32 %v1888, 2147483648
    %v1891 = vmul.f32 %v1889, 1.442695
    %v1892 = vpow.pop %v1891
    %v1893 = vmul.f32 %v1890, 1.442695
    %v1894 = vpow.pop %v1893
    %v1895 = vadd.f32 %v1892, 1.0
    %v1896 = vadd.f32 %v1894, 1.0
    %v1897 = vrcp.pop %v1895
    %v1898 = vmul.f32 1.0, %v1897
    %v1899 = vrcp.pop %v1896
    %v1900 = vmul.f32 1.0, %v1899
    %v1901 = vadd.f32 %v1621, %v1804
    %v1902 = vadd.f32 %v1627, %v1810
    %v1903 = vxor.u32 %v1901, 2147483648
    %v1904 = vxor.u32 %v1902, 2147483648
    %v1905 = vmul.f32 %v1903, 1.442695
    %v1906 = vpow.pop %v1905
    %v1907 = vmul.f32 %v1904, 1.442695
    %v1908 = vpow.pop %v1907
    %v1909 = vadd.f32 %v1906, 1.0
    %v1910 = vadd.f32 %v1908, 1.0
    %v1911 = vrcp.pop %v1909
    %v1912 = vmul.f32 1.0, %v1911
    %v1913 = vrcp.pop %v1910
    %v1914 = vmul.f32 1.0, %v1913
    %v1915 = vadd.f32 %v1879, %v607
    %v1916 = vadd.f32 %v1884, %v614
    %v1917 = vmul.f32 %v1898, %v1915
    %v1918 = vmul.f32 %v1900, %v1916
    %v1919 = vadd.f32 %v1622, %v1917
    %v1920 = vadd.f32 %v1628, %v1918
    %v1921 = vtanh.pop %v1919
    %v1922 = vtanh.pop %v1920
    %v1923 = vsub.f32 1.0, %v1912
    %v1924 = vsub.f32 1.0, %v1914
    %v1925 = vmul.f32 %v1923, %v1921
    %v1926 = vmul.f32 %v1924, %v1922
    %v1927 = vmul.f32 %v1912, %v1629
    %v1928 = vmul.f32 %v1914, %v1630
    %v1929 = vadd.f32 %v1925, %v1927
    %v1930 = vadd.f32 %v1926, %v1928
    %v1931 = vsel %vm1637, 1, 0
    %v1932 = vsel %vm1638, 1, 0
    %1933 = vset.pattern.permute.xlu0 0
    %1934 = vperm.xlu0 %1933, %v1931
    %v1935 = vpop.permute.xlu0 %1934
    %1936 = vset.pattern.permute.xlu0 0
    %1937 = vperm.xlu0 %1936, %v1932
    %v1938 = vpop.permute.xlu0 %1937
    %vm1939 = vcmp.eq.s32.totalorder %v1935, 1
    %vm1940 = vcmp.eq.s32.totalorder %v1938, 1
    %v1941 = vsel %vm1939, %v1929, %v1629
    %v1942 = vsel %vm1940, %v1930, %v1630
    %1943 = vst [vmem:[#allocation3] sm:$0xff] %v1941
    %1944 = vst [vmem:[#allocation3 + $0x8] sm:$0xff] %v1942
    %v1945 = vsel %vm1939, %v1929, 0.0
    %v1946 = vsel %vm1940, %v1930, 0.0
    %s1947 = scalar_lea.vmem [#allocation4], 48
    %1948 = vst [vmem:[%s1947] sm:$0xff] %v1945
    %s1949 = scalar_lea.vmem [#allocation4], 64
    %1950 = vst [vmem:[%s1949 + $0x8] sm:$0xff] %v1946
    %v1951 = vld [vmem:[%s1625] sm:$0xff]
    %v1952 = vld [vmem:[%s1625 + $0x8] sm:$0xff]
    %v1953 = vld [vmem:[%s1625 + $0x10] sm:$0xff]
    %v1954 = vld [vmem:[%s1619 + $0x18] sm:$0xff]
    %v1955 = vld [vmem:[%s1619 + $0x20] sm:$0xff]
    %v1956 = vld [vmem:[%s1619 + $0x28] sm:$0xff]
    %v1957 = vld [vmem:[#allocation3] sm:$0xff]
    %v1958 = vld [vmem:[#allocation3 + $0x8] sm:$0xff]
    %v1959 = vmul.f32 %v1957, %v598
    %v1960 = vmul.f32 %v1958, %v599
    %v1961 = vmul.f32 %v1957, %v600
    %v1962 = vmul.f32 %v1958, %v601
    %v1963 = vsel %vm594, 4, 3
    %v1964 = vsel %vm595, 4, 3
    %vm1965 = vcmp.lt.s32.totalorder %v1963, %v590
    %vm1966 = vcmp.lt.s32.totalorder %v1964, %v590
    %v1967 = vld [vmem:[#allocation10] sm:$0xff]
    %v1968 = vld [vmem:[#allocation10 + $0x8] sm:$0xff]
    %v1969 = vld [vmem:[#allocation10 + $0x10] sm:$0xff]
    %v1970 = vld [vmem:[#allocation10 + $0x18] sm:$0xff]
    %v1971 = vld [vmem:[#allocation10 + $0x20] sm:$0xff]
    %v1972 = vld [vmem:[#allocation10 + $0x28] sm:$0xff]
    %v1973 = vld [vmem:[#allocation10 + $0x30] sm:$0xff]
    %v1974 = vld [vmem:[#allocation10 + $0x38] sm:$0xff]
    %v1975 = vld [vmem:[#allocation10 + $0x40] sm:$0xff]
    %v1976 = vld [vmem:[#allocation10 + $0x48] sm:$0xff]
    %v1977 = vld [vmem:[#allocation10 + $0x50] sm:$0xff]
    %v1978 = vld [vmem:[#allocation10 + $0x58] sm:$0xff]
    %v1979 = vld [vmem:[#allocation10 + $0x60] sm:$0xff]
    %v1980 = vld [vmem:[#allocation10 + $0x68] sm:$0xff]
    %v1981 = vld [vmem:[#allocation10 + $0x70] sm:$0xff]
    %v1982 = vld [vmem:[#allocation10 + $0x78] sm:$0xff]
    %v1983 = vld [vmem:[#allocation10 + $0x80] sm:$0xff]
    %v1984 = vld [vmem:[#allocation10 + $0x88] sm:$0xff]
    %v1985 = vld [vmem:[#allocation10 + $0x90] sm:$0xff]
    %v1986 = vld [vmem:[#allocation10 + $0x98] sm:$0xff]
    %v1987 = vld [vmem:[#allocation10 + $0xa0] sm:$0xff]
    %v1988 = vld [vmem:[#allocation10 + $0xa8] sm:$0xff]
    %v1989 = vld [vmem:[#allocation10 + $0xb0] sm:$0xff]
    %v1990 = vld [vmem:[#allocation10 + $0xb8] sm:$0xff]
    %v1991 = vld [vmem:[#allocation10 + $0xc0] sm:$0xff]
    %v1992 = vld [vmem:[#allocation10 + $0xc8] sm:$0xff]
    %v1993 = vld [vmem:[#allocation10 + $0xd0] sm:$0xff]
    %v1994 = vld [vmem:[#allocation10 + $0xd8] sm:$0xff]
    %v1995 = vld [vmem:[#allocation10 + $0xe0] sm:$0xff]
    %v1996 = vld [vmem:[#allocation10 + $0xe8] sm:$0xff]
    %v1997 = vld [vmem:[#allocation10 + $0xf0] sm:$0xff]
    %v1998 = vld [vmem:[#allocation10 + $0xf8] sm:$0xff]
    %v1999 = vld [vmem:[#allocation10 + $0x100] sm:$0xff]
    %v2000 = vld [vmem:[#allocation10 + $0x108] sm:$0xff]
    %v2001 = vld [vmem:[#allocation10 + $0x110] sm:$0xff]
    %v2002 = vld [vmem:[#allocation10 + $0x118] sm:$0xff]
    %v2003 = vld [vmem:[#allocation10 + $0x120] sm:$0xff]
    %v2004 = vld [vmem:[#allocation10 + $0x128] sm:$0xff]
    %v2005 = vld [vmem:[#allocation10 + $0x130] sm:$0xff]
    %v2006 = vld [vmem:[#allocation10 + $0x138] sm:$0xff]
    %v2007 = vld [vmem:[#allocation10 + $0x140] sm:$0xff]
    %v2008 = vld [vmem:[#allocation10 + $0x148] sm:$0xff]
    %v2009 = vld [vmem:[#allocation10 + $0x150] sm:$0xff]
    %v2010 = vld [vmem:[#allocation10 + $0x158] sm:$0xff]
    %v2011 = vld [vmem:[#allocation10 + $0x160] sm:$0xff]
    %v2012 = vld [vmem:[#allocation10 + $0x168] sm:$0xff]
    %v2013 = vld [vmem:[#allocation10 + $0x170] sm:$0xff]
    %v2014 = vld [vmem:[#allocation10 + $0x178] sm:$0xff]
    %v2015 = vld [vmem:[#allocation10 + $0x180] sm:$0xff]
    %v2016 = vld [vmem:[#allocation10 + $0x188] sm:$0xff]
    %v2017 = vld [vmem:[#allocation10 + $0x190] sm:$0xff]
    %v2018 = vld [vmem:[#allocation10 + $0x198] sm:$0xff]
    %v2019 = vld [vmem:[#allocation10 + $0x1a0] sm:$0xff]
    %v2020 = vld [vmem:[#allocation10 + $0x1a8] sm:$0xff]
    %v2021 = vld [vmem:[#allocation10 + $0x1b0] sm:$0xff]
    %v2022 = vld [vmem:[#allocation10 + $0x1b8] sm:$0xff]
    %v2023 = vld [vmem:[#allocation10 + $0x1c0] sm:$0xff]
    %v2024 = vld [vmem:[#allocation10 + $0x1c8] sm:$0xff]
    %v2025 = vld [vmem:[#allocation10 + $0x1d0] sm:$0xff]
    %v2026 = vld [vmem:[#allocation10 + $0x1d8] sm:$0xff]
    %v2027 = vld [vmem:[#allocation10 + $0x1e0] sm:$0xff]
    %v2028 = vld [vmem:[#allocation10 + $0x1e8] sm:$0xff]
    %v2029 = vld [vmem:[#allocation10 + $0x1f0] sm:$0xff]
    %v2030 = vld [vmem:[#allocation10 + $0x1f8] sm:$0xff]
    %v2031 = vld [vmem:[#allocation10 + $0x200] sm:$0xff]
    %v2032 = vld [vmem:[#allocation10 + $0x208] sm:$0xff]
    %v2033 = vld [vmem:[#allocation10 + $0x210] sm:$0xff]
    %v2034 = vld [vmem:[#allocation10 + $0x218] sm:$0xff]
    %v2035 = vld [vmem:[#allocation10 + $0x220] sm:$0xff]
    %v2036 = vld [vmem:[#allocation10 + $0x228] sm:$0xff]
    %v2037 = vld [vmem:[#allocation10 + $0x230] sm:$0xff]
    %v2038 = vld [vmem:[#allocation10 + $0x238] sm:$0xff]
    %v2039 = vld [vmem:[#allocation10 + $0x240] sm:$0xff]
    %v2040 = vld [vmem:[#allocation10 + $0x248] sm:$0xff]
    %v2041 = vld [vmem:[#allocation10 + $0x250] sm:$0xff]
    %v2042 = vld [vmem:[#allocation10 + $0x258] sm:$0xff]
    %v2043 = vld [vmem:[#allocation10 + $0x260] sm:$0xff]
    %v2044 = vld [vmem:[#allocation10 + $0x268] sm:$0xff]
    %v2045 = vld [vmem:[#allocation10 + $0x270] sm:$0xff]
    %v2046 = vld [vmem:[#allocation10 + $0x278] sm:$0xff]
    %v2047 = vld [vmem:[#allocation10 + $0x280] sm:$0xff]
    %v2048 = vld [vmem:[#allocation10 + $0x288] sm:$0xff]
    %v2049 = vld [vmem:[#allocation10 + $0x290] sm:$0xff]
    %v2050 = vld [vmem:[#allocation10 + $0x298] sm:$0xff]
    %v2051 = vld [vmem:[#allocation10 + $0x2a0] sm:$0xff]
    %v2052 = vld [vmem:[#allocation10 + $0x2a8] sm:$0xff]
    %v2053 = vld [vmem:[#allocation10 + $0x2b0] sm:$0xff]
    %v2054 = vld [vmem:[#allocation10 + $0x2b8] sm:$0xff]
    %v2055 = vld [vmem:[#allocation10 + $0x2c0] sm:$0xff]
    %v2056 = vld [vmem:[#allocation10 + $0x2c8] sm:$0xff]
    %v2057 = vld [vmem:[#allocation10 + $0x2d0] sm:$0xff]
    %v2058 = vld [vmem:[#allocation10 + $0x2d8] sm:$0xff]
    %v2059 = vld [vmem:[#allocation10 + $0x2e0] sm:$0xff]
    %v2060 = vld [vmem:[#allocation10 + $0x2e8] sm:$0xff]
    %v2061 = vld [vmem:[#allocation10 + $0x2f0] sm:$0xff]
    %v2062 = vld [vmem:[#allocation10 + $0x2f8] sm:$0xff]
    %2063 = vmatprep.subr.mxu0 %v2013
    %2064 = vmatpush1.msra.mxu0 %v2012
    %2065 = vmatprep.subr.mxu0 %v2010
    %2066 = vmatpush1.msra.mxu0 %v2009
    %2067 = vmatprep.subr.mxu0 %v2007
    %2068 = vmatpush1.msra.mxu0 %v2006
    %2069 = vmatprep.subr.mxu0 %v2004
    %2070 = vmatpush1.msra.mxu0 %v2003
    %2071 = vmatprep.subr.mxu0 %v2001
    %2072 = vmatpush1.msra.mxu0 %v2000
    %2073 = vmatprep.subr.mxu0 %v1998
    %2074 = vmatpush1.msra.mxu0 %v1997
    %2075 = vmatprep.subr.mxu0 %v1995
    %2076 = vmatpush1.msra.mxu0 %v1994
    %2077 = vmatprep.subr.mxu0 %v1992
    %2078 = vmatpush1.msra.mxu0 %v1991
    %2079 = vmatprep.subr.mxu0 %v1989
    %2080 = vmatpush1.msra.mxu0 %v1988
    %2081 = vmatprep.subr.mxu0 %v1986
    %2082 = vmatpush1.msra.mxu0 %v1985
    %2083 = vmatprep.subr.mxu0 %v1983
    %2084 = vmatpush1.msra.mxu0 %v1982
    %2085 = vmatprep.subr.mxu0 %v1980
    %2086 = vmatpush1.msra.mxu0 %v1979
    %2087 = vmatprep.subr.mxu0 %v1977
    %2088 = vmatpush1.msra.mxu0 %v1976
    %2089 = vmatprep.subr.mxu0 %v1974
    %2090 = vmatpush1.msra.mxu0 %v1973
    %2091 = vmatprep.subr.mxu0 %v1971
    %2092 = vmatpush1.msra.mxu0 %v1970
    %2093 = vmatprep.subr.mxu0 %v1968
    %2094 = vmatpush1.msra.mxu0 %v1967
    %2095 = vmatprep.subr.mxu0 %v2061
    %2096 = vmatpush2.msra.mxu0 %v2060
    %2097 = vmatprep.subr.mxu0 %v2058
    %2098 = vmatpush2.msra.mxu0 %v2057
    %2099 = vmatprep.subr.mxu0 %v2055
    %2100 = vmatpush2.msra.mxu0 %v2054
    %2101 = vmatprep.subr.mxu0 %v2052
    %2102 = vmatpush2.msra.mxu0 %v2051
    %2103 = vmatprep.subr.mxu0 %v2049
    %2104 = vmatpush2.msra.mxu0 %v2048
    %2105 = vmatprep.subr.mxu0 %v2046
    %2106 = vmatpush2.msra.mxu0 %v2045
    %2107 = vmatprep.subr.mxu0 %v2043
    %2108 = vmatpush2.msra.mxu0 %v2042
    %2109 = vmatprep.subr.mxu0 %v2040
    %2110 = vmatpush2.msra.mxu0 %v2039
    %2111 = vmatprep.subr.mxu0 %v2037
    %2112 = vmatpush2.msra.mxu0 %v2036
    %2113 = vmatprep.subr.mxu0 %v2034
    %2114 = vmatpush2.msra.mxu0 %v2033
    %2115 = vmatprep.subr.mxu0 %v2031
    %2116 = vmatpush2.msra.mxu0 %v2030
    %2117 = vmatprep.subr.mxu0 %v2028
    %2118 = vmatpush2.msra.mxu0 %v2027
    %2119 = vmatprep.subr.mxu0 %v2025
    %2120 = vmatpush2.msra.mxu0 %v2024
    %2121 = vmatprep.subr.mxu0 %v2022
    %2122 = vmatpush2.msra.mxu0 %v2021
    %2123 = vmatprep.subr.mxu0 %v2019
    %2124 = vmatpush2.msra.mxu0 %v2018
    %2125 = vmatprep.subr.mxu0 %v2016
    %2126 = vmatpush2.msra.mxu0 %v2015
    %2127 = vmatprep.mubr.f32.mxu0 %v1961
    %2128 = vmatmul.mubr.f32.gmra.mxu0 %v1959
    %v2129 = vpop.f32.mrf.mxu0
    %v2130 = vadd.f32 0.0, %v2129
    %v2131 = vpop.f32.mrf.mxu0
    %v2132 = vadd.f32 0.0, %v2131
    %2133 = vmatprep.mubr.f32.mxu0 %v1962
    %2134 = vmatmul.mubr.f32.gmra.mxu0 %v1960
    %v2135 = vpop.f32.mrf.mxu0
    %v2136 = vadd.f32 0.0, %v2135
    %v2137 = vpop.f32.mrf.mxu0
    %v2138 = vadd.f32 0.0, %v2137
    %2139 = vdwg.mxu0
    %2140 = vmatprep.subr.mxu0 0.0
    %2141 = vmatpush1.msra.mxu0 %v2014
    %2142 = vmatprep.subr.mxu0 0.0
    %2143 = vmatpush1.msra.mxu0 %v2011
    %2144 = vmatprep.subr.mxu0 0.0
    %2145 = vmatpush1.msra.mxu0 %v2008
    %2146 = vmatprep.subr.mxu0 0.0
    %2147 = vmatpush1.msra.mxu0 %v2005
    %2148 = vmatprep.subr.mxu0 0.0
    %2149 = vmatpush1.msra.mxu0 %v2002
    %2150 = vmatprep.subr.mxu0 0.0
    %2151 = vmatpush1.msra.mxu0 %v1999
    %2152 = vmatprep.subr.mxu0 0.0
    %2153 = vmatpush1.msra.mxu0 %v1996
    %2154 = vmatprep.subr.mxu0 0.0
    %2155 = vmatpush1.msra.mxu0 %v1993
    %2156 = vmatprep.subr.mxu0 0.0
    %2157 = vmatpush1.msra.mxu0 %v1990
    %2158 = vmatprep.subr.mxu0 0.0
    %2159 = vmatpush1.msra.mxu0 %v1987
    %2160 = vmatprep.subr.mxu0 0.0
    %2161 = vmatpush1.msra.mxu0 %v1984
    %2162 = vmatprep.subr.mxu0 0.0
    %2163 = vmatpush1.msra.mxu0 %v1981
    %2164 = vmatprep.subr.mxu0 0.0
    %2165 = vmatpush1.msra.mxu0 %v1978
    %2166 = vmatprep.subr.mxu0 0.0
    %2167 = vmatpush1.msra.mxu0 %v1975
    %2168 = vmatprep.subr.mxu0 0.0
    %2169 = vmatpush1.msra.mxu0 %v1972
    %2170 = vmatprep.subr.mxu0 0.0
    %2171 = vmatpush1.msra.mxu0 %v1969
    %2172 = vmatprep.subr.mxu0 0.0
    %2173 = vmatpush2.msra.mxu0 %v2062
    %2174 = vmatprep.subr.mxu0 0.0
    %2175 = vmatpush2.msra.mxu0 %v2059
    %2176 = vmatprep.subr.mxu0 0.0
    %2177 = vmatpush2.msra.mxu0 %v2056
    %2178 = vmatprep.subr.mxu0 0.0
    %2179 = vmatpush2.msra.mxu0 %v2053
    %2180 = vmatprep.subr.mxu0 0.0
    %2181 = vmatpush2.msra.mxu0 %v2050
    %2182 = vmatprep.subr.mxu0 0.0
    %2183 = vmatpush2.msra.mxu0 %v2047
    %2184 = vmatprep.subr.mxu0 0.0
    %2185 = vmatpush2.msra.mxu0 %v2044
    %2186 = vmatprep.subr.mxu0 0.0
    %2187 = vmatpush2.msra.mxu0 %v2041
    %2188 = vmatprep.subr.mxu0 0.0
    %2189 = vmatpush2.msra.mxu0 %v2038
    %2190 = vmatprep.subr.mxu0 0.0
    %2191 = vmatpush2.msra.mxu0 %v2035
    %2192 = vmatprep.subr.mxu0 0.0
    %2193 = vmatpush2.msra.mxu0 %v2032
    %2194 = vmatprep.subr.mxu0 0.0
    %2195 = vmatpush2.msra.mxu0 %v2029
    %2196 = vmatprep.subr.mxu0 0.0
    %2197 = vmatpush2.msra.mxu0 %v2026
    %2198 = vmatprep.subr.mxu0 0.0
    %2199 = vmatpush2.msra.mxu0 %v2023
    %2200 = vmatprep.subr.mxu0 0.0
    %2201 = vmatpush2.msra.mxu0 %v2020
    %2202 = vmatprep.subr.mxu0 0.0
    %2203 = vmatpush2.msra.mxu0 %v2017
    %2204 = vmatprep.mubr.f32.mxu0 %v1961
    %2205 = vmatmul.mubr.f32.gmra.mxu0 %v1959
    %v2206 = vpop.f32.mrf.mxu0
    %v2207 = vadd.f32 0.0, %v2206
    %v2208 = vpop.f32.mrf.mxu0
    %2209 = vmatprep.mubr.f32.mxu0 %v1962
    %2210 = vmatmul.mubr.f32.gmra.mxu0 %v1960
    %v2211 = vpop.f32.mrf.mxu0
    %v2212 = vadd.f32 0.0, %v2211
    %v2213 = vpop.f32.mrf.mxu0
    %2214 = vdwg.mxu0
    %v2215 = vadd.f32 %v1951, %v2130
    %v2216 = vadd.f32 %v1954, %v2136
    %v2217 = vxor.u32 %v2215, 2147483648
    %v2218 = vxor.u32 %v2216, 2147483648
    %v2219 = vmul.f32 %v2217, 1.442695
    %v2220 = vpow.pop %v2219
    %v2221 = vmul.f32 %v2218, 1.442695
    %v2222 = vpow.pop %v2221
    %v2223 = vadd.f32 %v2220, 1.0
    %v2224 = vadd.f32 %v2222, 1.0
    %v2225 = vrcp.pop %v2223
    %v2226 = vmul.f32 1.0, %v2225
    %v2227 = vrcp.pop %v2224
    %v2228 = vmul.f32 1.0, %v2227
    %v2229 = vadd.f32 %v1952, %v2132
    %v2230 = vadd.f32 %v1955, %v2138
    %v2231 = vxor.u32 %v2229, 2147483648
    %v2232 = vxor.u32 %v2230, 2147483648
    %v2233 = vmul.f32 %v2231, 1.442695
    %v2234 = vpow.pop %v2233
    %v2235 = vmul.f32 %v2232, 1.442695
    %v2236 = vpow.pop %v2235
    %v2237 = vadd.f32 %v2234, 1.0
    %v2238 = vadd.f32 %v2236, 1.0
    %v2239 = vrcp.pop %v2237
    %v2240 = vmul.f32 1.0, %v2239
    %v2241 = vrcp.pop %v2238
    %v2242 = vmul.f32 1.0, %v2241
    %v2243 = vadd.f32 %v2207, %v607
    %v2244 = vadd.f32 %v2212, %v614
    %v2245 = vmul.f32 %v2226, %v2243
    %v2246 = vmul.f32 %v2228, %v2244
    %v2247 = vadd.f32 %v1953, %v2245
    %v2248 = vadd.f32 %v1956, %v2246
    %v2249 = vtanh.pop %v2247
    %v2250 = vtanh.pop %v2248
    %v2251 = vsub.f32 1.0, %v2240
    %v2252 = vsub.f32 1.0, %v2242
    %v2253 = vmul.f32 %v2251, %v2249
    %v2254 = vmul.f32 %v2252, %v2250
    %v2255 = vmul.f32 %v2240, %v1957
    %v2256 = vmul.f32 %v2242, %v1958
    %v2257 = vadd.f32 %v2253, %v2255
    %v2258 = vadd.f32 %v2254, %v2256
    %v2259 = vsel %vm1965, 1, 0
    %v2260 = vsel %vm1966, 1, 0
    %2261 = vset.pattern.permute.xlu0 0
    %2262 = vperm.xlu0 %2261, %v2259
    %v2263 = vpop.permute.xlu0 %2262
    %2264 = vset.pattern.permute.xlu0 0
    %2265 = vperm.xlu0 %2264, %v2260
    %v2266 = vpop.permute.xlu0 %2265
    %vm2267 = vcmp.eq.s32.totalorder %v2263, 1
    %vm2268 = vcmp.eq.s32.totalorder %v2266, 1
    %v2269 = vsel %vm2267, %v2257, %v1957
    %v2270 = vsel %vm2268, %v2258, %v1958
    %2271 = vst [vmem:[#allocation3] sm:$0xff] %v2269
    %2272 = vst [vmem:[#allocation3 + $0x8] sm:$0xff] %v2270
    %v2273 = vsel %vm2267, %v2257, 0.0
    %v2274 = vsel %vm2268, %v2258, 0.0
    %2275 = vst [vmem:[%s1949] sm:$0xff] %v2273
    %2276 = vst [vmem:[%s1947 + $0x8] sm:$0xff] %v2274
    %v2277 = vld [vmem:[%s1291] sm:$0xff]
    %v2278 = vld [vmem:[%s1291 + $0x8] sm:$0xff]
    %v2279 = vld [vmem:[%s1291 + $0x10] sm:$0xff]
    %v2280 = vld [vmem:[%s1285 + $0x18] sm:$0xff]
    %v2281 = vld [vmem:[%s1285 + $0x20] sm:$0xff]
    %v2282 = vld [vmem:[%s1285 + $0x28] sm:$0xff]
    %v2283 = vld [vmem:[#allocation3] sm:$0xff]
    %v2284 = vld [vmem:[#allocation3 + $0x8] sm:$0xff]
    %v2285 = vmul.f32 %v2283, %v598
    %v2286 = vmul.f32 %v2284, %v599
    %v2287 = vmul.f32 %v2283, %v600
    %v2288 = vmul.f32 %v2284, %v601
    %v2289 = vsel %vm594, 5, 2
    %v2290 = vsel %vm595, 5, 2
    %vm2291 = vcmp.lt.s32.totalorder %v2289, %v590
    %vm2292 = vcmp.lt.s32.totalorder %v2290, %v590
    %v2293 = vld [vmem:[#allocation10] sm:$0xff]
    %v2294 = vld [vmem:[#allocation10 + $0x8] sm:$0xff]
    %v2295 = vld [vmem:[#allocation10 + $0x10] sm:$0xff]
    %v2296 = vld [vmem:[#allocation10 + $0x18] sm:$0xff]
    %v2297 = vld [vmem:[#allocation10 + $0x20] sm:$0xff]
    %v2298 = vld [vmem:[#allocation10 + $0x28] sm:$0xff]
    %v2299 = vld [vmem:[#allocation10 + $0x30] sm:$0xff]
    %v2300 = vld [vmem:[#allocation10 + $0x38] sm:$0xff]
    %v2301 = vld [vmem:[#allocation10 + $0x40] sm:$0xff]
    %v2302 = vld [vmem:[#allocation10 + $0x48] sm:$0xff]
    %v2303 = vld [vmem:[#allocation10 + $0x50] sm:$0xff]
    %v2304 = vld [vmem:[#allocation10 + $0x58] sm:$0xff]
    %v2305 = vld [vmem:[#allocation10 + $0x60] sm:$0xff]
    %v2306 = vld [vmem:[#allocation10 + $0x68] sm:$0xff]
    %v2307 = vld [vmem:[#allocation10 + $0x70] sm:$0xff]
    %v2308 = vld [vmem:[#allocation10 + $0x78] sm:$0xff]
    %v2309 = vld [vmem:[#allocation10 + $0x80] sm:$0xff]
    %v2310 = vld [vmem:[#allocation10 + $0x88] sm:$0xff]
    %v2311 = vld [vmem:[#allocation10 + $0x90] sm:$0xff]
    %v2312 = vld [vmem:[#allocation10 + $0x98] sm:$0xff]
    %v2313 = vld [vmem:[#allocation10 + $0xa0] sm:$0xff]
    %v2314 = vld [vmem:[#allocation10 + $0xa8] sm:$0xff]
    %v2315 = vld [vmem:[#allocation10 + $0xb0] sm:$0xff]
    %v2316 = vld [vmem:[#allocation10 + $0xb8] sm:$0xff]
    %v2317 = vld [vmem:[#allocation10 + $0xc0] sm:$0xff]
    %v2318 = vld [vmem:[#allocation10 + $0xc8] sm:$0xff]
    %v2319 = vld [vmem:[#allocation10 + $0xd0] sm:$0xff]
    %v2320 = vld [vmem:[#allocation10 + $0xd8] sm:$0xff]
    %v2321 = vld [vmem:[#allocation10 + $0xe0] sm:$0xff]
    %v2322 = vld [vmem:[#allocation10 + $0xe8] sm:$0xff]
    %v2323 = vld [vmem:[#allocation10 + $0xf0] sm:$0xff]
    %v2324 = vld [vmem:[#allocation10 + $0xf8] sm:$0xff]
    %v2325 = vld [vmem:[#allocation10 + $0x100] sm:$0xff]
    %v2326 = vld [vmem:[#allocation10 + $0x108] sm:$0xff]
    %v2327 = vld [vmem:[#allocation10 + $0x110] sm:$0xff]
    %v2328 = vld [vmem:[#allocation10 + $0x118] sm:$0xff]
    %v2329 = vld [vmem:[#allocation10 + $0x120] sm:$0xff]
    %v2330 = vld [vmem:[#allocation10 + $0x128] sm:$0xff]
    %v2331 = vld [vmem:[#allocation10 + $0x130] sm:$0xff]
    %v2332 = vld [vmem:[#allocation10 + $0x138] sm:$0xff]
    %v2333 = vld [vmem:[#allocation10 + $0x140] sm:$0xff]
    %v2334 = vld [vmem:[#allocation10 + $0x148] sm:$0xff]
    %v2335 = vld [vmem:[#allocation10 + $0x150] sm:$0xff]
    %v2336 = vld [vmem:[#allocation10 + $0x158] sm:$0xff]
    %v2337 = vld [vmem:[#allocation10 + $0x160] sm:$0xff]
    %v2338 = vld [vmem:[#allocation10 + $0x168] sm:$0xff]
    %v2339 = vld [vmem:[#allocation10 + $0x170] sm:$0xff]
    %v2340 = vld [vmem:[#allocation10 + $0x178] sm:$0xff]
    %v2341 = vld [vmem:[#allocation10 + $0x180] sm:$0xff]
    %v2342 = vld [vmem:[#allocation10 + $0x188] sm:$0xff]
    %v2343 = vld [vmem:[#allocation10 + $0x190] sm:$0xff]
    %v2344 = vld [vmem:[#allocation10 + $0x198] sm:$0xff]
    %v2345 = vld [vmem:[#allocation10 + $0x1a0] sm:$0xff]
    %v2346 = vld [vmem:[#allocation10 + $0x1a8] sm:$0xff]
    %v2347 = vld [vmem:[#allocation10 + $0x1b0] sm:$0xff]
    %v2348 = vld [vmem:[#allocation10 + $0x1b8] sm:$0xff]
    %v2349 = vld [vmem:[#allocation10 + $0x1c0] sm:$0xff]
    %v2350 = vld [vmem:[#allocation10 + $0x1c8] sm:$0xff]
    %v2351 = vld [vmem:[#allocation10 + $0x1d0] sm:$0xff]
    %v2352 = vld [vmem:[#allocation10 + $0x1d8] sm:$0xff]
    %v2353 = vld [vmem:[#allocation10 + $0x1e0] sm:$0xff]
    %v2354 = vld [vmem:[#allocation10 + $0x1e8] sm:$0xff]
    %v2355 = vld [vmem:[#allocation10 + $0x1f0] sm:$0xff]
    %v2356 = vld [vmem:[#allocation10 + $0x1f8] sm:$0xff]
    %v2357 = vld [vmem:[#allocation10 + $0x200] sm:$0xff]
    %v2358 = vld [vmem:[#allocation10 + $0x208] sm:$0xff]
    %v2359 = vld [vmem:[#allocation10 + $0x210] sm:$0xff]
    %v2360 = vld [vmem:[#allocation10 + $0x218] sm:$0xff]
    %v2361 = vld [vmem:[#allocation10 + $0x220] sm:$0xff]
    %v2362 = vld [vmem:[#allocation10 + $0x228] sm:$0xff]
    %v2363 = vld [vmem:[#allocation10 + $0x230] sm:$0xff]
    %v2364 = vld [vmem:[#allocation10 + $0x238] sm:$0xff]
    %v2365 = vld [vmem:[#allocation10 + $0x240] sm:$0xff]
    %v2366 = vld [vmem:[#allocation10 + $0x248] sm:$0xff]
    %v2367 = vld [vmem:[#allocation10 + $0x250] sm:$0xff]
    %v2368 = vld [vmem:[#allocation10 + $0x258] sm:$0xff]
    %v2369 = vld [vmem:[#allocation10 + $0x260] sm:$0xff]
    %v2370 = vld [vmem:[#allocation10 + $0x268] sm:$0xff]
    %v2371 = vld [vmem:[#allocation10 + $0x270] sm:$0xff]
    %v2372 = vld [vmem:[#allocation10 + $0x278] sm:$0xff]
    %v2373 = vld [vmem:[#allocation10 + $0x280] sm:$0xff]
    %v2374 = vld [vmem:[#allocation10 + $0x288] sm:$0xff]
    %v2375 = vld [vmem:[#allocation10 + $0x290] sm:$0xff]
    %v2376 = vld [vmem:[#allocation10 + $0x298] sm:$0xff]
    %v2377 = vld [vmem:[#allocation10 + $0x2a0] sm:$0xff]
    %v2378 = vld [vmem:[#allocation10 + $0x2a8] sm:$0xff]
    %v2379 = vld [vmem:[#allocation10 + $0x2b0] sm:$0xff]
    %v2380 = vld [vmem:[#allocation10 + $0x2b8] sm:$0xff]
    %v2381 = vld [vmem:[#allocation10 + $0x2c0] sm:$0xff]
    %v2382 = vld [vmem:[#allocation10 + $0x2c8] sm:$0xff]
    %v2383 = vld [vmem:[#allocation10 + $0x2d0] sm:$0xff]
    %v2384 = vld [vmem:[#allocation10 + $0x2d8] sm:$0xff]
    %v2385 = vld [vmem:[#allocation10 + $0x2e0] sm:$0xff]
    %v2386 = vld [vmem:[#allocation10 + $0x2e8] sm:$0xff]
    %v2387 = vld [vmem:[#allocation10 + $0x2f0] sm:$0xff]
    %v2388 = vld [vmem:[#allocation10 + $0x2f8] sm:$0xff]
    %2389 = vmatprep.subr.mxu0 %v2339
    %2390 = vmatpush1.msra.mxu0 %v2338
    %2391 = vmatprep.subr.mxu0 %v2336
    %2392 = vmatpush1.msra.mxu0 %v2335
    %2393 = vmatprep.subr.mxu0 %v2333
    %2394 = vmatpush1.msra.mxu0 %v2332
    %2395 = vmatprep.subr.mxu0 %v2330
    %2396 = vmatpush1.msra.mxu0 %v2329
    %2397 = vmatprep.subr.mxu0 %v2327
    %2398 = vmatpush1.msra.mxu0 %v2326
    %2399 = vmatprep.subr.mxu0 %v2324
    %2400 = vmatpush1.msra.mxu0 %v2323
    %2401 = vmatprep.subr.mxu0 %v2321
    %2402 = vmatpush1.msra.mxu0 %v2320
    %2403 = vmatprep.subr.mxu0 %v2318
    %2404 = vmatpush1.msra.mxu0 %v2317
    %2405 = vmatprep.subr.mxu0 %v2315
    %2406 = vmatpush1.msra.mxu0 %v2314
    %2407 = vmatprep.subr.mxu0 %v2312
    %2408 = vmatpush1.msra.mxu0 %v2311
    %2409 = vmatprep.subr.mxu0 %v2309
    %2410 = vmatpush1.msra.mxu0 %v2308
    %2411 = vmatprep.subr.mxu0 %v2306
    %2412 = vmatpush1.msra.mxu0 %v2305
    %2413 = vmatprep.subr.mxu0 %v2303
    %2414 = vmatpush1.msra.mxu0 %v2302
    %2415 = vmatprep.subr.mxu0 %v2300
    %2416 = vmatpush1.msra.mxu0 %v2299
    %2417 = vmatprep.subr.mxu0 %v2297
    %2418 = vmatpush1.msra.mxu0 %v2296
    %2419 = vmatprep.subr.mxu0 %v2294
    %2420 = vmatpush1.msra.mxu0 %v2293
    %2421 = vmatprep.subr.mxu0 %v2387
    %2422 = vmatpush2.msra.mxu0 %v2386
    %2423 = vmatprep.subr.mxu0 %v2384
    %2424 = vmatpush2.msra.mxu0 %v2383
    %2425 = vmatprep.subr.mxu0 %v2381
    %2426 = vmatpush2.msra.mxu0 %v2380
    %2427 = vmatprep.subr.mxu0 %v2378
    %2428 = vmatpush2.msra.mxu0 %v2377
    %2429 = vmatprep.subr.mxu0 %v2375
    %2430 = vmatpush2.msra.mxu0 %v2374
    %2431 = vmatprep.subr.mxu0 %v2372
    %2432 = vmatpush2.msra.mxu0 %v2371
    %2433 = vmatprep.subr.mxu0 %v2369
    %2434 = vmatpush2.msra.mxu0 %v2368
    %2435 = vmatprep.subr.mxu0 %v2366
    %2436 = vmatpush2.msra.mxu0 %v2365
    %2437 = vmatprep.subr.mxu0 %v2363
    %2438 = vmatpush2.msra.mxu0 %v2362
    %2439 = vmatprep.subr.mxu0 %v2360
    %2440 = vmatpush2.msra.mxu0 %v2359
    %2441 = vmatprep.subr.mxu0 %v2357
    %2442 = vmatpush2.msra.mxu0 %v2356
    %2443 = vmatprep.subr.mxu0 %v2354
    %2444 = vmatpush2.msra.mxu0 %v2353
    %2445 = vmatprep.subr.mxu0 %v2351
    %2446 = vmatpush2.msra.mxu0 %v2350
    %2447 = vmatprep.subr.mxu0 %v2348
    %2448 = vmatpush2.msra.mxu0 %v2347
    %2449 = vmatprep.subr.mxu0 %v2345
    %2450 = vmatpush2.msra.mxu0 %v2344
    %2451 = vmatprep.subr.mxu0 %v2342
    %2452 = vmatpush2.msra.mxu0 %v2341
    %2453 = vmatprep.mubr.f32.mxu0 %v2287
    %2454 = vmatmul.mubr.f32.gmra.mxu0 %v2285
    %v2455 = vpop.f32.mrf.mxu0
    %v2456 = vadd.f32 0.0, %v2455
    %v2457 = vpop.f32.mrf.mxu0
    %v2458 = vadd.f32 0.0, %v2457
    %2459 = vmatprep.mubr.f32.mxu0 %v2288
    %2460 = vmatmul.mubr.f32.gmra.mxu0 %v2286
    %v2461 = vpop.f32.mrf.mxu0
    %v2462 = vadd.f32 0.0, %v2461
    %v2463 = vpop.f32.mrf.mxu0
    %v2464 = vadd.f32 0.0, %v2463
    %2465 = vdwg.mxu0
    %2466 = vmatprep.subr.mxu0 0.0
    %2467 = vmatpush1.msra.mxu0 %v2340
    %2468 = vmatprep.subr.mxu0 0.0
    %2469 = vmatpush1.msra.mxu0 %v2337
    %2470 = vmatprep.subr.mxu0 0.0
    %2471 = vmatpush1.msra.mxu0 %v2334
    %2472 = vmatprep.subr.mxu0 0.0
    %2473 = vmatpush1.msra.mxu0 %v2331
    %2474 = vmatprep.subr.mxu0 0.0
    %2475 = vmatpush1.msra.mxu0 %v2328
    %2476 = vmatprep.subr.mxu0 0.0
    %2477 = vmatpush1.msra.mxu0 %v2325
    %2478 = vmatprep.subr.mxu0 0.0
    %2479 = vmatpush1.msra.mxu0 %v2322
    %2480 = vmatprep.subr.mxu0 0.0
    %2481 = vmatpush1.msra.mxu0 %v2319
    %2482 = vmatprep.subr.mxu0 0.0
    %2483 = vmatpush1.msra.mxu0 %v2316
    %2484 = vmatprep.subr.mxu0 0.0
    %2485 = vmatpush1.msra.mxu0 %v2313
    %2486 = vmatprep.subr.mxu0 0.0
    %2487 = vmatpush1.msra.mxu0 %v2310
    %2488 = vmatprep.subr.mxu0 0.0
    %2489 = vmatpush1.msra.mxu0 %v2307
    %2490 = vmatprep.subr.mxu0 0.0
    %2491 = vmatpush1.msra.mxu0 %v2304
    %2492 = vmatprep.subr.mxu0 0.0
    %2493 = vmatpush1.msra.mxu0 %v2301
    %2494 = vmatprep.subr.mxu0 0.0
    %2495 = vmatpush1.msra.mxu0 %v2298
    %2496 = vmatprep.subr.mxu0 0.0
    %2497 = vmatpush1.msra.mxu0 %v2295
    %2498 = vmatprep.subr.mxu0 0.0
    %2499 = vmatpush2.msra.mxu0 %v2388
    %2500 = vmatprep.subr.mxu0 0.0
    %2501 = vmatpush2.msra.mxu0 %v2385
    %2502 = vmatprep.subr.mxu0 0.0
    %2503 = vmatpush2.msra.mxu0 %v2382
    %2504 = vmatprep.subr.mxu0 0.0
    %2505 = vmatpush2.msra.mxu0 %v2379
    %2506 = vmatprep.subr.mxu0 0.0
    %2507 = vmatpush2.msra.mxu0 %v2376
    %2508 = vmatprep.subr.mxu0 0.0
    %2509 = vmatpush2.msra.mxu0 %v2373
    %2510 = vmatprep.subr.mxu0 0.0
    %2511 = vmatpush2.msra.mxu0 %v2370
    %2512 = vmatprep.subr.mxu0 0.0
    %2513 = vmatpush2.msra.mxu0 %v2367
    %2514 = vmatprep.subr.mxu0 0.0
    %2515 = vmatpush2.msra.mxu0 %v2364
    %2516 = vmatprep.subr.mxu0 0.0
    %2517 = vmatpush2.msra.mxu0 %v2361
    %2518 = vmatprep.subr.mxu0 0.0
    %2519 = vmatpush2.msra.mxu0 %v2358
    %2520 = vmatprep.subr.mxu0 0.0
    %2521 = vmatpush2.msra.mxu0 %v2355
    %2522 = vmatprep.subr.mxu0 0.0
    %2523 = vmatpush2.msra.mxu0 %v2352
    %2524 = vmatprep.subr.mxu0 0.0
    %2525 = vmatpush2.msra.mxu0 %v2349
    %2526 = vmatprep.subr.mxu0 0.0
    %2527 = vmatpush2.msra.mxu0 %v2346
    %2528 = vmatprep.subr.mxu0 0.0
    %2529 = vmatpush2.msra.mxu0 %v2343
    %2530 = vmatprep.mubr.f32.mxu0 %v2287
    %2531 = vmatmul.mubr.f32.gmra.mxu0 %v2285
    %v2532 = vpop.f32.mrf.mxu0
    %v2533 = vadd.f32 0.0, %v2532
    %v2534 = vpop.f32.mrf.mxu0
    %2535 = vmatprep.mubr.f32.mxu0 %v2288
    %2536 = vmatmul.mubr.f32.gmra.mxu0 %v2286
    %v2537 = vpop.f32.mrf.mxu0
    %v2538 = vadd.f32 0.0, %v2537
    %v2539 = vpop.f32.mrf.mxu0
    %2540 = vdwg.mxu0
    %v2541 = vadd.f32 %v2277, %v2456
    %v2542 = vadd.f32 %v2280, %v2462
    %v2543 = vxor.u32 %v2541, 2147483648
    %v2544 = vxor.u32 %v2542, 2147483648
    %v2545 = vmul.f32 %v2543, 1.442695
    %v2546 = vpow.pop %v2545
    %v2547 = vmul.f32 %v2544, 1.442695
    %v2548 = vpow.pop %v2547
    %v2549 = vadd.f32 %v2546, 1.0
    %v2550 = vadd.f32 %v2548, 1.0
    %v2551 = vrcp.pop %v2549
    %v2552 = vmul.f32 1.0, %v2551
    %v2553 = vrcp.pop %v2550
    %v2554 = vmul.f32 1.0, %v2553
    %v2555 = vadd.f32 %v2278, %v2458
    %v2556 = vadd.f32 %v2281, %v2464
    %v2557 = vxor.u32 %v2555, 2147483648
    %v2558 = vxor.u32 %v2556, 2147483648
    %v2559 = vmul.f32 %v2557, 1.442695
    %v2560 = vpow.pop %v2559
    %v2561 = vmul.f32 %v2558, 1.442695
    %v2562 = vpow.pop %v2561
    %v2563 = vadd.f32 %v2560, 1.0
    %v2564 = vadd.f32 %v2562, 1.0
    %v2565 = vrcp.pop %v2563
    %v2566 = vmul.f32 1.0, %v2565
    %v2567 = vrcp.pop %v2564
    %v2568 = vmul.f32 1.0, %v2567
    %v2569 = vadd.f32 %v2533, %v607
    %v2570 = vadd.f32 %v2538, %v614
    %v2571 = vmul.f32 %v2552, %v2569
    %v2572 = vmul.f32 %v2554, %v2570
    %v2573 = vadd.f32 %v2279, %v2571
    %v2574 = vadd.f32 %v2282, %v2572
    %v2575 = vtanh.pop %v2573
    %v2576 = vtanh.pop %v2574
    %v2577 = vsub.f32 1.0, %v2566
    %v2578 = vsub.f32 1.0, %v2568
    %v2579 = vmul.f32 %v2577, %v2575
    %v2580 = vmul.f32 %v2578, %v2576
    %v2581 = vmul.f32 %v2566, %v2283
    %v2582 = vmul.f32 %v2568, %v2284
    %v2583 = vadd.f32 %v2579, %v2581
    %v2584 = vadd.f32 %v2580, %v2582
    %v2585 = vsel %vm2291, 1, 0
    %v2586 = vsel %vm2292, 1, 0
    %2587 = vset.pattern.permute.xlu0 0
    %2588 = vperm.xlu0 %2587, %v2585
    %v2589 = vpop.permute.xlu0 %2588
    %2590 = vset.pattern.permute.xlu0 0
    %2591 = vperm.xlu0 %2590, %v2586
    %v2592 = vpop.permute.xlu0 %2591
    %vm2593 = vcmp.eq.s32.totalorder %v2589, 1
    %vm2594 = vcmp.eq.s32.totalorder %v2592, 1
    %v2595 = vsel %vm2593, %v2583, %v2283
    %v2596 = vsel %vm2594, %v2584, %v2284
    %2597 = vst [vmem:[#allocation3] sm:$0xff] %v2595
    %2598 = vst [vmem:[#allocation3 + $0x8] sm:$0xff] %v2596
    %v2599 = vsel %vm2593, %v2583, 0.0
    %v2600 = vsel %vm2594, %v2584, 0.0
    %2601 = vst [vmem:[%s1615] sm:$0xff] %v2599
    %2602 = vst [vmem:[%s1613 + $0x8] sm:$0xff] %v2600
    %v2603 = vld [vmem:[%s957] sm:$0xff]
    %v2604 = vld [vmem:[%s957 + $0x8] sm:$0xff]
    %v2605 = vld [vmem:[%s957 + $0x10] sm:$0xff]
    %v2606 = vld [vmem:[%s951 + $0x18] sm:$0xff]
    %v2607 = vld [vmem:[%s951 + $0x20] sm:$0xff]
    %v2608 = vld [vmem:[%s951 + $0x28] sm:$0xff]
    %v2609 = vld [vmem:[#allocation3] sm:$0xff]
    %v2610 = vld [vmem:[#allocation3 + $0x8] sm:$0xff]
    %v2611 = vmul.f32 %v2609, %v598
    %v2612 = vmul.f32 %v2610, %v599
    %v2613 = vmul.f32 %v2609, %v600
    %v2614 = vmul.f32 %v2610, %v601
    %v2615 = vsel %vm594, 6, 1
    %v2616 = vsel %vm595, 6, 1
    %vm2617 = vcmp.lt.s32.totalorder %v2615, %v590
    %vm2618 = vcmp.lt.s32.totalorder %v2616, %v590
    %v2619 = vld [vmem:[#allocation10] sm:$0xff]
    %v2620 = vld [vmem:[#allocation10 + $0x8] sm:$0xff]
    %v2621 = vld [vmem:[#allocation10 + $0x10] sm:$0xff]
    %v2622 = vld [vmem:[#allocation10 + $0x18] sm:$0xff]
    %v2623 = vld [vmem:[#allocation10 + $0x20] sm:$0xff]
    %v2624 = vld [vmem:[#allocation10 + $0x28] sm:$0xff]
    %v2625 = vld [vmem:[#allocation10 + $0x30] sm:$0xff]
    %v2626 = vld [vmem:[#allocation10 + $0x38] sm:$0xff]
    %v2627 = vld [vmem:[#allocation10 + $0x40] sm:$0xff]
    %v2628 = vld [vmem:[#allocation10 + $0x48] sm:$0xff]
    %v2629 = vld [vmem:[#allocation10 + $0x50] sm:$0xff]
    %v2630 = vld [vmem:[#allocation10 + $0x58] sm:$0xff]
    %v2631 = vld [vmem:[#allocation10 + $0x60] sm:$0xff]
    %v2632 = vld [vmem:[#allocation10 + $0x68] sm:$0xff]
    %v2633 = vld [vmem:[#allocation10 + $0x70] sm:$0xff]
    %v2634 = vld [vmem:[#allocation10 + $0x78] sm:$0xff]
    %v2635 = vld [vmem:[#allocation10 + $0x80] sm:$0xff]
    %v2636 = vld [vmem:[#allocation10 + $0x88] sm:$0xff]
    %v2637 = vld [vmem:[#allocation10 + $0x90] sm:$0xff]
    %v2638 = vld [vmem:[#allocation10 + $0x98] sm:$0xff]
    %v2639 = vld [vmem:[#allocation10 + $0xa0] sm:$0xff]
    %v2640 = vld [vmem:[#allocation10 + $0xa8] sm:$0xff]
    %v2641 = vld [vmem:[#allocation10 + $0xb0] sm:$0xff]
    %v2642 = vld [vmem:[#allocation10 + $0xb8] sm:$0xff]
    %v2643 = vld [vmem:[#allocation10 + $0xc0] sm:$0xff]
    %v2644 = vld [vmem:[#allocation10 + $0xc8] sm:$0xff]
    %v2645 = vld [vmem:[#allocation10 + $0xd0] sm:$0xff]
    %v2646 = vld [vmem:[#allocation10 + $0xd8] sm:$0xff]
    %v2647 = vld [vmem:[#allocation10 + $0xe0] sm:$0xff]
    %v2648 = vld [vmem:[#allocation10 + $0xe8] sm:$0xff]
    %v2649 = vld [vmem:[#allocation10 + $0xf0] sm:$0xff]
    %v2650 = vld [vmem:[#allocation10 + $0xf8] sm:$0xff]
    %v2651 = vld [vmem:[#allocation10 + $0x100] sm:$0xff]
    %v2652 = vld [vmem:[#allocation10 + $0x108] sm:$0xff]
    %v2653 = vld [vmem:[#allocation10 + $0x110] sm:$0xff]
    %v2654 = vld [vmem:[#allocation10 + $0x118] sm:$0xff]
    %v2655 = vld [vmem:[#allocation10 + $0x120] sm:$0xff]
    %v2656 = vld [vmem:[#allocation10 + $0x128] sm:$0xff]
    %v2657 = vld [vmem:[#allocation10 + $0x130] sm:$0xff]
    %v2658 = vld [vmem:[#allocation10 + $0x138] sm:$0xff]
    %v2659 = vld [vmem:[#allocation10 + $0x140] sm:$0xff]
    %v2660 = vld [vmem:[#allocation10 + $0x148] sm:$0xff]
    %v2661 = vld [vmem:[#allocation10 + $0x150] sm:$0xff]
    %v2662 = vld [vmem:[#allocation10 + $0x158] sm:$0xff]
    %v2663 = vld [vmem:[#allocation10 + $0x160] sm:$0xff]
    %v2664 = vld [vmem:[#allocation10 + $0x168] sm:$0xff]
    %v2665 = vld [vmem:[#allocation10 + $0x170] sm:$0xff]
    %v2666 = vld [vmem:[#allocation10 + $0x178] sm:$0xff]
    %v2667 = vld [vmem:[#allocation10 + $0x180] sm:$0xff]
    %v2668 = vld [vmem:[#allocation10 + $0x188] sm:$0xff]
    %v2669 = vld [vmem:[#allocation10 + $0x190] sm:$0xff]
    %v2670 = vld [vmem:[#allocation10 + $0x198] sm:$0xff]
    %v2671 = vld [vmem:[#allocation10 + $0x1a0] sm:$0xff]
    %v2672 = vld [vmem:[#allocation10 + $0x1a8] sm:$0xff]
    %v2673 = vld [vmem:[#allocation10 + $0x1b0] sm:$0xff]
    %v2674 = vld [vmem:[#allocation10 + $0x1b8] sm:$0xff]
    %v2675 = vld [vmem:[#allocation10 + $0x1c0] sm:$0xff]
    %v2676 = vld [vmem:[#allocation10 + $0x1c8] sm:$0xff]
    %v2677 = vld [vmem:[#allocation10 + $0x1d0] sm:$0xff]
    %v2678 = vld [vmem:[#allocation10 + $0x1d8] sm:$0xff]
    %v2679 = vld [vmem:[#allocation10 + $0x1e0] sm:$0xff]
    %v2680 = vld [vmem:[#allocation10 + $0x1e8] sm:$0xff]
    %v2681 = vld [vmem:[#allocation10 + $0x1f0] sm:$0xff]
    %v2682 = vld [vmem:[#allocation10 + $0x1f8] sm:$0xff]
    %v2683 = vld [vmem:[#allocation10 + $0x200] sm:$0xff]
    %v2684 = vld [vmem:[#allocation10 + $0x208] sm:$0xff]
    %v2685 = vld [vmem:[#allocation10 + $0x210] sm:$0xff]
    %v2686 = vld [vmem:[#allocation10 + $0x218] sm:$0xff]
    %v2687 = vld [vmem:[#allocation10 + $0x220] sm:$0xff]
    %v2688 = vld [vmem:[#allocation10 + $0x228] sm:$0xff]
    %v2689 = vld [vmem:[#allocation10 + $0x230] sm:$0xff]
    %v2690 = vld [vmem:[#allocation10 + $0x238] sm:$0xff]
    %v2691 = vld [vmem:[#allocation10 + $0x240] sm:$0xff]
    %v2692 = vld [vmem:[#allocation10 + $0x248] sm:$0xff]
    %v2693 = vld [vmem:[#allocation10 + $0x250] sm:$0xff]
    %v2694 = vld [vmem:[#allocation10 + $0x258] sm:$0xff]
    %v2695 = vld [vmem:[#allocation10 + $0x260] sm:$0xff]
    %v2696 = vld [vmem:[#allocation10 + $0x268] sm:$0xff]
    %v2697 = vld [vmem:[#allocation10 + $0x270] sm:$0xff]
    %v2698 = vld [vmem:[#allocation10 + $0x278] sm:$0xff]
    %v2699 = vld [vmem:[#allocation10 + $0x280] sm:$0xff]
    %v2700 = vld [vmem:[#allocation10 + $0x288] sm:$0xff]
    %v2701 = vld [vmem:[#allocation10 + $0x290] sm:$0xff]
    %v2702 = vld [vmem:[#allocation10 + $0x298] sm:$0xff]
    %v2703 = vld [vmem:[#allocation10 + $0x2a0] sm:$0xff]
    %v2704 = vld [vmem:[#allocation10 + $0x2a8] sm:$0xff]
    %v2705 = vld [vmem:[#allocation10 + $0x2b0] sm:$0xff]
    %v2706 = vld [vmem:[#allocation10 + $0x2b8] sm:$0xff]
    %v2707 = vld [vmem:[#allocation10 + $0x2c0] sm:$0xff]
    %v2708 = vld [vmem:[#allocation10 + $0x2c8] sm:$0xff]
    %v2709 = vld [vmem:[#allocation10 + $0x2d0] sm:$0xff]
    %v2710 = vld [vmem:[#allocation10 + $0x2d8] sm:$0xff]
    %v2711 = vld [vmem:[#allocation10 + $0x2e0] sm:$0xff]
    %v2712 = vld [vmem:[#allocation10 + $0x2e8] sm:$0xff]
    %v2713 = vld [vmem:[#allocation10 + $0x2f0] sm:$0xff]
    %v2714 = vld [vmem:[#allocation10 + $0x2f8] sm:$0xff]
    %2715 = vmatprep.subr.mxu0 %v2665
    %2716 = vmatpush1.msra.mxu0 %v2664
    %2717 = vmatprep.subr.mxu0 %v2662
    %2718 = vmatpush1.msra.mxu0 %v2661
    %2719 = vmatprep.subr.mxu0 %v2659
    %2720 = vmatpush1.msra.mxu0 %v2658
    %2721 = vmatprep.subr.mxu0 %v2656
    %2722 = vmatpush1.msra.mxu0 %v2655
    %2723 = vmatprep.subr.mxu0 %v2653
    %2724 = vmatpush1.msra.mxu0 %v2652
    %2725 = vmatprep.subr.mxu0 %v2650
    %2726 = vmatpush1.msra.mxu0 %v2649
    %2727 = vmatprep.subr.mxu0 %v2647
    %2728 = vmatpush1.msra.mxu0 %v2646
    %2729 = vmatprep.subr.mxu0 %v2644
    %2730 = vmatpush1.msra.mxu0 %v2643
    %2731 = vmatprep.subr.mxu0 %v2641
    %2732 = vmatpush1.msra.mxu0 %v2640
    %2733 = vmatprep.subr.mxu0 %v2638
    %2734 = vmatpush1.msra.mxu0 %v2637
    %2735 = vmatprep.subr.mxu0 %v2635
    %2736 = vmatpush1.msra.mxu0 %v2634
    %2737 = vmatprep.subr.mxu0 %v2632
    %2738 = vmatpush1.msra.mxu0 %v2631
    %2739 = vmatprep.subr.mxu0 %v2629
    %2740 = vmatpush1.msra.mxu0 %v2628
    %2741 = vmatprep.subr.mxu0 %v2626
    %2742 = vmatpush1.msra.mxu0 %v2625
    %2743 = vmatprep.subr.mxu0 %v2623
    %2744 = vmatpush1.msra.mxu0 %v2622
    %2745 = vmatprep.subr.mxu0 %v2620
    %2746 = vmatpush1.msra.mxu0 %v2619
    %2747 = vmatprep.subr.mxu0 %v2713
    %2748 = vmatpush2.msra.mxu0 %v2712
    %2749 = vmatprep.subr.mxu0 %v2710
    %2750 = vmatpush2.msra.mxu0 %v2709
    %2751 = vmatprep.subr.mxu0 %v2707
    %2752 = vmatpush2.msra.mxu0 %v2706
    %2753 = vmatprep.subr.mxu0 %v2704
    %2754 = vmatpush2.msra.mxu0 %v2703
    %2755 = vmatprep.subr.mxu0 %v2701
    %2756 = vmatpush2.msra.mxu0 %v2700
    %2757 = vmatprep.subr.mxu0 %v2698
    %2758 = vmatpush2.msra.mxu0 %v2697
    %2759 = vmatprep.subr.mxu0 %v2695
    %2760 = vmatpush2.msra.mxu0 %v2694
    %2761 = vmatprep.subr.mxu0 %v2692
    %2762 = vmatpush2.msra.mxu0 %v2691
    %2763 = vmatprep.subr.mxu0 %v2689
    %2764 = vmatpush2.msra.mxu0 %v2688
    %2765 = vmatprep.subr.mxu0 %v2686
    %2766 = vmatpush2.msra.mxu0 %v2685
    %2767 = vmatprep.subr.mxu0 %v2683
    %2768 = vmatpush2.msra.mxu0 %v2682
    %2769 = vmatprep.subr.mxu0 %v2680
    %2770 = vmatpush2.msra.mxu0 %v2679
    %2771 = vmatprep.subr.mxu0 %v2677
    %2772 = vmatpush2.msra.mxu0 %v2676
    %2773 = vmatprep.subr.mxu0 %v2674
    %2774 = vmatpush2.msra.mxu0 %v2673
    %2775 = vmatprep.subr.mxu0 %v2671
    %2776 = vmatpush2.msra.mxu0 %v2670
    %2777 = vmatprep.subr.mxu0 %v2668
    %2778 = vmatpush2.msra.mxu0 %v2667
    %2779 = vmatprep.mubr.f32.mxu0 %v2613
    %2780 = vmatmul.mubr.f32.gmra.mxu0 %v2611
    %v2781 = vpop.f32.mrf.mxu0
    %v2782 = vadd.f32 0.0, %v2781
    %v2783 = vpop.f32.mrf.mxu0
    %v2784 = vadd.f32 0.0, %v2783
    %2785 = vmatprep.mubr.f32.mxu0 %v2614
    %2786 = vmatmul.mubr.f32.gmra.mxu0 %v2612
    %v2787 = vpop.f32.mrf.mxu0
    %v2788 = vadd.f32 0.0, %v2787
    %v2789 = vpop.f32.mrf.mxu0
    %v2790 = vadd.f32 0.0, %v2789
    %2791 = vdwg.mxu0
    %2792 = vmatprep.subr.mxu0 0.0
    %2793 = vmatpush1.msra.mxu0 %v2666
    %2794 = vmatprep.subr.mxu0 0.0
    %2795 = vmatpush1.msra.mxu0 %v2663
    %2796 = vmatprep.subr.mxu0 0.0
    %2797 = vmatpush1.msra.mxu0 %v2660
    %2798 = vmatprep.subr.mxu0 0.0
    %2799 = vmatpush1.msra.mxu0 %v2657
    %2800 = vmatprep.subr.mxu0 0.0
    %2801 = vmatpush1.msra.mxu0 %v2654
    %2802 = vmatprep.subr.mxu0 0.0
    %2803 = vmatpush1.msra.mxu0 %v2651
    %2804 = vmatprep.subr.mxu0 0.0
    %2805 = vmatpush1.msra.mxu0 %v2648
    %2806 = vmatprep.subr.mxu0 0.0
    %2807 = vmatpush1.msra.mxu0 %v2645
    %2808 = vmatprep.subr.mxu0 0.0
    %2809 = vmatpush1.msra.mxu0 %v2642
    %2810 = vmatprep.subr.mxu0 0.0
    %2811 = vmatpush1.msra.mxu0 %v2639
    %2812 = vmatprep.subr.mxu0 0.0
    %2813 = vmatpush1.msra.mxu0 %v2636
    %2814 = vmatprep.subr.mxu0 0.0
    %2815 = vmatpush1.msra.mxu0 %v2633
    %2816 = vmatprep.subr.mxu0 0.0
    %2817 = vmatpush1.msra.mxu0 %v2630
    %2818 = vmatprep.subr.mxu0 0.0
    %2819 = vmatpush1.msra.mxu0 %v2627
    %2820 = vmatprep.subr.mxu0 0.0
    %2821 = vmatpush1.msra.mxu0 %v2624
    %2822 = vmatprep.subr.mxu0 0.0
    %2823 = vmatpush1.msra.mxu0 %v2621
    %2824 = vmatprep.subr.mxu0 0.0
    %2825 = vmatpush2.msra.mxu0 %v2714
    %2826 = vmatprep.subr.mxu0 0.0
    %2827 = vmatpush2.msra.mxu0 %v2711
    %2828 = vmatprep.subr.mxu0 0.0
    %2829 = vmatpush2.msra.mxu0 %v2708
    %2830 = vmatprep.subr.mxu0 0.0
    %2831 = vmatpush2.msra.mxu0 %v2705
    %2832 = vmatprep.subr.mxu0 0.0
    %2833 = vmatpush2.msra.mxu0 %v2702
    %2834 = vmatprep.subr.mxu0 0.0
    %2835 = vmatpush2.msra.mxu0 %v2699
    %2836 = vmatprep.subr.mxu0 0.0
    %2837 = vmatpush2.msra.mxu0 %v2696
    %2838 = vmatprep.subr.mxu0 0.0
    %2839 = vmatpush2.msra.mxu0 %v2693
    %2840 = vmatprep.subr.mxu0 0.0
    %2841 = vmatpush2.msra.mxu0 %v2690
    %2842 = vmatprep.subr.mxu0 0.0
    %2843 = vmatpush2.msra.mxu0 %v2687
    %2844 = vmatprep.subr.mxu0 0.0
    %2845 = vmatpush2.msra.mxu0 %v2684
    %2846 = vmatprep.subr.mxu0 0.0
    %2847 = vmatpush2.msra.mxu0 %v2681
    %2848 = vmatprep.subr.mxu0 0.0
    %2849 = vmatpush2.msra.mxu0 %v2678
    %2850 = vmatprep.subr.mxu0 0.0
    %2851 = vmatpush2.msra.mxu0 %v2675
    %2852 = vmatprep.subr.mxu0 0.0
    %2853 = vmatpush2.msra.mxu0 %v2672
    %2854 = vmatprep.subr.mxu0 0.0
    %2855 = vmatpush2.msra.mxu0 %v2669
    %2856 = vmatprep.mubr.f32.mxu0 %v2613
    %2857 = vmatmul.mubr.f32.gmra.mxu0 %v2611
    %v2858 = vpop.f32.mrf.mxu0
    %v2859 = vadd.f32 0.0, %v2858
    %v2860 = vpop.f32.mrf.mxu0
    %2861 = vmatprep.mubr.f32.mxu0 %v2614
    %2862 = vmatmul.mubr.f32.gmra.mxu0 %v2612
    %v2863 = vpop.f32.mrf.mxu0
    %v2864 = vadd.f32 0.0, %v2863
    %v2865 = vpop.f32.mrf.mxu0
    %2866 = vdwg.mxu0
    %v2867 = vadd.f32 %v2603, %v2782
    %v2868 = vadd.f32 %v2606, %v2788
    %v2869 = vxor.u32 %v2867, 2147483648
    %v2870 = vxor.u32 %v2868, 2147483648
    %v2871 = vmul.f32 %v2869, 1.442695
    %v2872 = vpow.pop %v2871
    %v2873 = vmul.f32 %v2870, 1.442695
    %v2874 = vpow.pop %v2873
    %v2875 = vadd.f32 %v2872, 1.0
    %v2876 = vadd.f32 %v2874, 1.0
    %v2877 = vrcp.pop %v2875
    %v2878 = vmul.f32 1.0, %v2877
    %v2879 = vrcp.pop %v2876
    %v2880 = vmul.f32 1.0, %v2879
    %v2881 = vadd.f32 %v2604, %v2784
    %v2882 = vadd.f32 %v2607, %v2790
    %v2883 = vxor.u32 %v2881, 2147483648
    %v2884 = vxor.u32 %v2882, 2147483648
    %v2885 = vmul.f32 %v2883, 1.442695
    %v2886 = vpow.pop %v2885
    %v2887 = vmul.f32 %v2884, 1.442695
    %v2888 = vpow.pop %v2887
    %v2889 = vadd.f32 %v2886, 1.0
    %v2890 = vadd.f32 %v2888, 1.0
    %v2891 = vrcp.pop %v2889
    %v2892 = vmul.f32 1.0, %v2891
    %v2893 = vrcp.pop %v2890
    %v2894 = vmul.f32 1.0, %v2893
    %v2895 = vadd.f32 %v2859, %v607
    %v2896 = vadd.f32 %v2864, %v614
    %v2897 = vmul.f32 %v2878, %v2895
    %v2898 = vmul.f32 %v2880, %v2896
    %v2899 = vadd.f32 %v2605, %v2897
    %v2900 = vadd.f32 %v2608, %v2898
    %v2901 = vtanh.pop %v2899
    %v2902 = vtanh.pop %v2900
    %v2903 = vsub.f32 1.0, %v2892
    %v2904 = vsub.f32 1.0, %v2894
    %v2905 = vmul.f32 %v2903, %v2901
    %v2906 = vmul.f32 %v2904, %v2902
    %v2907 = vmul.f32 %v2892, %v2609
    %v2908 = vmul.f32 %v2894, %v2610
    %v2909 = vadd.f32 %v2905, %v2907
    %v2910 = vadd.f32 %v2906, %v2908
    %v2911 = vsel %vm2617, 1, 0
    %v2912 = vsel %vm2618, 1, 0
    %2913 = vset.pattern.permute.xlu0 0
    %2914 = vperm.xlu0 %2913, %v2911
    %v2915 = vpop.permute.xlu0 %2914
    %2916 = vset.pattern.permute.xlu0 0
    %2917 = vperm.xlu0 %2916, %v2912
    %v2918 = vpop.permute.xlu0 %2917
    %vm2919 = vcmp.eq.s32.totalorder %v2915, 1
    %vm2920 = vcmp.eq.s32.totalorder %v2918, 1
    %v2921 = vsel %vm2919, %v2909, %v2609
    %v2922 = vsel %vm2920, %v2910, %v2610
    %2923 = vst [vmem:[#allocation3] sm:$0xff] %v2921
    %2924 = vst [vmem:[#allocation3 + $0x8] sm:$0xff] %v2922
    %v2925 = vsel %vm2919, %v2909, 0.0
    %v2926 = vsel %vm2920, %v2910, 0.0
    %2927 = vst [vmem:[%s1281] sm:$0xff] %v2925
    %2928 = vst [vmem:[%s1279 + $0x8] sm:$0xff] %v2926
    %v2929 = vld [vmem:[%s624] sm:$0xff]
    %v2930 = vld [vmem:[%s624 + $0x8] sm:$0xff]
    %v2931 = vld [vmem:[%s624 + $0x10] sm:$0xff]
    %v2932 = vld [vmem:[%s618 + $0x18] sm:$0xff]
    %v2933 = vld [vmem:[%s618 + $0x20] sm:$0xff]
    %v2934 = vld [vmem:[%s618 + $0x28] sm:$0xff]
    %v2935 = vld [vmem:[#allocation3] sm:$0xff]
    %v2936 = vld [vmem:[#allocation3 + $0x8] sm:$0xff]
    %v2937 = vmul.f32 %v2935, %v598
    %v2938 = vmul.f32 %v2936, %v599
    %v2939 = vmul.f32 %v2935, %v600
    %v2940 = vmul.f32 %v2936, %v601
    %v2941 = vsel %vm594, 7, 0
    %v2942 = vsel %vm595, 7, 0
    %vm2943 = vcmp.lt.s32.totalorder %v2941, %v590
    %vm2944 = vcmp.lt.s32.totalorder %v2942, %v590
    %v2945 = vld [vmem:[#allocation10] sm:$0xff]
    %v2946 = vld [vmem:[#allocation10 + $0x8] sm:$0xff]
    %v2947 = vld [vmem:[#allocation10 + $0x10] sm:$0xff]
    %v2948 = vld [vmem:[#allocation10 + $0x18] sm:$0xff]
    %v2949 = vld [vmem:[#allocation10 + $0x20] sm:$0xff]
    %v2950 = vld [vmem:[#allocation10 + $0x28] sm:$0xff]
    %v2951 = vld [vmem:[#allocation10 + $0x30] sm:$0xff]
    %v2952 = vld [vmem:[#allocation10 + $0x38] sm:$0xff]
    %v2953 = vld [vmem:[#allocation10 + $0x40] sm:$0xff]
    %v2954 = vld [vmem:[#allocation10 + $0x48] sm:$0xff]
    %v2955 = vld [vmem:[#allocation10 + $0x50] sm:$0xff]
    %v2956 = vld [vmem:[#allocation10 + $0x58] sm:$0xff]
    %v2957 = vld [vmem:[#allocation10 + $0x60] sm:$0xff]
    %v2958 = vld [vmem:[#allocation10 + $0x68] sm:$0xff]
    %v2959 = vld [vmem:[#allocation10 + $0x70] sm:$0xff]
    %v2960 = vld [vmem:[#allocation10 + $0x78] sm:$0xff]
    %v2961 = vld [vmem:[#allocation10 + $0x80] sm:$0xff]
    %v2962 = vld [vmem:[#allocation10 + $0x88] sm:$0xff]
    %v2963 = vld [vmem:[#allocation10 + $0x90] sm:$0xff]
    %v2964 = vld [vmem:[#allocation10 + $0x98] sm:$0xff]
    %v2965 = vld [vmem:[#allocation10 + $0xa0] sm:$0xff]
    %v2966 = vld [vmem:[#allocation10 + $0xa8] sm:$0xff]
    %v2967 = vld [vmem:[#allocation10 + $0xb0] sm:$0xff]
    %v2968 = vld [vmem:[#allocation10 + $0xb8] sm:$0xff]
    %v2969 = vld [vmem:[#allocation10 + $0xc0] sm:$0xff]
    %v2970 = vld [vmem:[#allocation10 + $0xc8] sm:$0xff]
    %v2971 = vld [vmem:[#allocation10 + $0xd0] sm:$0xff]
    %v2972 = vld [vmem:[#allocation10 + $0xd8] sm:$0xff]
    %v2973 = vld [vmem:[#allocation10 + $0xe0] sm:$0xff]
    %v2974 = vld [vmem:[#allocation10 + $0xe8] sm:$0xff]
    %v2975 = vld [vmem:[#allocation10 + $0xf0] sm:$0xff]
    %v2976 = vld [vmem:[#allocation10 + $0xf8] sm:$0xff]
    %v2977 = vld [vmem:[#allocation10 + $0x100] sm:$0xff]
    %v2978 = vld [vmem:[#allocation10 + $0x108] sm:$0xff]
    %v2979 = vld [vmem:[#allocation10 + $0x110] sm:$0xff]
    %v2980 = vld [vmem:[#allocation10 + $0x118] sm:$0xff]
    %v2981 = vld [vmem:[#allocation10 + $0x120] sm:$0xff]
    %v2982 = vld [vmem:[#allocation10 + $0x128] sm:$0xff]
    %v2983 = vld [vmem:[#allocation10 + $0x130] sm:$0xff]
    %v2984 = vld [vmem:[#allocation10 + $0x138] sm:$0xff]
    %v2985 = vld [vmem:[#allocation10 + $0x140] sm:$0xff]
    %v2986 = vld [vmem:[#allocation10 + $0x148] sm:$0xff]
    %v2987 = vld [vmem:[#allocation10 + $0x150] sm:$0xff]
    %v2988 = vld [vmem:[#allocation10 + $0x158] sm:$0xff]
    %v2989 = vld [vmem:[#allocation10 + $0x160] sm:$0xff]
    %v2990 = vld [vmem:[#allocation10 + $0x168] sm:$0xff]
    %v2991 = vld [vmem:[#allocation10 + $0x170] sm:$0xff]
    %v2992 = vld [vmem:[#allocation10 + $0x178] sm:$0xff]
    %v2993 = vld [vmem:[#allocation10 + $0x180] sm:$0xff]
    %v2994 = vld [vmem:[#allocation10 + $0x188] sm:$0xff]
    %v2995 = vld [vmem:[#allocation10 + $0x190] sm:$0xff]
    %v2996 = vld [vmem:[#allocation10 + $0x198] sm:$0xff]
    %v2997 = vld [vmem:[#allocation10 + $0x1a0] sm:$0xff]
    %v2998 = vld [vmem:[#allocation10 + $0x1a8] sm:$0xff]
    %v2999 = vld [vmem:[#allocation10 + $0x1b0] sm:$0xff]
    %v3000 = vld [vmem:[#allocation10 + $0x1b8] sm:$0xff]
    %v3001 = vld [vmem:[#allocation10 + $0x1c0] sm:$0xff]
    %v3002 = vld [vmem:[#allocation10 + $0x1c8] sm:$0xff]
    %v3003 = vld [vmem:[#allocation10 + $0x1d0] sm:$0xff]
    %v3004 = vld [vmem:[#allocation10 + $0x1d8] sm:$0xff]
    %v3005 = vld [vmem:[#allocation10 + $0x1e0] sm:$0xff]
    %v3006 = vld [vmem:[#allocation10 + $0x1e8] sm:$0xff]
    %v3007 = vld [vmem:[#allocation10 + $0x1f0] sm:$0xff]
    %v3008 = vld [vmem:[#allocation10 + $0x1f8] sm:$0xff]
    %v3009 = vld [vmem:[#allocation10 + $0x200] sm:$0xff]
    %v3010 = vld [vmem:[#allocation10 + $0x208] sm:$0xff]
    %v3011 = vld [vmem:[#allocation10 + $0x210] sm:$0xff]
    %v3012 = vld [vmem:[#allocation10 + $0x218] sm:$0xff]
    %v3013 = vld [vmem:[#allocation10 + $0x220] sm:$0xff]
    %v3014 = vld [vmem:[#allocation10 + $0x228] sm:$0xff]
    %v3015 = vld [vmem:[#allocation10 + $0x230] sm:$0xff]
    %v3016 = vld [vmem:[#allocation10 + $0x238] sm:$0xff]
    %v3017 = vld [vmem:[#allocation10 + $0x240] sm:$0xff]
    %v3018 = vld [vmem:[#allocation10 + $0x248] sm:$0xff]
    %v3019 = vld [vmem:[#allocation10 + $0x250] sm:$0xff]
    %v3020 = vld [vmem:[#allocation10 + $0x258] sm:$0xff]
    %v3021 = vld [vmem:[#allocation10 + $0x260] sm:$0xff]
    %v3022 = vld [vmem:[#allocation10 + $0x268] sm:$0xff]
    %v3023 = vld [vmem:[#allocation10 + $0x270] sm:$0xff]
    %v3024 = vld [vmem:[#allocation10 + $0x278] sm:$0xff]
    %v3025 = vld [vmem:[#allocation10 + $0x280] sm:$0xff]
    %v3026 = vld [vmem:[#allocation10 + $0x288] sm:$0xff]
    %v3027 = vld [vmem:[#allocation10 + $0x290] sm:$0xff]
    %v3028 = vld [vmem:[#allocation10 + $0x298] sm:$0xff]
    %v3029 = vld [vmem:[#allocation10 + $0x2a0] sm:$0xff]
    %v3030 = vld [vmem:[#allocation10 + $0x2a8] sm:$0xff]
    %v3031 = vld [vmem:[#allocation10 + $0x2b0] sm:$0xff]
    %v3032 = vld [vmem:[#allocation10 + $0x2b8] sm:$0xff]
    %v3033 = vld [vmem:[#allocation10 + $0x2c0] sm:$0xff]
    %v3034 = vld [vmem:[#allocation10 + $0x2c8] sm:$0xff]
    %v3035 = vld [vmem:[#allocation10 + $0x2d0] sm:$0xff]
    %v3036 = vld [vmem:[#allocation10 + $0x2d8] sm:$0xff]
    %v3037 = vld [vmem:[#allocation10 + $0x2e0] sm:$0xff]
    %v3038 = vld [vmem:[#allocation10 + $0x2e8] sm:$0xff]
    %v3039 = vld [vmem:[#allocation10 + $0x2f0] sm:$0xff]
    %v3040 = vld [vmem:[#allocation10 + $0x2f8] sm:$0xff]
    %3041 = vmatprep.subr.mxu0 %v2991
    %3042 = vmatpush1.msra.mxu0 %v2990
    %3043 = vmatprep.subr.mxu0 %v2988
    %3044 = vmatpush1.msra.mxu0 %v2987
    %3045 = vmatprep.subr.mxu0 %v2985
    %3046 = vmatpush1.msra.mxu0 %v2984
    %3047 = vmatprep.subr.mxu0 %v2982
    %3048 = vmatpush1.msra.mxu0 %v2981
    %3049 = vmatprep.subr.mxu0 %v2979
    %3050 = vmatpush1.msra.mxu0 %v2978
    %3051 = vmatprep.subr.mxu0 %v2976
    %3052 = vmatpush1.msra.mxu0 %v2975
    %3053 = vmatprep.subr.mxu0 %v2973
    %3054 = vmatpush1.msra.mxu0 %v2972
    %3055 = vmatprep.subr.mxu0 %v2970
    %3056 = vmatpush1.msra.mxu0 %v2969
    %3057 = vmatprep.subr.mxu0 %v2967
    %3058 = vmatpush1.msra.mxu0 %v2966
    %3059 = vmatprep.subr.mxu0 %v2964
    %3060 = vmatpush1.msra.mxu0 %v2963
    %3061 = vmatprep.subr.mxu0 %v2961
    %3062 = vmatpush1.msra.mxu0 %v2960
    %3063 = vmatprep.subr.mxu0 %v2958
    %3064 = vmatpush1.msra.mxu0 %v2957
    %3065 = vmatprep.subr.mxu0 %v2955
    %3066 = vmatpush1.msra.mxu0 %v2954
    %3067 = vmatprep.subr.mxu0 %v2952
    %3068 = vmatpush1.msra.mxu0 %v2951
    %3069 = vmatprep.subr.mxu0 %v2949
    %3070 = vmatpush1.msra.mxu0 %v2948
    %3071 = vmatprep.subr.mxu0 %v2946
    %3072 = vmatpush1.msra.mxu0 %v2945
    %3073 = vmatprep.subr.mxu0 %v3039
    %3074 = vmatpush2.msra.mxu0 %v3038
    %3075 = vmatprep.subr.mxu0 %v3036
    %3076 = vmatpush2.msra.mxu0 %v3035
    %3077 = vmatprep.subr.mxu0 %v3033
    %3078 = vmatpush2.msra.mxu0 %v3032
    %3079 = vmatprep.subr.mxu0 %v3030
    %3080 = vmatpush2.msra.mxu0 %v3029
    %3081 = vmatprep.subr.mxu0 %v3027
    %3082 = vmatpush2.msra.mxu0 %v3026
    %3083 = vmatprep.subr.mxu0 %v3024
    %3084 = vmatpush2.msra.mxu0 %v3023
    %3085 = vmatprep.subr.mxu0 %v3021
    %3086 = vmatpush2.msra.mxu0 %v3020
    %3087 = vmatprep.subr.mxu0 %v3018
    %3088 = vmatpush2.msra.mxu0 %v3017
    %3089 = vmatprep.subr.mxu0 %v3015
    %3090 = vmatpush2.msra.mxu0 %v3014
    %3091 = vmatprep.subr.mxu0 %v3012
    %3092 = vmatpush2.msra.mxu0 %v3011
    %3093 = vmatprep.subr.mxu0 %v3009
    %3094 = vmatpush2.msra.mxu0 %v3008
    %3095 = vmatprep.subr.mxu0 %v3006
    %3096 = vmatpush2.msra.mxu0 %v3005
    %3097 = vmatprep.subr.mxu0 %v3003
    %3098 = vmatpush2.msra.mxu0 %v3002
    %3099 = vmatprep.subr.mxu0 %v3000
    %3100 = vmatpush2.msra.mxu0 %v2999
    %3101 = vmatprep.subr.mxu0 %v2997
    %3102 = vmatpush2.msra.mxu0 %v2996
    %3103 = vmatprep.subr.mxu0 %v2994
    %3104 = vmatpush2.msra.mxu0 %v2993
    %3105 = vmatprep.mubr.f32.mxu0 %v2939
    %3106 = vmatmul.mubr.f32.gmra.mxu0 %v2937
    %v3107 = vpop.f32.mrf.mxu0
    %v3108 = vadd.f32 0.0, %v3107
    %v3109 = vpop.f32.mrf.mxu0
    %v3110 = vadd.f32 0.0, %v3109
    %3111 = vmatprep.mubr.f32.mxu0 %v2940
    %3112 = vmatmul.mubr.f32.gmra.mxu0 %v2938
    %v3113 = vpop.f32.mrf.mxu0
    %v3114 = vadd.f32 0.0, %v3113
    %v3115 = vpop.f32.mrf.mxu0
    %v3116 = vadd.f32 0.0, %v3115
    %3117 = vdwg.mxu0
    %3118 = vmatprep.subr.mxu0 0.0
    %3119 = vmatpush1.msra.mxu0 %v2992
    %3120 = vmatprep.subr.mxu0 0.0
    %3121 = vmatpush1.msra.mxu0 %v2989
    %3122 = vmatprep.subr.mxu0 0.0
    %3123 = vmatpush1.msra.mxu0 %v2986
    %3124 = vmatprep.subr.mxu0 0.0
    %3125 = vmatpush1.msra.mxu0 %v2983
    %3126 = vmatprep.subr.mxu0 0.0
    %3127 = vmatpush1.msra.mxu0 %v2980
    %3128 = vmatprep.subr.mxu0 0.0
    %3129 = vmatpush1.msra.mxu0 %v2977
    %3130 = vmatprep.subr.mxu0 0.0
    %3131 = vmatpush1.msra.mxu0 %v2974
    %3132 = vmatprep.subr.mxu0 0.0
    %3133 = vmatpush1.msra.mxu0 %v2971
    %3134 = vmatprep.subr.mxu0 0.0
    %3135 = vmatpush1.msra.mxu0 %v2968
    %3136 = vmatprep.subr.mxu0 0.0
    %3137 = vmatpush1.msra.mxu0 %v2965
    %3138 = vmatprep.subr.mxu0 0.0
    %3139 = vmatpush1.msra.mxu0 %v2962
    %3140 = vmatprep.subr.mxu0 0.0
    %3141 = vmatpush1.msra.mxu0 %v2959
    %3142 = vmatprep.subr.mxu0 0.0
    %3143 = vmatpush1.msra.mxu0 %v2956
    %3144 = vmatprep.subr.mxu0 0.0
    %3145 = vmatpush1.msra.mxu0 %v2953
    %3146 = vmatprep.subr.mxu0 0.0
    %3147 = vmatpush1.msra.mxu0 %v2950
    %3148 = vmatprep.subr.mxu0 0.0
    %3149 = vmatpush1.msra.mxu0 %v2947
    %3150 = vmatprep.subr.mxu0 0.0
    %3151 = vmatpush2.msra.mxu0 %v3040
    %3152 = vmatprep.subr.mxu0 0.0
    %3153 = vmatpush2.msra.mxu0 %v3037
    %3154 = vmatprep.subr.mxu0 0.0
    %3155 = vmatpush2.msra.mxu0 %v3034
    %3156 = vmatprep.subr.mxu0 0.0
    %3157 = vmatpush2.msra.mxu0 %v3031
    %3158 = vmatprep.subr.mxu0 0.0
    %3159 = vmatpush2.msra.mxu0 %v3028
    %3160 = vmatprep.subr.mxu0 0.0
    %3161 = vmatpush2.msra.mxu0 %v3025
    %3162 = vmatprep.subr.mxu0 0.0
    %3163 = vmatpush2.msra.mxu0 %v3022
    %3164 = vmatprep.subr.mxu0 0.0
    %3165 = vmatpush2.msra.mxu0 %v3019
    %3166 = vmatprep.subr.mxu0 0.0
    %3167 = vmatpush2.msra.mxu0 %v3016
    %3168 = vmatprep.subr.mxu0 0.0
    %3169 = vmatpush2.msra.mxu0 %v3013
    %3170 = vmatprep.subr.mxu0 0.0
    %3171 = vmatpush2.msra.mxu0 %v3010
    %3172 = vmatprep.subr.mxu0 0.0
    %3173 = vmatpush2.msra.mxu0 %v3007
    %3174 = vmatprep.subr.mxu0 0.0
    %3175 = vmatpush2.msra.mxu0 %v3004
    %3176 = vmatprep.subr.mxu0 0.0
    %3177 = vmatpush2.msra.mxu0 %v3001
    %3178 = vmatprep.subr.mxu0 0.0
    %3179 = vmatpush2.msra.mxu0 %v2998
    %3180 = vmatprep.subr.mxu0 0.0
    %3181 = vmatpush2.msra.mxu0 %v2995
    %3182 = vmatprep.mubr.f32.mxu0 %v2939
    %3183 = vmatmul.mubr.f32.gmra.mxu0 %v2937
    %v3184 = vpop.f32.mrf.mxu0
    %v3185 = vadd.f32 0.0, %v3184
    %v3186 = vpop.f32.mrf.mxu0
    %3187 = vmatprep.mubr.f32.mxu0 %v2940
    %3188 = vmatmul.mubr.f32.gmra.mxu0 %v2938
    %v3189 = vpop.f32.mrf.mxu0
    %v3190 = vadd.f32 0.0, %v3189
    %v3191 = vpop.f32.mrf.mxu0
    %3192 = vdwg.mxu0
    %v3193 = vadd.f32 %v2929, %v3108
    %v3194 = vadd.f32 %v2932, %v3114
    %v3195 = vxor.u32 %v3193, 2147483648
    %v3196 = vxor.u32 %v3194, 2147483648
    %v3197 = vmul.f32 %v3195, 1.442695
    %v3198 = vpow.pop %v3197
    %v3199 = vmul.f32 %v3196, 1.442695
    %v3200 = vpow.pop %v3199
    %v3201 = vadd.f32 %v3198, 1.0
    %v3202 = vadd.f32 %v3200, 1.0
    %v3203 = vrcp.pop %v3201
    %v3204 = vmul.f32 1.0, %v3203
    %v3205 = vrcp.pop %v3202
    %v3206 = vmul.f32 1.0, %v3205
    %v3207 = vadd.f32 %v2930, %v3110
    %v3208 = vadd.f32 %v2933, %v3116
    %v3209 = vxor.u32 %v3207, 2147483648
    %v3210 = vxor.u32 %v3208, 2147483648
    %v3211 = vmul.f32 %v3209, 1.442695
    %v3212 = vpow.pop %v3211
    %v3213 = vmul.f32 %v3210, 1.442695
    %v3214 = vpow.pop %v3213
    %v3215 = vadd.f32 %v3212, 1.0
    %v3216 = vadd.f32 %v3214, 1.0
    %v3217 = vrcp.pop %v3215
    %v3218 = vmul.f32 1.0, %v3217
    %v3219 = vrcp.pop %v3216
    %v3220 = vmul.f32 1.0, %v3219
    %v3221 = vadd.f32 %v3185, %v607
    %v3222 = vadd.f32 %v3190, %v614
    %v3223 = vmul.f32 %v3204, %v3221
    %v3224 = vmul.f32 %v3206, %v3222
    %v3225 = vadd.f32 %v2931, %v3223
    %v3226 = vadd.f32 %v2934, %v3224
    %v3227 = vtanh.pop %v3225
    %v3228 = vtanh.pop %v3226
    %v3229 = vsub.f32 1.0, %v3218
    %v3230 = vsub.f32 1.0, %v3220
    %v3231 = vmul.f32 %v3229, %v3227
    %v3232 = vmul.f32 %v3230, %v3228
    %v3233 = vmul.f32 %v3218, %v2935
    %v3234 = vmul.f32 %v3220, %v2936
    %v3235 = vadd.f32 %v3231, %v3233
    %v3236 = vadd.f32 %v3232, %v3234
    %v3237 = vsel %vm2943, 1, 0
    %v3238 = vsel %vm2944, 1, 0
    %3239 = vset.pattern.permute.xlu0 0
    %3240 = vperm.xlu0 %3239, %v3237
    %v3241 = vpop.permute.xlu0 %3240
    %3242 = vset.pattern.permute.xlu0 0
    %3243 = vperm.xlu0 %3242, %v3238
    %v3244 = vpop.permute.xlu0 %3243
    %vm3245 = vcmp.eq.s32.totalorder %v3241, 1
    %vm3246 = vcmp.eq.s32.totalorder %v3244, 1
    %v3247 = vsel %vm3245, %v3235, %v2935
    %v3248 = vsel %vm3246, %v3236, %v2936
    %3249 = vst [vmem:[#allocation3] sm:$0xff] %v3247
    %3250 = vst [vmem:[#allocation3 + $0x8] sm:$0xff] %v3248
    %v3251 = vsel %vm3245, %v3235, 0.0
    %v3252 = vsel %vm3246, %v3236, 0.0
    %3253 = vst [vmem:[%s947] sm:$0xff] %v3251
    %3254 = vst [vmem:[#allocation4 + $0x8] sm:$0xff] %v3252
    %v3255 = vld [vmem:[#allocation4] sm:$0xff]
    %v3256 = vld [vmem:[#allocation4 + $0x8] sm:$0xff]
    %v3257 = vld [vmem:[#allocation4 + $0x10] sm:$0xff]
    %v3258 = vld [vmem:[#allocation4 + $0x18] sm:$0xff]
    %v3259 = vld [vmem:[#allocation4 + $0x20] sm:$0xff]
    %v3260 = vld [vmem:[#allocation4 + $0x28] sm:$0xff]
    %v3261 = vld [vmem:[#allocation4 + $0x30] sm:$0xff]
    %v3262 = vld [vmem:[#allocation4 + $0x38] sm:$0xff]
    %v3263 = vld [vmem:[#allocation4 + $0x40] sm:$0xff]
    %v3264 = vld [vmem:[#allocation4 + $0x48] sm:$0xff]
    %v3265 = vld [vmem:[#allocation4 + $0x50] sm:$0xff]
    %v3266 = vld [vmem:[#allocation4 + $0x58] sm:$0xff]
    %v3267 = vld [vmem:[#allocation4 + $0x60] sm:$0xff]
    %v3268 = vld [vmem:[#allocation4 + $0x68] sm:$0xff]
    %v3269 = vld [vmem:[#allocation4 + $0x70] sm:$0xff]
    %v3270 = vld [vmem:[#allocation4 + $0x78] sm:$0xff]
    %v3271 = vadd.f32 %v3255, %v3256
    %v3272 = vadd.f32 %v3257, %v3258
    %v3273 = vadd.f32 %v3259, %v3260
    %v3274 = vadd.f32 %v3261, %v3262
    %v3275 = vadd.f32 %v3263, %v3264
    %v3276 = vadd.f32 %v3265, %v3266
    %v3277 = vadd.f32 %v3267, %v3268
    %v3278 = vadd.f32 %v3269, %v3270
    %v3279 = vmul.f32 %v3271, 0.5
    %v3280 = vmul.f32 %v3272, 0.5
    %v3281 = vmul.f32 %v3273, 0.5
    %v3282 = vmul.f32 %v3274, 0.5
    %v3283 = vmul.f32 %v3275, 0.5
    %v3284 = vmul.f32 %v3276, 0.5
    %v3285 = vmul.f32 %v3277, 0.5
    %v3286 = vmul.f32 %v3278, 0.5
    %v3287 = vmul.f32 %v3279, %v3279
    %v3288 = vmul.f32 %v3280, %v3280
    %v3289 = vmul.f32 %v3281, %v3281
    %v3290 = vmul.f32 %v3282, %v3282
    %v3291 = vmul.f32 %v3283, %v3283
    %v3292 = vmul.f32 %v3284, %v3284
    %v3293 = vmul.f32 %v3285, %v3285
    %v3294 = vmul.f32 %v3286, %v3286
    %3295 = vadd.xlane.f32.xlu0 %v3287
    %v3296 = vpop.xlane.xlu0 %3295
    %3297 = vadd.xlane.f32.xlu0 %v3288
    %v3298 = vpop.xlane.xlu0 %3297
    %3299 = vadd.xlane.f32.xlu0 %v3289
    %v3300 = vpop.xlane.xlu0 %3299
    %3301 = vadd.xlane.f32.xlu0 %v3290
    %v3302 = vpop.xlane.xlu0 %3301
    %3303 = vadd.xlane.f32.xlu0 %v3291
    %v3304 = vpop.xlane.xlu0 %3303
    %3305 = vadd.xlane.f32.xlu0 %v3292
    %v3306 = vpop.xlane.xlu0 %3305
    %3307 = vadd.xlane.f32.xlu0 %v3293
    %v3308 = vpop.xlane.xlu0 %3307
    %3309 = vadd.xlane.f32.xlu0 %v3294
    %v3310 = vpop.xlane.xlu0 %3309
    %v3311 = vrsqrt.pop %v3296
    %v3312 = vmul.f32 %v3296, %v3311
    %vm3313 = vcmp.eq.f32.partialorder %v3296, inf
    %v3314 = vsel %vm3313, %v3296, %v3312
    %vm3315 = vcmp.eq.f32.partialorder %v3296, 0.0
    %v3316 = vand.u32 %v3296, 2147483648
    %v3317 = vsel %vm3315, %v3316, %v3314
    %v3318 = vrsqrt.pop %v3298
    %v3319 = vmul.f32 %v3298, %v3318
    %vm3320 = vcmp.eq.f32.partialorder %v3298, inf
    %v3321 = vsel %vm3320, %v3298, %v3319
    %vm3322 = vcmp.eq.f32.partialorder %v3298, 0.0
    %v3323 = vand.u32 %v3298, 2147483648
    %v3324 = vsel %vm3322, %v3323, %v3321
    %v3325 = vrsqrt.pop %v3300
    %v3326 = vmul.f32 %v3300, %v3325
    %vm3327 = vcmp.eq.f32.partialorder %v3300, inf
    %v3328 = vsel %vm3327, %v3300, %v3326
    %vm3329 = vcmp.eq.f32.partialorder %v3300, 0.0
    %v3330 = vand.u32 %v3300, 2147483648
    %v3331 = vsel %vm3329, %v3330, %v3328
    %v3332 = vrsqrt.pop %v3302
    %v3333 = vmul.f32 %v3302, %v3332
    %vm3334 = vcmp.eq.f32.partialorder %v3302, inf
    %v3335 = vsel %vm3334, %v3302, %v3333
    %vm3336 = vcmp.eq.f32.partialorder %v3302, 0.0
    %v3337 = vand.u32 %v3302, 2147483648
    %v3338 = vsel %vm3336, %v3337, %v3335
    %v3339 = vrsqrt.pop %v3304
    %v3340 = vmul.f32 %v3304, %v3339
    %vm3341 = vcmp.eq.f32.partialorder %v3304, inf
    %v3342 = vsel %vm3341, %v3304, %v3340
    %vm3343 = vcmp.eq.f32.partialorder %v3304, 0.0
    %v3344 = vand.u32 %v3304, 2147483648
    %v3345 = vsel %vm3343, %v3344, %v3342
    %v3346 = vrsqrt.pop %v3306
    %v3347 = vmul.f32 %v3306, %v3346
    %vm3348 = vcmp.eq.f32.partialorder %v3306, inf
    %v3349 = vsel %vm3348, %v3306, %v3347
    %vm3350 = vcmp.eq.f32.partialorder %v3306, 0.0
    %v3351 = vand.u32 %v3306, 2147483648
    %v3352 = vsel %vm3350, %v3351, %v3349
    %v3353 = vrsqrt.pop %v3308
    %v3354 = vmul.f32 %v3308, %v3353
    %vm3355 = vcmp.eq.f32.partialorder %v3308, inf
    %v3356 = vsel %vm3355, %v3308, %v3354
    %vm3357 = vcmp.eq.f32.partialorder %v3308, 0.0
    %v3358 = vand.u32 %v3308, 2147483648
    %v3359 = vsel %vm3357, %v3358, %v3356
    %v3360 = vrsqrt.pop %v3310
    %v3361 = vmul.f32 %v3310, %v3360
    %vm3362 = vcmp.eq.f32.partialorder %v3310, inf
    %v3363 = vsel %vm3362, %v3310, %v3361
    %vm3364 = vcmp.eq.f32.partialorder %v3310, 0.0
    %v3365 = vand.u32 %v3310, 2147483648
    %v3366 = vsel %vm3364, %v3365, %v3363
    %v3367 = vadd.f32 %v3317, 1e-08
    %v3368 = vadd.f32 %v3324, 1e-08
    %v3369 = vadd.f32 %v3331, 1e-08
    %v3370 = vadd.f32 %v3338, 1e-08
    %v3371 = vadd.f32 %v3345, 1e-08
    %v3372 = vadd.f32 %v3352, 1e-08
    %v3373 = vadd.f32 %v3359, 1e-08
    %v3374 = vadd.f32 %v3366, 1e-08
    %v3375 = vrcp.pop %v3367
    %v3376 = vmul.f32 %v3279, %v3375
    %v3377 = vrcp.pop %v3368
    %v3378 = vmul.f32 %v3280, %v3377
    %v3379 = vrcp.pop %v3369
    %v3380 = vmul.f32 %v3281, %v3379
    %v3381 = vrcp.pop %v3370
    %v3382 = vmul.f32 %v3282, %v3381
    %v3383 = vrcp.pop %v3371
    %v3384 = vmul.f32 %v3283, %v3383
    %v3385 = vrcp.pop %v3372
    %v3386 = vmul.f32 %v3284, %v3385
    %v3387 = vrcp.pop %v3373
    %v3388 = vmul.f32 %v3285, %v3387
    %v3389 = vrcp.pop %v3374
    %v3390 = vmul.f32 %v3286, %v3389
    %3391 = vst [vmem:[#allocation11] sm:$0xff] %v3376
    %3392 = vst [vmem:[#allocation11 + $0x8] sm:$0xff] %v3378
    %3393 = vst [vmem:[#allocation11 + $0x10] sm:$0xff] %v3380
    %3394 = vst [vmem:[#allocation11 + $0x18] sm:$0xff] %v3382
    %3395 = vst [vmem:[#allocation11 + $0x20] sm:$0xff] %v3384
    %3396 = vst [vmem:[#allocation11 + $0x28] sm:$0xff] %v3386
    %3397 = vst [vmem:[#allocation11 + $0x30] sm:$0xff] %v3388
    %3398 = vst [vmem:[#allocation11 + $0x38] sm:$0xff] %v3390
    // Predicated region
    $region38: #{tpu_custom_call.1} parent=1 // pred_check
      _
    $region39: #{tpu_custom_call.1} parent=1 // pred_check_branch
      %3400 = sbr.rel (0) target = $region41
    $region40: #{tpu_custom_call.1} parent=1 // pred_region
      %s3402 = ssub.s32 1024, 1024
      %3403 = vsyncadd [#allocation7], %s3402
      %s3404 = sshll.u32 [#allocation11], 4
      %s3405 = int_to_ptr.vmem [resolvable:$true] %s3404
      %3410 = dma.vmem_to_hbm [thread:$0]  %s3405, 1024, %s6, [#allocation7], 128, 128, 8
    $region41: #{tpu_custom_call.1} parent=1 // pred_fallthru
      _
    // Predicated region
    $region42: #{tpu_custom_call.1} parent=1 // pred_check
      _
    $region43: #{tpu_custom_call.1} parent=1 // pred_check_branch
      %3412 = sbr.rel (0) target = $region45
    $region44: #{tpu_custom_call.1} parent=1 // pred_region
      %3413 = dma.done [#allocation7], 1024
    $region45: #{tpu_custom_call.1} parent=1 // pred_fallthru
      _
    %3414 = vsyncpa [#allocation6], 1
    %3415 = vsyncpa [#allocation9], 1
    %3416 = vsyncpa [#allocation7], 1

</llo_original>
